<compile_context>
chip_gen: v5e
topology: v5e:2x2
jax: 0.10.0
libtpu: 0.0.40
codegen_flags: <defaults>
</compile_context>

<pallas_src>
import math
import numpy as np
import jax
import jax.numpy as jnp
from jax.experimental import pallas as pl
from jax.experimental.pallas import tpu as pltpu


def _round_up(x, m):
    return ((x + m - 1) // m) * m


def make_simformer_kernel(n_heads, ln_eps=1e-5):
    def kernel(x_ref, mask_ref, kbias_ref, bdiag_ref, peb_ref, wp_ref,
               wq_ref, wk_ref, wv_ref, wo_ref, w1_ref, b1_ref, w2_ref,
               vec_ref, hmask_ref, out_ref):
        M, _ = x_ref.shape                 # M = BB * S token rows
        BB, S = mask_ref.shape
        NG, L = kbias_ref.shape            # NG groups of G sequences, L = G*S (=128)
        H = wq_ref.shape[1]

        vec = vec_ref[...]                 # (8, H): bq*scale, bv, bo, g1, be1, bf2, g2, be2
        bq, bv, bo = vec[0:1, :], vec[1:2, :], vec[2:3, :]
        g1, be1 = vec[3:4, :], vec[4:5, :]
        bf2, g2, be2 = vec[5:6, :], vec[6:7, :], vec[7:8, :]

        # ---- input projection (padded-K f32 matmul) + (pos_enc + b_p) ----
        h = jnp.dot(x_ref[...], wp_ref[...], preferred_element_type=jnp.float32)
        h = h.reshape(BB, S, H) + peb_ref[...][None, :, :]
        hflat = h.reshape(M, H)                                  # (M, H) f32
        hb = hflat.astype(jnp.bfloat16)

        # ---- Q / K / V projections: bf16 MXU, f32 accumulate (scale folded in Wq/bq) ----
        q = jnp.dot(hb, wq_ref[...], preferred_element_type=jnp.float32) + bq
        k = jnp.dot(hb, wk_ref[...], preferred_element_type=jnp.float32)
        v = jnp.dot(hb, wv_ref[...], preferred_element_type=jnp.float32) + bv
        qg = q.reshape(NG, L, H)                                 # f32 (masked per head)
        kb = k.reshape(NG, L, H).astype(jnp.bfloat16)
        vb = v.reshape(NG, L, H).astype(jnp.bfloat16)

        # combined additive bias: block-diagonal (no cross-sequence attention)
        # + key-padding bias, precomputed per-step once.
        bias = bdiag_ref[...][None, :, :] + kbias_ref[...][:, None, :]   # (NG, L, L)

        # ---- multi-head attention on 128-lane block-diagonal score tiles ----
        attn = jnp.zeros((NG, L, H), jnp.float32)
        for hd in range(n_heads):                                # static unroll, n_heads small
            hm = hmask_ref[hd:hd + 1, :]                         # (1, H) selects this head's dims
            qm = (qg * hm).astype(jnp.bfloat16)                  # zero non-head dims -> K=H contract ok
            s = jnp.einsum('gqd,gkd->gqk', qm, kb,
                           preferred_element_type=jnp.float32) + bias
            s = s - jnp.max(s, axis=-1, keepdims=True)           # full 128-lane reductions
            p = jnp.exp(s)
            r = pl.reciprocal(jnp.sum(p, axis=-1, keepdims=True), approx=True)
            pv = jnp.einsum('gqk,gkd->gqd', p.astype(jnp.bfloat16), vb,
                            preferred_element_type=jnp.float32)  # (NG, L, H)
            # normalize + keep only this head's output columns (no lane concat)
            attn = attn + pv * (r * hm)

        # ---- single output projection (one K=H matmul) ----
        attn_out = jnp.dot(attn.reshape(M, H).astype(jnp.bfloat16), wo_ref[...],
                           preferred_element_type=jnp.float32) + bo

        # ---- residual + LayerNorm1 (two-moment form) ----
        y = hflat + attn_out
        mu = jnp.mean(y, axis=-1, keepdims=True)
        ms = jnp.mean(y * y, axis=-1, keepdims=True)
        y = (y - mu) * jax.lax.rsqrt(ms - mu * mu + ln_eps) * g1 + be1

        # ---- feed-forward (relu), bf16 MXU ----
        f1 = jnp.dot(y.astype(jnp.bfloat16), w1_ref[...],
                     preferred_element_type=jnp.float32) + b1_ref[...]
        f1 = jnp.maximum(f1, 0.0)
        f2 = jnp.dot(f1.astype(jnp.bfloat16), w2_ref[...],
                     preferred_element_type=jnp.float32) + bf2

        # ---- residual + LayerNorm2 ----
        z = y + f2
        mu2 = jnp.mean(z, axis=-1, keepdims=True)
        ms2 = jnp.mean(z * z, axis=-1, keepdims=True)
        z = (z - mu2) * jax.lax.rsqrt(ms2 - mu2 * mu2 + ln_eps) * g2 + be2

        # ---- masked mean pooling + final ReLU ----
        # TODO(synk): a fully-padded sequence (sum(mask)==0) yields NaN/inf, matching
        # the PyTorch reference behavior.
        m = mask_ref[...]                                        # (BB, S), 1.0 = valid
        z3 = z.reshape(BB, S, H)
        pooled = jnp.sum(z3 * m[:, :, None], axis=1)             # (BB, H)
        denom = jnp.sum(m, axis=1, keepdims=True)                # (BB, 1)
        pooled = pooled / denom                                  # exact divide (tiny op)
        out_ref[...] = jnp.maximum(pooled, 0.0)

    return kernel


def simformer_forward(x, padding_mask, params, *, n_heads, block_b=256):
    """x: (B, S, F) f32, padding_mask: (B, S) f32 (1 = valid). Returns (B, H) f32."""
    B, S, F = x.shape
    (wp, peb, wq, wk, wv, wo, w1, b1, w2, vecs, hmasks, bdiag) = params
    H = wq.shape[1]
    Fp = wp.shape[0]                   # feature dim zero-padded to a multiple of 8
    L = bdiag.shape[0]
    G = L // S                         # sequences per 128-lane attention group

    # Batch-block size: multiple of G, aim for >= 2 grid steps (v7x has 2 TCs),
    # cap at block_b; multi-step grids need (BB // G) divisible by 8.
    BB = max(G, min(block_b, _round_up((B + 1) // 2, G)))
    BB = _round_up(BB, G)
    B_pad = _round_up(B, BB)
    if B_pad > BB:
        BB = _round_up(BB, 8 * G)
        B_pad = _round_up(B, BB)
    NG = BB // G

    if B_pad != B:
        x = jnp.pad(x, ((0, B_pad - B), (0, 0), (0, 0)))
        # padded rows get an all-ones mask so the pooling divide stays finite
        padding_mask = jnp.pad(padding_mask, ((0, B_pad - B), (0, 0)),
                               constant_values=1.0)

    x2 = x.reshape(B_pad * S, F)
    if Fp != F:
        x2 = jnp.pad(x2, ((0, 0), (0, Fp - F)))
    keybias = ((1.0 - padding_mask) * (-1e30)).reshape(B_pad // G, G * S)

    kernel = make_simformer_kernel(n_heads)

    def const_spec(p):
        return pl.BlockSpec(p.shape, lambda b: (0,) * p.ndim)

    grid_spec = pltpu.PrefetchScalarGridSpec(
        num_scalar_prefetch=0,
        grid=(B_pad // BB,),
        in_specs=[pl.BlockSpec((BB * S, Fp), lambda b: (b, 0)),
                  pl.BlockSpec((BB, S), lambda b: (b, 0)),
                  pl.BlockSpec((NG, L), lambda b: (b, 0))] +
                 [const_spec(p) for p in (bdiag, peb, wp, wq, wk, wv, wo,
                                          w1, b1, w2, vecs, hmasks)],
        out_specs=pl.BlockSpec((BB, H), lambda b: (b, 0)),
    )
    out = pl.pallas_call(
        kernel,
        out_shape=jax.ShapeDtypeStruct((B_pad, H), jnp.float32),
        grid_spec=grid_spec,
        compiler_params=pltpu.CompilerParams(
            dimension_semantics=("parallel",),      # batch blocks are independent
            vmem_limit_bytes=48 * 1024 * 1024),     # headroom for BB=256 slabs, < v7x 64MiB
    )(x2, padding_mask, keybias, bdiag, peb, wp, wq, wk, wv, wo,
      w1, b1, w2, vecs, hmasks)
    return out[:B]


def pack_params(natural, *, n_heads, seq_len):
    """Natural (per-matrix/vector) params -> the kernel's fused/packed params."""
    (Wp, bp, pe, Wq, bq, Wk, bk, Wv, bv, Wo, bo,
     g1, be1, W1, bf1, W2, bf2, g2, be2) = natural
    F, H = Wp.shape
    dh = H // n_heads
    scale = 1.0 / math.sqrt(dh)
    S = seq_len
    G = max(1, 128 // S)
    L = G * S

    Fp = _round_up(F, 8)
    wp = jnp.zeros((Fp, H), jnp.float32).at[:F].set(Wp)
    peb = (pe[:S] + bp[None, :]).astype(jnp.float32)            # pos-enc + b_p  (S, H)

    # bf16 MXU weights (f32 accumulation in-kernel); attention scale folded into Wq/bq.
    wq = (Wq * scale).astype(jnp.bfloat16)
    wk = Wk.astype(jnp.bfloat16)
    wv = Wv.astype(jnp.bfloat16)
    wo = Wo.astype(jnp.bfloat16)
    w1 = W1.astype(jnp.bfloat16)
    w2 = W2.astype(jnp.bfloat16)
    b1 = bf1[None, :].astype(jnp.float32)

    # NOTE: b_k is dropped on purpose: it only adds a per-query constant to every
    # score row, which softmax is invariant to.
    vecs = jnp.stack([bq * scale, bv, bo, g1, be1, bf2, g2, be2], 0).astype(jnp.float32)

    hmasks = jnp.zeros((n_heads, H), jnp.float32)
    for hd in range(n_heads):
        hmasks = hmasks.at[hd, hd * dh:(hd + 1) * dh].set(1.0)

    seq_id = jnp.arange(L) // S
    bdiag = jnp.where(seq_id[:, None] == seq_id[None, :], 0.0, -1e30).astype(jnp.float32)

    return (wp, peb, wq, wk, wv, wo, w1, b1, w2, vecs, hmasks, bdiag)


def simformer_reference(x, mask_f, natural, *, n_heads):
    """Pure-JAX f32 reference with identical math for a correctness check."""
    (Wp, bp, pe, Wq, bq, Wk, bk, Wv, bv, Wo, bo,
     g1, be1, W1, bf1, W2, bf2, g2, be2) = natural
    B, S, _ = x.shape
    H = Wp.shape[1]
    dh = H // n_heads
    h = x @ Wp + bp + pe[None]
    q = (h @ Wq + bq).reshape(B, S, n_heads, dh).transpose(0, 2, 1, 3)
    k = (h @ Wk + bk).reshape(B, S, n_heads, dh).transpose(0, 2, 1, 3)
    v = (h @ Wv + bv).reshape(B, S, n_heads, dh).transpose(0, 2, 1, 3)
    s = jnp.einsum('bhqd,bhkd->bhqk', q, k) / math.sqrt(dh)
    s = s + (1.0 - mask_f)[:, None, None, :] * (-1e30)
    p = jax.nn.softmax(s, axis=-1)
    o = jnp.einsum('bhqk,bhkd->bhqd', p, v).transpose(0, 2, 1, 3).reshape(B, S, H)
    attn = o @ Wo + bo

    def ln(t, g, b_):
        mu = t.mean(-1, keepdims=True)
        var = ((t - mu) ** 2).mean(-1, keepdims=True)
        return (t - mu) / jnp.sqrt(var + 1e-5) * g + b_

    y = ln(h + attn, g1, be1)
    f = jnp.maximum(y @ W1 + bf1, 0.0) @ W2 + bf2
    z = ln(y + f, g2, be2)
    pooled = (z * mask_f[..., None]).sum(1) / mask_f.sum(1, keepdims=True)
    return jnp.maximum(pooled, 0.0)


if __name__ == "__main__":
    # Small shapes consistent with the module: feat_dim=2 (lon/lat), hidden=32,
    # 4 heads (hidden must divide by heads), feedforward=64, seq=8, batch=2.
    B, S, FEAT, H, N_HEADS, FF = 2, 8, 2, 32, 4, 64

    key = jax.random.PRNGKey(0)
    ks = jax.random.split(key, 16)

    def w(k, shape, scl=0.1):
        return (scl * jax.random.normal(k, shape)).astype(jnp.float32)

    natural = (
        w(ks[0], (FEAT, H)),            # Wp
        w(ks[1], (H,)),                 # bp
        w(ks[2], (S, H), 0.02),         # learnable pos-enc slice [:S]
        w(ks[3], (H, H)),               # Wq
        w(ks[4], (H,)),                 # bq
        w(ks[5], (H, H)),               # Wk
        w(ks[6], (H,)),                 # bk
        w(ks[7], (H, H)),               # Wv
        w(ks[8], (H,)),                 # bv
        w(ks[9], (H, H)),               # Wo
        w(ks[10], (H,)),                # bo
        jnp.ones((H,), jnp.float32),    # LN1 gamma
        jnp.zeros((H,), jnp.float32),   # LN1 beta
        w(ks[11], (H, FF)),             # FFN W1
        w(ks[12], (FF,)),               # FFN b1
        w(ks[13], (FF, H)),             # FFN W2
        w(ks[14], (H,)),                # FFN b2
        jnp.ones((H,), jnp.float32),    # LN2 gamma
        jnp.zeros((H,), jnp.float32),   # LN2 beta
    )
    params = pack_params(natural, n_heads=N_HEADS, seq_len=S)

    x = (0.5 * jax.random.normal(ks[15], (B, S, FEAT))).astype(jnp.float32)
    # padding_masks: 1 = valid token (second sequence has 2 padded positions)
    padding_mask = jnp.array([[1] * 8, [1] * 6 + [0] * 2], dtype=jnp.float32)

    out = simformer_forward(x, padding_mask, params, n_heads=N_HEADS)
    out = jax.block_until_ready(out)

    ref = jax.block_until_ready(
        simformer_reference(x, padding_mask, natural, n_heads=N_HEADS))

    assert out.shape == (B, H), out.shape
    # bf16 MXU operands + approx reciprocal in softmax -> looser tolerance than pure f32
    np.testing.assert_allclose(np.asarray(out), np.asarray(ref), rtol=5e-2, atol=3e-2)
    print("KERNEL_OK")
</pallas_src>

<mosaic_0001>
module attributes {stable_mosaic.version = 11 : i64} {
  func.func @kernel(%arg0: i32, %arg1: memref<128x8xf32, #tpu.memory_space<vmem>>, %arg2: memref<16x8xf32, #tpu.memory_space<vmem>>, %arg3: memref<1x128xf32, #tpu.memory_space<vmem>>, %arg4: memref<128x128xf32, #tpu.memory_space<vmem>>, %arg5: memref<8x32xf32, #tpu.memory_space<vmem>>, %arg6: memref<8x32xf32, #tpu.memory_space<vmem>>, %arg7: memref<32x32xbf16, #tpu.memory_space<vmem>>, %arg8: memref<32x32xbf16, #tpu.memory_space<vmem>>, %arg9: memref<32x32xbf16, #tpu.memory_space<vmem>>, %arg10: memref<32x32xbf16, #tpu.memory_space<vmem>>, %arg11: memref<32x64xbf16, #tpu.memory_space<vmem>>, %arg12: memref<1x64xf32, #tpu.memory_space<vmem>>, %arg13: memref<64x32xbf16, #tpu.memory_space<vmem>>, %arg14: memref<8x32xf32, #tpu.memory_space<vmem>>, %arg15: memref<4x32xf32, #tpu.memory_space<vmem>>, %arg16: memref<16x32xf32, #tpu.memory_space<vmem>>) attributes {dimension_semantics = [#tpu.dimension_semantics<parallel>], iteration_bounds = array<i64: 1>, scalar_prefetch = 0 : i64, scratch_operands = 0 : i64, tpu.core_type = #tpu.core_type<tc>, window_params = [{transform_indices = @transform_0, window_bounds = array<i64: 128, 8>}, {transform_indices = @transform_1, window_bounds = array<i64: 16, 8>}, {transform_indices = @transform_2, window_bounds = array<i64: 1, 128>}, {pipeline_mode = #tpu.pipeline_mode<synchronous>, transform_indices = @transform_3, window_bounds = array<i64: 128, 128>}, {pipeline_mode = #tpu.pipeline_mode<synchronous>, transform_indices = @transform_4, window_bounds = array<i64: 8, 32>}, {pipeline_mode = #tpu.pipeline_mode<synchronous>, transform_indices = @transform_5, window_bounds = array<i64: 8, 32>}, {pipeline_mode = #tpu.pipeline_mode<synchronous>, transform_indices = @transform_6, window_bounds = array<i64: 32, 32>}, {pipeline_mode = #tpu.pipeline_mode<synchronous>, transform_indices = @transform_7, window_bounds = array<i64: 32, 32>}, {pipeline_mode = #tpu.pipeline_mode<synchronous>, transform_indices = @transform_8, window_bounds = array<i64: 32, 32>}, {pipeline_mode = #tpu.pipeline_mode<synchronous>, transform_indices = @transform_9, window_bounds = array<i64: 32, 32>}, {pipeline_mode = #tpu.pipeline_mode<synchronous>, transform_indices = @transform_10, window_bounds = array<i64: 32, 64>}, {pipeline_mode = #tpu.pipeline_mode<synchronous>, transform_indices = @transform_11, window_bounds = array<i64: 1, 64>}, {pipeline_mode = #tpu.pipeline_mode<synchronous>, transform_indices = @transform_12, window_bounds = array<i64: 64, 32>}, {pipeline_mode = #tpu.pipeline_mode<synchronous>, transform_indices = @transform_13, window_bounds = array<i64: 8, 32>}, {pipeline_mode = #tpu.pipeline_mode<synchronous>, transform_indices = @transform_14, window_bounds = array<i64: 4, 32>}, {transform_indices = @transform_15, window_bounds = array<i64: 16, 32>}]} {
    %c0 = arith.constant 0 : index
    %c0_0 = arith.constant 0 : index
    %0 = vector.load %arg14[%c0, %c0_0] : memref<8x32xf32, #tpu.memory_space<vmem>>, vector<8x32xf32>
    %1 = vector.extract_strided_slice %0 {offsets = [0, 0], sizes = [1, 32], strides = [1, 1]} : vector<8x32xf32> to vector<1x32xf32>
    %2 = vector.extract_strided_slice %0 {offsets = [1, 0], sizes = [1, 32], strides = [1, 1]} : vector<8x32xf32> to vector<1x32xf32>
    %3 = vector.extract_strided_slice %0 {offsets = [2, 0], sizes = [1, 32], strides = [1, 1]} : vector<8x32xf32> to vector<1x32xf32>
    %4 = vector.extract_strided_slice %0 {offsets = [3, 0], sizes = [1, 32], strides = [1, 1]} : vector<8x32xf32> to vector<1x32xf32>
    %5 = vector.extract_strided_slice %0 {offsets = [4, 0], sizes = [1, 32], strides = [1, 1]} : vector<8x32xf32> to vector<1x32xf32>
    %6 = vector.extract_strided_slice %0 {offsets = [5, 0], sizes = [1, 32], strides = [1, 1]} : vector<8x32xf32> to vector<1x32xf32>
    %7 = vector.extract_strided_slice %0 {offsets = [6, 0], sizes = [1, 32], strides = [1, 1]} : vector<8x32xf32> to vector<1x32xf32>
    %8 = vector.extract_strided_slice %0 {offsets = [7, 0], sizes = [1, 32], strides = [1, 1]} : vector<8x32xf32> to vector<1x32xf32>
    %c0_1 = arith.constant 0 : index
    %c0_2 = arith.constant 0 : index
    %9 = vector.load %arg1[%c0_1, %c0_2] : memref<128x8xf32, #tpu.memory_space<vmem>>, vector<128x8xf32>
    %c0_3 = arith.constant 0 : index
    %c0_4 = arith.constant 0 : index
    %10 = vector.load %arg6[%c0_3, %c0_4] : memref<8x32xf32, #tpu.memory_space<vmem>>, vector<8x32xf32>
    %cst = arith.constant dense<0.000000e+00> : vector<128x32xf32>
    %11 = tpu.matmul %9, %10, %cst {dimension_numbers = #tpu.dot_dimension_numbers<[1], [0], [0], [1], [0, 0, 1, 1], [], []>} : vector<128x8xf32>, vector<8x32xf32>, vector<128x32xf32> -> vector<128x32xf32>
    %12 = vector.shape_cast %11 : vector<128x32xf32> to vector<16x8x32xf32>
    %c0_5 = arith.constant 0 : index
    %c0_6 = arith.constant 0 : index
    %13 = vector.load %arg5[%c0_5, %c0_6] : memref<8x32xf32, #tpu.memory_space<vmem>>, vector<8x32xf32>
    %14 = vector.shape_cast %13 : vector<8x32xf32> to vector<1x8x32xf32>
    %15 = vector.broadcast %14 : vector<1x8x32xf32> to vector<16x8x32xf32>
    %16 = arith.addf %12, %15 : vector<16x8x32xf32>
    %17 = vector.shape_cast %16 : vector<16x8x32xf32> to vector<128x32xf32>
    %18 = arith.truncf %17 : vector<128x32xf32> to vector<128x32xbf16>
    %c0_7 = arith.constant 0 : index
    %c0_8 = arith.constant 0 : index
    %19 = vector.load %arg7[%c0_7, %c0_8] : memref<32x32xbf16, #tpu.memory_space<vmem>>, vector<32x32xbf16>
    %cst_9 = arith.constant dense<0.000000e+00> : vector<128x32xf32>
    %20 = tpu.matmul %18, %19, %cst_9 {dimension_numbers = #tpu.dot_dimension_numbers<[1], [0], [0], [1], [0, 0, 1, 1], [], []>} : vector<128x32xbf16>, vector<32x32xbf16>, vector<128x32xf32> -> vector<128x32xf32>
    %21 = vector.broadcast %1 : vector<1x32xf32> to vector<128x32xf32>
    %22 = arith.addf %20, %21 : vector<128x32xf32>
    %c0_10 = arith.constant 0 : index
    %c0_11 = arith.constant 0 : index
    %23 = vector.load %arg8[%c0_10, %c0_11] : memref<32x32xbf16, #tpu.memory_space<vmem>>, vector<32x32xbf16>
    %cst_12 = arith.constant dense<0.000000e+00> : vector<128x32xf32>
    %24 = tpu.matmul %18, %23, %cst_12 {dimension_numbers = #tpu.dot_dimension_numbers<[1], [0], [0], [1], [0, 0, 1, 1], [], []>} : vector<128x32xbf16>, vector<32x32xbf16>, vector<128x32xf32> -> vector<128x32xf32>
    %c0_13 = arith.constant 0 : index
    %c0_14 = arith.constant 0 : index
    %25 = vector.load %arg9[%c0_13, %c0_14] : memref<32x32xbf16, #tpu.memory_space<vmem>>, vector<32x32xbf16>
    %cst_15 = arith.constant dense<0.000000e+00> : vector<128x32xf32>
    %26 = tpu.matmul %18, %25, %cst_15 {dimension_numbers = #tpu.dot_dimension_numbers<[1], [0], [0], [1], [0, 0, 1, 1], [], []>} : vector<128x32xbf16>, vector<32x32xbf16>, vector<128x32xf32> -> vector<128x32xf32>
    %27 = vector.broadcast %2 : vector<1x32xf32> to vector<128x32xf32>
    %28 = arith.addf %26, %27 : vector<128x32xf32>
    %29 = vector.shape_cast %22 : vector<128x32xf32> to vector<1x128x32xf32>
    %30 = vector.shape_cast %24 : vector<128x32xf32> to vector<1x128x32xf32>
    %31 = arith.truncf %30 : vector<1x128x32xf32> to vector<1x128x32xbf16>
    %32 = vector.shape_cast %28 : vector<128x32xf32> to vector<1x128x32xf32>
    %33 = arith.truncf %32 : vector<1x128x32xf32> to vector<1x128x32xbf16>
    %c0_16 = arith.constant 0 : index
    %c0_17 = arith.constant 0 : index
    %34 = vector.load %arg4[%c0_16, %c0_17] : memref<128x128xf32, #tpu.memory_space<vmem>>, vector<128x128xf32>
    %35 = vector.shape_cast %34 : vector<128x128xf32> to vector<1x128x128xf32>
    %c0_18 = arith.constant 0 : index
    %c0_19 = arith.constant 0 : index
    %36 = vector.load %arg3[%c0_18, %c0_19] : memref<1x128xf32, #tpu.memory_space<vmem>>, vector<1x128xf32>
    %37 = vector.shape_cast %36 : vector<1x128xf32> to vector<1x1x128xf32>
    %38 = vector.broadcast %37 : vector<1x1x128xf32> to vector<1x128x128xf32>
    %39 = arith.addf %35, %38 : vector<1x128x128xf32>
    %cst_20 = arith.constant 0.000000e+00 : f32
    %40 = vector.broadcast %cst_20 : f32 to vector<1x128x32xf32>
    %c0_21 = arith.constant 0 : index
    %c0_22 = arith.constant 0 : index
    %41 = vector.load %arg15[%c0_21, %c0_22] : memref<4x32xf32, #tpu.memory_space<vmem>>, vector<1x32xf32>
    %42 = vector.shape_cast %41 : vector<1x32xf32> to vector<1x1x32xf32>
    %43 = vector.broadcast %42 : vector<1x1x32xf32> to vector<1x128x32xf32>
    %44 = arith.mulf %29, %43 : vector<1x128x32xf32>
    %45 = arith.truncf %44 : vector<1x128x32xf32> to vector<1x128x32xbf16>
    "tpu.trace_start"() <{level = 10 : i32, message = "gqd,gkd->gqk"}> : () -> ()
    %cst_23 = arith.constant dense<0.000000e+00> : vector<1x128x128xf32>
    %46 = tpu.matmul %45, %31, %cst_23 {dimension_numbers = #tpu.dot_dimension_numbers<[2], [2], [1], [1], [0, 0, 0, 1, 1, 1], [0], [0]>} : vector<1x128x32xbf16>, vector<1x128x32xbf16>, vector<1x128x128xf32> -> vector<1x128x128xf32>
    "tpu.trace_stop"() : () -> ()
    %47 = arith.addf %46, %39 : vector<1x128x128xf32>
    %cst_24 = arith.constant dense<0xFF800000> : vector<1x128xf32>
    %48 = vector.multi_reduction <maximumf>, %47, %cst_24 [2] : vector<1x128x128xf32> to vector<1x128xf32>
    %49 = vector.shape_cast %48 : vector<1x128xf32> to vector<1x128x1xf32>
    %50 = vector.broadcast %49 : vector<1x128x1xf32> to vector<1x128x128xf32>
    %51 = arith.subf %47, %50 : vector<1x128x128xf32>
    %52 = math.exp %51 : vector<1x128x128xf32>
    %cst_25 = arith.constant dense<0.000000e+00> : vector<1x128xf32>
    %53 = vector.multi_reduction <add>, %52, %cst_25 [2] : vector<1x128x128xf32> to vector<1x128xf32>
    %54 = vector.shape_cast %53 : vector<1x128xf32> to vector<1x128x1xf32>
    %55 = tpu.reciprocal %54 {approx = true} : vector<1x128x1xf32> -> vector<1x128x1xf32>
    %56 = arith.truncf %52 : vector<1x128x128xf32> to vector<1x128x128xbf16>
    "tpu.trace_start"() <{level = 10 : i32, message = "gqk,gkd->gqd"}> : () -> ()
    %cst_26 = arith.constant dense<0.000000e+00> : vector<1x128x32xf32>
    %57 = tpu.matmul %56, %33, %cst_26 {dimension_numbers = #tpu.dot_dimension_numbers<[2], [1], [1], [2], [0, 0, 0, 1, 1, 2], [0], [0]>} : vector<1x128x128xbf16>, vector<1x128x32xbf16>, vector<1x128x32xf32> -> vector<1x128x32xf32>
    "tpu.trace_stop"() : () -> ()
    %58 = vector.shape_cast %41 : vector<1x32xf32> to vector<1x1x32xf32>
    %59 = vector.broadcast %55 : vector<1x128x1xf32> to vector<1x128x32xf32>
    %60 = vector.broadcast %58 : vector<1x1x32xf32> to vector<1x128x32xf32>
    %61 = arith.mulf %59, %60 : vector<1x128x32xf32>
    %62 = arith.mulf %57, %61 : vector<1x128x32xf32>
    %63 = arith.addf %40, %62 : vector<1x128x32xf32>
    %c1 = arith.constant 1 : index
    %c0_27 = arith.constant 0 : index
    %64 = vector.load %arg15[%c1, %c0_27] : memref<4x32xf32, #tpu.memory_space<vmem>>, vector<1x32xf32>
    %65 = vector.shape_cast %64 : vector<1x32xf32> to vector<1x1x32xf32>
    %66 = vector.broadcast %65 : vector<1x1x32xf32> to vector<1x128x32xf32>
    %67 = arith.mulf %29, %66 : vector<1x128x32xf32>
    %68 = arith.truncf %67 : vector<1x128x32xf32> to vector<1x128x32xbf16>
    "tpu.trace_start"() <{level = 10 : i32, message = "gqd,gkd->gqk"}> : () -> ()
    %cst_28 = arith.constant dense<0.000000e+00> : vector<1x128x128xf32>
    %69 = tpu.matmul %68, %31, %cst_28 {dimension_numbers = #tpu.dot_dimension_numbers<[2], [2], [1], [1], [0, 0, 0, 1, 1, 1], [0], [0]>} : vector<1x128x32xbf16>, vector<1x128x32xbf16>, vector<1x128x128xf32> -> vector<1x128x128xf32>
    "tpu.trace_stop"() : () -> ()
    %70 = arith.addf %69, %39 : vector<1x128x128xf32>
    %cst_29 = arith.constant dense<0xFF800000> : vector<1x128xf32>
    %71 = vector.multi_reduction <maximumf>, %70, %cst_29 [2] : vector<1x128x128xf32> to vector<1x128xf32>
    %72 = vector.shape_cast %71 : vector<1x128xf32> to vector<1x128x1xf32>
    %73 = vector.broadcast %72 : vector<1x128x1xf32> to vector<1x128x128xf32>
    %74 = arith.subf %70, %73 : vector<1x128x128xf32>
    %75 = math.exp %74 : vector<1x128x128xf32>
    %cst_30 = arith.constant dense<0.000000e+00> : vector<1x128xf32>
    %76 = vector.multi_reduction <add>, %75, %cst_30 [2] : vector<1x128x128xf32> to vector<1x128xf32>
    %77 = vector.shape_cast %76 : vector<1x128xf32> to vector<1x128x1xf32>
    %78 = tpu.reciprocal %77 {approx = true} : vector<1x128x1xf32> -> vector<1x128x1xf32>
    %79 = arith.truncf %75 : vector<1x128x128xf32> to vector<1x128x128xbf16>
    "tpu.trace_start"() <{level = 10 : i32, message = "gqk,gkd->gqd"}> : () -> ()
    %cst_31 = arith.constant dense<0.000000e+00> : vector<1x128x32xf32>
    %80 = tpu.matmul %79, %33, %cst_31 {dimension_numbers = #tpu.dot_dimension_numbers<[2], [1], [1], [2], [0, 0, 0, 1, 1, 2], [0], [0]>} : vector<1x128x128xbf16>, vector<1x128x32xbf16>, vector<1x128x32xf32> -> vector<1x128x32xf32>
    "tpu.trace_stop"() : () -> ()
    %81 = vector.shape_cast %64 : vector<1x32xf32> to vector<1x1x32xf32>
    %82 = vector.broadcast %78 : vector<1x128x1xf32> to vector<1x128x32xf32>
    %83 = vector.broadcast %81 : vector<1x1x32xf32> to vector<1x128x32xf32>
    %84 = arith.mulf %82, %83 : vector<1x128x32xf32>
    %85 = arith.mulf %80, %84 : vector<1x128x32xf32>
    %86 = arith.addf %63, %85 : vector<1x128x32xf32>
    %c2 = arith.constant 2 : index
    %c0_32 = arith.constant 0 : index
    %87 = vector.load %arg15[%c2, %c0_32] : memref<4x32xf32, #tpu.memory_space<vmem>>, vector<1x32xf32>
    %88 = vector.shape_cast %87 : vector<1x32xf32> to vector<1x1x32xf32>
    %89 = vector.broadcast %88 : vector<1x1x32xf32> to vector<1x128x32xf32>
    %90 = arith.mulf %29, %89 : vector<1x128x32xf32>
    %91 = arith.truncf %90 : vector<1x128x32xf32> to vector<1x128x32xbf16>
    "tpu.trace_start"() <{level = 10 : i32, message = "gqd,gkd->gqk"}> : () -> ()
    %cst_33 = arith.constant dense<0.000000e+00> : vector<1x128x128xf32>
    %92 = tpu.matmul %91, %31, %cst_33 {dimension_numbers = #tpu.dot_dimension_numbers<[2], [2], [1], [1], [0, 0, 0, 1, 1, 1], [0], [0]>} : vector<1x128x32xbf16>, vector<1x128x32xbf16>, vector<1x128x128xf32> -> vector<1x128x128xf32>
    "tpu.trace_stop"() : () -> ()
    %93 = arith.addf %92, %39 : vector<1x128x128xf32>
    %cst_34 = arith.constant dense<0xFF800000> : vector<1x128xf32>
    %94 = vector.multi_reduction <maximumf>, %93, %cst_34 [2] : vector<1x128x128xf32> to vector<1x128xf32>
    %95 = vector.shape_cast %94 : vector<1x128xf32> to vector<1x128x1xf32>
    %96 = vector.broadcast %95 : vector<1x128x1xf32> to vector<1x128x128xf32>
    %97 = arith.subf %93, %96 : vector<1x128x128xf32>
    %98 = math.exp %97 : vector<1x128x128xf32>
    %cst_35 = arith.constant dense<0.000000e+00> : vector<1x128xf32>
    %99 = vector.multi_reduction <add>, %98, %cst_35 [2] : vector<1x128x128xf32> to vector<1x128xf32>
    %100 = vector.shape_cast %99 : vector<1x128xf32> to vector<1x128x1xf32>
    %101 = tpu.reciprocal %100 {approx = true} : vector<1x128x1xf32> -> vector<1x128x1xf32>
    %102 = arith.truncf %98 : vector<1x128x128xf32> to vector<1x128x128xbf16>
    "tpu.trace_start"() <{level = 10 : i32, message = "gqk,gkd->gqd"}> : () -> ()
    %cst_36 = arith.constant dense<0.000000e+00> : vector<1x128x32xf32>
    %103 = tpu.matmul %102, %33, %cst_36 {dimension_numbers = #tpu.dot_dimension_numbers<[2], [1], [1], [2], [0, 0, 0, 1, 1, 2], [0], [0]>} : vector<1x128x128xbf16>, vector<1x128x32xbf16>, vector<1x128x32xf32> -> vector<1x128x32xf32>
    "tpu.trace_stop"() : () -> ()
    %104 = vector.shape_cast %87 : vector<1x32xf32> to vector<1x1x32xf32>
    %105 = vector.broadcast %101 : vector<1x128x1xf32> to vector<1x128x32xf32>
    %106 = vector.broadcast %104 : vector<1x1x32xf32> to vector<1x128x32xf32>
    %107 = arith.mulf %105, %106 : vector<1x128x32xf32>
    %108 = arith.mulf %103, %107 : vector<1x128x32xf32>
    %109 = arith.addf %86, %108 : vector<1x128x32xf32>
    %c3 = arith.constant 3 : index
    %c0_37 = arith.constant 0 : index
    %110 = vector.load %arg15[%c3, %c0_37] : memref<4x32xf32, #tpu.memory_space<vmem>>, vector<1x32xf32>
    %111 = vector.shape_cast %110 : vector<1x32xf32> to vector<1x1x32xf32>
    %112 = vector.broadcast %111 : vector<1x1x32xf32> to vector<1x128x32xf32>
    %113 = arith.mulf %29, %112 : vector<1x128x32xf32>
    %114 = arith.truncf %113 : vector<1x128x32xf32> to vector<1x128x32xbf16>
    "tpu.trace_start"() <{level = 10 : i32, message = "gqd,gkd->gqk"}> : () -> ()
    %cst_38 = arith.constant dense<0.000000e+00> : vector<1x128x128xf32>
    %115 = tpu.matmul %114, %31, %cst_38 {dimension_numbers = #tpu.dot_dimension_numbers<[2], [2], [1], [1], [0, 0, 0, 1, 1, 1], [0], [0]>} : vector<1x128x32xbf16>, vector<1x128x32xbf16>, vector<1x128x128xf32> -> vector<1x128x128xf32>
    "tpu.trace_stop"() : () -> ()
    %116 = arith.addf %115, %39 : vector<1x128x128xf32>
    %cst_39 = arith.constant dense<0xFF800000> : vector<1x128xf32>
    %117 = vector.multi_reduction <maximumf>, %116, %cst_39 [2] : vector<1x128x128xf32> to vector<1x128xf32>
    %118 = vector.shape_cast %117 : vector<1x128xf32> to vector<1x128x1xf32>
    %119 = vector.broadcast %118 : vector<1x128x1xf32> to vector<1x128x128xf32>
    %120 = arith.subf %116, %119 : vector<1x128x128xf32>
    %121 = math.exp %120 : vector<1x128x128xf32>
    %cst_40 = arith.constant dense<0.000000e+00> : vector<1x128xf32>
    %122 = vector.multi_reduction <add>, %121, %cst_40 [2] : vector<1x128x128xf32> to vector<1x128xf32>
    %123 = vector.shape_cast %122 : vector<1x128xf32> to vector<1x128x1xf32>
    %124 = tpu.reciprocal %123 {approx = true} : vector<1x128x1xf32> -> vector<1x128x1xf32>
    %125 = arith.truncf %121 : vector<1x128x128xf32> to vector<1x128x128xbf16>
    "tpu.trace_start"() <{level = 10 : i32, message = "gqk,gkd->gqd"}> : () -> ()
    %cst_41 = arith.constant dense<0.000000e+00> : vector<1x128x32xf32>
    %126 = tpu.matmul %125, %33, %cst_41 {dimension_numbers = #tpu.dot_dimension_numbers<[2], [1], [1], [2], [0, 0, 0, 1, 1, 2], [0], [0]>} : vector<1x128x128xbf16>, vector<1x128x32xbf16>, vector<1x128x32xf32> -> vector<1x128x32xf32>
    "tpu.trace_stop"() : () -> ()
    %127 = vector.shape_cast %110 : vector<1x32xf32> to vector<1x1x32xf32>
    %128 = vector.broadcast %124 : vector<1x128x1xf32> to vector<1x128x32xf32>
    %129 = vector.broadcast %127 : vector<1x1x32xf32> to vector<1x128x32xf32>
    %130 = arith.mulf %128, %129 : vector<1x128x32xf32>
    %131 = arith.mulf %126, %130 : vector<1x128x32xf32>
    %132 = arith.addf %109, %131 : vector<1x128x32xf32>
    %133 = vector.shape_cast %132 : vector<1x128x32xf32> to vector<128x32xf32>
    %134 = arith.truncf %133 : vector<128x32xf32> to vector<128x32xbf16>
    %c0_42 = arith.constant 0 : index
    %c0_43 = arith.constant 0 : index
    %135 = vector.load %arg10[%c0_42, %c0_43] : memref<32x32xbf16, #tpu.memory_space<vmem>>, vector<32x32xbf16>
    %cst_44 = arith.constant dense<0.000000e+00> : vector<128x32xf32>
    %136 = tpu.matmul %134, %135, %cst_44 {dimension_numbers = #tpu.dot_dimension_numbers<[1], [0], [0], [1], [0, 0, 1, 1], [], []>} : vector<128x32xbf16>, vector<32x32xbf16>, vector<128x32xf32> -> vector<128x32xf32>
    %137 = vector.broadcast %3 : vector<1x32xf32> to vector<128x32xf32>
    %138 = arith.addf %136, %137 : vector<128x32xf32>
    %139 = arith.addf %17, %138 : vector<128x32xf32>
    %cst_45 = arith.constant dense<0.000000e+00> : vector<128xf32>
    %140 = vector.multi_reduction <add>, %139, %cst_45 [1] : vector<128x32xf32> to vector<128xf32>
    %141 = vector.shape_cast %140 : vector<128xf32> to vector<128x1xf32>
    %cst_46 = arith.constant 3.200000e+01 : f32
    %142 = vector.broadcast %cst_46 : f32 to vector<128x1xf32>
    %143 = arith.divf %141, %142 : vector<128x1xf32>
    %144 = arith.mulf %139, %139 : vector<128x32xf32>
    %cst_47 = arith.constant dense<0.000000e+00> : vector<128xf32>
    %145 = vector.multi_reduction <add>, %144, %cst_47 [1] : vector<128x32xf32> to vector<128xf32>
    %146 = vector.shape_cast %145 : vector<128xf32> to vector<128x1xf32>
    %cst_48 = arith.constant 3.200000e+01 : f32
    %147 = vector.broadcast %cst_48 : f32 to vector<128x1xf32>
    %148 = arith.divf %146, %147 : vector<128x1xf32>
    %149 = vector.broadcast %143 : vector<128x1xf32> to vector<128x32xf32>
    %150 = arith.subf %139, %149 : vector<128x32xf32>
    %151 = arith.mulf %143, %143 : vector<128x1xf32>
    %152 = arith.subf %148, %151 : vector<128x1xf32>
    %cst_49 = arith.constant 9.99999974E-6 : f32
    %153 = vector.broadcast %cst_49 : f32 to vector<128x1xf32>
    %154 = arith.addf %152, %153 : vector<128x1xf32>
    %155 = math.rsqrt %154 : vector<128x1xf32>
    %156 = vector.broadcast %155 : vector<128x1xf32> to vector<128x32xf32>
    %157 = arith.mulf %150, %156 : vector<128x32xf32>
    %158 = vector.broadcast %4 : vector<1x32xf32> to vector<128x32xf32>
    %159 = arith.mulf %157, %158 : vector<128x32xf32>
    %160 = vector.broadcast %5 : vector<1x32xf32> to vector<128x32xf32>
    %161 = arith.addf %159, %160 : vector<128x32xf32>
    %162 = arith.truncf %161 : vector<128x32xf32> to vector<128x32xbf16>
    %c0_50 = arith.constant 0 : index
    %c0_51 = arith.constant 0 : index
    %163 = vector.load %arg11[%c0_50, %c0_51] : memref<32x64xbf16, #tpu.memory_space<vmem>>, vector<32x64xbf16>
    %cst_52 = arith.constant dense<0.000000e+00> : vector<128x64xf32>
    %164 = tpu.matmul %162, %163, %cst_52 {dimension_numbers = #tpu.dot_dimension_numbers<[1], [0], [0], [1], [0, 0, 1, 1], [], []>} : vector<128x32xbf16>, vector<32x64xbf16>, vector<128x64xf32> -> vector<128x64xf32>
    %c0_53 = arith.constant 0 : index
    %c0_54 = arith.constant 0 : index
    %165 = vector.load %arg12[%c0_53, %c0_54] : memref<1x64xf32, #tpu.memory_space<vmem>>, vector<1x64xf32>
    %166 = vector.broadcast %165 : vector<1x64xf32> to vector<128x64xf32>
    %167 = arith.addf %164, %166 : vector<128x64xf32>
    %cst_55 = arith.constant 0.000000e+00 : f32
    %168 = vector.broadcast %cst_55 : f32 to vector<128x64xf32>
    %169 = arith.maximumf %167, %168 : vector<128x64xf32>
    %170 = arith.truncf %169 : vector<128x64xf32> to vector<128x64xbf16>
    %c0_56 = arith.constant 0 : index
    %c0_57 = arith.constant 0 : index
    %171 = vector.load %arg13[%c0_56, %c0_57] : memref<64x32xbf16, #tpu.memory_space<vmem>>, vector<64x32xbf16>
    %cst_58 = arith.constant dense<0.000000e+00> : vector<128x32xf32>
    %172 = tpu.matmul %170, %171, %cst_58 {dimension_numbers = #tpu.dot_dimension_numbers<[1], [0], [0], [1], [0, 0, 1, 1], [], []>} : vector<128x64xbf16>, vector<64x32xbf16>, vector<128x32xf32> -> vector<128x32xf32>
    %173 = vector.broadcast %6 : vector<1x32xf32> to vector<128x32xf32>
    %174 = arith.addf %172, %173 : vector<128x32xf32>
    %175 = arith.addf %161, %174 : vector<128x32xf32>
    %cst_59 = arith.constant dense<0.000000e+00> : vector<128xf32>
    %176 = vector.multi_reduction <add>, %175, %cst_59 [1] : vector<128x32xf32> to vector<128xf32>
    %177 = vector.shape_cast %176 : vector<128xf32> to vector<128x1xf32>
    %cst_60 = arith.constant 3.200000e+01 : f32
    %178 = vector.broadcast %cst_60 : f32 to vector<128x1xf32>
    %179 = arith.divf %177, %178 : vector<128x1xf32>
    %180 = arith.mulf %175, %175 : vector<128x32xf32>
    %cst_61 = arith.constant dense<0.000000e+00> : vector<128xf32>
    %181 = vector.multi_reduction <add>, %180, %cst_61 [1] : vector<128x32xf32> to vector<128xf32>
    %182 = vector.shape_cast %181 : vector<128xf32> to vector<128x1xf32>
    %cst_62 = arith.constant 3.200000e+01 : f32
    %183 = vector.broadcast %cst_62 : f32 to vector<128x1xf32>
    %184 = arith.divf %182, %183 : vector<128x1xf32>
    %185 = vector.broadcast %179 : vector<128x1xf32> to vector<128x32xf32>
    %186 = arith.subf %175, %185 : vector<128x32xf32>
    %187 = arith.mulf %179, %179 : vector<128x1xf32>
    %188 = arith.subf %184, %187 : vector<128x1xf32>
    %cst_63 = arith.constant 9.99999974E-6 : f32
    %189 = vector.broadcast %cst_63 : f32 to vector<128x1xf32>
    %190 = arith.addf %188, %189 : vector<128x1xf32>
    %191 = math.rsqrt %190 : vector<128x1xf32>
    %192 = vector.broadcast %191 : vector<128x1xf32> to vector<128x32xf32>
    %193 = arith.mulf %186, %192 : vector<128x32xf32>
    %194 = vector.broadcast %7 : vector<1x32xf32> to vector<128x32xf32>
    %195 = arith.mulf %193, %194 : vector<128x32xf32>
    %196 = vector.broadcast %8 : vector<1x32xf32> to vector<128x32xf32>
    %197 = arith.addf %195, %196 : vector<128x32xf32>
    %c0_64 = arith.constant 0 : index
    %c0_65 = arith.constant 0 : index
    %198 = vector.load %arg2[%c0_64, %c0_65] : memref<16x8xf32, #tpu.memory_space<vmem>>, vector<16x8xf32>
    %199 = vector.shape_cast %197 : vector<128x32xf32> to vector<16x8x32xf32>
    %200 = vector.shape_cast %198 : vector<16x8xf32> to vector<16x8x1xf32>
    %201 = vector.broadcast %200 : vector<16x8x1xf32> to vector<16x8x32xf32>
    %202 = arith.mulf %199, %201 : vector<16x8x32xf32>
    %cst_66 = arith.constant dense<0.000000e+00> : vector<16x32xf32>
    %203 = vector.multi_reduction <add>, %202, %cst_66 [1] : vector<16x8x32xf32> to vector<16x32xf32>
    %cst_67 = arith.constant dense<0.000000e+00> : vector<16xf32>
    %204 = vector.multi_reduction <add>, %198, %cst_67 [1] : vector<16x8xf32> to vector<16xf32>
    %205 = vector.shape_cast %204 : vector<16xf32> to vector<16x1xf32>
    %206 = vector.broadcast %205 : vector<16x1xf32> to vector<16x32xf32>
    %207 = arith.divf %203, %206 : vector<16x32xf32>
    %cst_68 = arith.constant 0.000000e+00 : f32
    %208 = vector.broadcast %cst_68 : f32 to vector<16x32xf32>
    %209 = arith.maximumf %207, %208 : vector<16x32xf32>
    %c0_69 = arith.constant 0 : index
    %c0_70 = arith.constant 0 : index
    %210 = vector.load %arg16[%c0_69, %c0_70] : memref<16x32xf32, #tpu.memory_space<vmem>>, vector<16x32xf32>
    tpu.vector_store %arg16[%c0_69, %c0_70], %209 {strides = array<i32>} : memref<16x32xf32, #tpu.memory_space<vmem>>, vector<16x32xf32>,
    return
  }
  func.func @transform_0(%arg0: i32) -> (i32, i32) {
    %c0_i32 = arith.constant 0 : i32
    %c0_i32_0 = arith.constant 0 : i32
    return %arg0, %c0_i32 : i32, i32
  }
  func.func @transform_1(%arg0: i32) -> (i32, i32) {
    %c0_i32 = arith.constant 0 : i32
    %c0_i32_0 = arith.constant 0 : i32
    return %arg0, %c0_i32 : i32, i32
  }
  func.func @transform_2(%arg0: i32) -> (i32, i32) {
    %c0_i32 = arith.constant 0 : i32
    %c0_i32_0 = arith.constant 0 : i32
    return %arg0, %c0_i32 : i32, i32
  }
  func.func @transform_3(%arg0: i32) -> (i32, i32) {
    %c0_i32 = arith.constant 0 : i32
    %c0_i32_0 = arith.constant 0 : i32
    %c0_i32_1 = arith.constant 0 : i32
    return %c0_i32, %c0_i32_0 : i32, i32
  }
  func.func @transform_4(%arg0: i32) -> (i32, i32) {
    %c0_i32 = arith.constant 0 : i32
    %c0_i32_0 = arith.constant 0 : i32
    %c0_i32_1 = arith.constant 0 : i32
    return %c0_i32, %c0_i32_0 : i32, i32
  }
  func.func @transform_5(%arg0: i32) -> (i32, i32) {
    %c0_i32 = arith.constant 0 : i32
    %c0_i32_0 = arith.constant 0 : i32
    %c0_i32_1 = arith.constant 0 : i32
    return %c0_i32, %c0_i32_0 : i32, i32
  }
  func.func @transform_6(%arg0: i32) -> (i32, i32) {
    %c0_i32 = arith.constant 0 : i32
    %c0_i32_0 = arith.constant 0 : i32
    %c0_i32_1 = arith.constant 0 : i32
    return %c0_i32, %c0_i32_0 : i32, i32
  }
  func.func @transform_7(%arg0: i32) -> (i32, i32) {
    %c0_i32 = arith.constant 0 : i32
    %c0_i32_0 = arith.constant 0 : i32
    %c0_i32_1 = arith.constant 0 : i32
    return %c0_i32, %c0_i32_0 : i32, i32
  }
  func.func @transform_8(%arg0: i32) -> (i32, i32) {
    %c0_i32 = arith.constant 0 : i32
    %c0_i32_0 = arith.constant 0 : i32
    %c0_i32_1 = arith.constant 0 : i32
    return %c0_i32, %c0_i32_0 : i32, i32
  }
  func.func @transform_9(%arg0: i32) -> (i32, i32) {
    %c0_i32 = arith.constant 0 : i32
    %c0_i32_0 = arith.constant 0 : i32
    %c0_i32_1 = arith.constant 0 : i32
    return %c0_i32, %c0_i32_0 : i32, i32
  }
  func.func @transform_10(%arg0: i32) -> (i32, i32) {
    %c0_i32 = arith.constant 0 : i32
    %c0_i32_0 = arith.constant 0 : i32
    %c0_i32_1 = arith.constant 0 : i32
    return %c0_i32, %c0_i32_0 : i32, i32
  }
  func.func @transform_11(%arg0: i32) -> (i32, i32) {
    %c0_i32 = arith.constant 0 : i32
    %c0_i32_0 = arith.constant 0 : i32
    %c0_i32_1 = arith.constant 0 : i32
    return %c0_i32, %c0_i32_0 : i32, i32
  }
  func.func @transform_12(%arg0: i32) -> (i32, i32) {
    %c0_i32 = arith.constant 0 : i32
    %c0_i32_0 = arith.constant 0 : i32
    %c0_i32_1 = arith.constant 0 : i32
    return %c0_i32, %c0_i32_0 : i32, i32
  }
  func.func @transform_13(%arg0: i32) -> (i32, i32) {
    %c0_i32 = arith.constant 0 : i32
    %c0_i32_0 = arith.constant 0 : i32
    %c0_i32_1 = arith.constant 0 : i32
    return %c0_i32, %c0_i32_0 : i32, i32
  }
  func.func @transform_14(%arg0: i32) -> (i32, i32) {
    %c0_i32 = arith.constant 0 : i32
    %c0_i32_0 = arith.constant 0 : i32
    %c0_i32_1 = arith.constant 0 : i32
    return %c0_i32, %c0_i32_0 : i32, i32
  }
  func.func @transform_15(%arg0: i32) -> (i32, i32) {
    %c0_i32 = arith.constant 0 : i32
    %c0_i32_0 = arith.constant 0 : i32
    return %arg0, %c0_i32 : i32, i32
  }
}

</mosaic_0001>

<llo_original>
// kernel: tpu_custom_call.1
$region0: #{tpu_custom_call.1}
  #allocation0 [shape = 'u32[]', space=smem, size = 0x4, offset = 0x4, fixed_abs, tag = 'smem constant byte address 0x4 - core index']
  #allocation1 [shape = 'u32[72,128]{1,0:T(1,128)}', space=vmem, size = 0x9000, scoped, tag = 'internal scratch']
  %s0 = inlined_call_operand.vmem [shape: f32[128,8], index: 0, kind: input, shape index: {}]
  %s1 = inlined_call_operand.vmem [shape: f32[16,8], index: 1, kind: input, shape index: {}]
  %s2 = inlined_call_operand.hbm [shape: f32[1,128], index: 2, kind: input, shape index: {}]
  %s3 = inlined_call_operand.vmem [shape: f32[128,128], index: 3, kind: input, shape index: {}]
  %s4 = inlined_call_operand.hbm [shape: f32[8,32], index: 4, kind: input, shape index: {}]
  %s5 = inlined_call_operand.hbm [shape: f32[8,32], index: 5, kind: input, shape index: {}]
  %s6 = inlined_call_operand.vmem [shape: bf16[32,32], index: 6, kind: input, shape index: {}]
  %s7 = inlined_call_operand.vmem [shape: bf16[32,32], index: 7, kind: input, shape index: {}]
  %s8 = inlined_call_operand.vmem [shape: bf16[32,32], index: 8, kind: input, shape index: {}]
  %s9 = inlined_call_operand.vmem [shape: bf16[32,32], index: 9, kind: input, shape index: {}]
  %s10 = inlined_call_operand.hbm [shape: bf16[32,64], index: 10, kind: input, shape index: {}]
  %s11 = inlined_call_operand.hbm [shape: f32[1,64], index: 11, kind: input, shape index: {}]
  %s12 = inlined_call_operand.vmem [shape: bf16[64,32], index: 12, kind: input, shape index: {}]
  %s13 = inlined_call_operand.hbm [shape: f32[8,32], index: 13, kind: input, shape index: {}]
  %s14 = inlined_call_operand.hbm [shape: f32[4,32], index: 14, kind: input, shape index: {}]
  %s15 = inlined_call_operand.hbm [shape: f32[16,32], index: 15, kind: output, shape index: {}]
  %s16 = sld [smem:[#allocation0]]
  $region98: #{tpu_custom_call.1} parent=0
    _
  %s18 = ssub.s32 1, %s16
  %s19 = scalar_select 0, %s18, %s16
  $region1: #{tpu_custom_call.1} parent=0
    #allocation2 [shape = 'u8[512]{0}', space=vmem, size = 0x400, scoped, tag = 'input window, operand 2, single buffered']
    #allocation3 [shape = 's32[1]{0}', space=sflag, size = 0x4, scoped, tag = 'scoped memory for tpu_custom_call.1']
    #allocation4 [shape = 's32[1]{0}', space=sflag, size = 0x4, scoped, tag = 'scoped memory for tpu_custom_call.1']
    #allocation5 [shape = 'u8[4096]{0}', space=vmem, size = 0x1000, scoped, tag = 'input window, operand 4, single buffered']
    #allocation6 [shape = 's32[1]{0}', space=sflag, size = 0x4, scoped, tag = 'scoped memory for tpu_custom_call.1']
    #allocation7 [shape = 'u8[4096]{0}', space=vmem, size = 0x1000, scoped, tag = 'input window, operand 5, single buffered']
    #allocation8 [shape = 'u8[8192]{0}', space=vmem, size = 0x2000, scoped, tag = 'input window, operand 10, single buffered']
    #allocation9 [shape = 's32[1]{0}', space=sflag, size = 0x4, scoped, tag = 'scoped memory for tpu_custom_call.1']
    #allocation10 [shape = 'u8[512]{0}', space=vmem, size = 0x400, scoped, tag = 'input window, operand 11, single buffered']
    #allocation11 [shape = 'u8[4096]{0}', space=vmem, size = 0x1000, scoped, tag = 'input window, operand 13, single buffered']
    #allocation12 [shape = 's32[1]{0}', space=sflag, size = 0x4, scoped, tag = 'scoped memory for tpu_custom_call.1']
    #allocation13 [shape = 'u8[2048]{0}', space=vmem, size = 0x800, scoped, tag = 'input window, operand 14, single buffered']
    #allocation14 [shape = 'u8[8192]{0}', space=vmem, size = 0x2000, scoped, tag = 'output window, operand 0, single buffered']
    %20 = vsyncpa [#allocation3], 0
    %21 = vsyncpa [#allocation6], 0
    %22 = vsyncpa [#allocation9], 0
    %23 = vsyncpa [#allocation12], 0
    %24 = vsyncpa [#allocation4], 0
    // Predicated region
    $region2: #{tpu_custom_call.1} parent=1 // pred_check
      _
    $region3: #{tpu_custom_call.1} parent=1 // pred_check_branch
      %26 = sbr.rel (0) target = $region5
    $region4: #{tpu_custom_call.1} parent=1 // pred_region
      _
    $region5: #{tpu_custom_call.1} parent=1 // pred_fallthru
      _
    // Predicated region
    $region6: #{tpu_custom_call.1} parent=1 // pred_check
      _
    $region7: #{tpu_custom_call.1} parent=1 // pred_check_branch
      %28 = sbr.rel (0) target = $region9
    $region8: #{tpu_custom_call.1} parent=1 // pred_region
      _
    $region9: #{tpu_custom_call.1} parent=1 // pred_fallthru
      _
    // Predicated region
    $region10: #{tpu_custom_call.1} parent=1 // pred_check
      _
    $region11: #{tpu_custom_call.1} parent=1 // pred_check_branch
      %30 = sbr.rel (0) target = $region13
    $region12: #{tpu_custom_call.1} parent=1 // pred_region
      %32 = vsyncadd [#allocation3], 0
      %s34 = sshll.u32 %s2, 4
      %s35 = int_to_ptr.hbm [resolvable:$true] %s34
      %s36 = sshll.u32 [#allocation2], 4
      %s37 = int_to_ptr.vmem [resolvable:$true] %s36
      %39 = dma.hbm_to_vmem [thread:$0]  %s35, 16, %s37, [#allocation3]
    $region13: #{tpu_custom_call.1} parent=1 // pred_fallthru
      _
    // Predicated region
    $region14: #{tpu_custom_call.1} parent=1 // pred_check
      _
    $region15: #{tpu_custom_call.1} parent=1 // pred_check_branch
      %41 = sbr.rel (0) target = $region17
    $region16: #{tpu_custom_call.1} parent=1 // pred_region
      _
    $region17: #{tpu_custom_call.1} parent=1 // pred_fallthru
      _
    // Predicated region
    $region18: #{tpu_custom_call.1} parent=1 // pred_check
      _
    $region19: #{tpu_custom_call.1} parent=1 // pred_check_branch
      %43 = sbr.rel (0) target = $region21
    $region20: #{tpu_custom_call.1} parent=1 // pred_region
      %45 = vsyncadd [#allocation6], 0
      %s47 = sshll.u32 %s4, 4
      %s48 = int_to_ptr.hbm [resolvable:$true] %s47
      %s49 = sshll.u32 [#allocation5], 4
      %s50 = int_to_ptr.vmem [resolvable:$true] %s49
      %52 = dma.hbm_to_vmem [thread:$0]  %s48, 128, %s50, [#allocation6]
    $region21: #{tpu_custom_call.1} parent=1 // pred_fallthru
      _
    // Predicated region
    $region22: #{tpu_custom_call.1} parent=1 // pred_check
      _
    $region23: #{tpu_custom_call.1} parent=1 // pred_check_branch
      %54 = sbr.rel (0) target = $region25
    $region24: #{tpu_custom_call.1} parent=1 // pred_region
      %56 = vsyncadd [#allocation6], 0
      %s58 = sshll.u32 %s5, 4
      %s59 = int_to_ptr.hbm [resolvable:$true] %s58
      %s60 = sshll.u32 [#allocation7], 4
      %s61 = int_to_ptr.vmem [resolvable:$true] %s60
      %63 = dma.hbm_to_vmem [thread:$0]  %s59, 128, %s61, [#allocation6]
    $region25: #{tpu_custom_call.1} parent=1 // pred_fallthru
      _
    // Predicated region
    $region26: #{tpu_custom_call.1} parent=1 // pred_check
      _
    $region27: #{tpu_custom_call.1} parent=1 // pred_check_branch
      %65 = sbr.rel (0) target = $region29
    $region28: #{tpu_custom_call.1} parent=1 // pred_region
      _
    $region29: #{tpu_custom_call.1} parent=1 // pred_fallthru
      _
    // Predicated region
    $region30: #{tpu_custom_call.1} parent=1 // pred_check
      _
    $region31: #{tpu_custom_call.1} parent=1 // pred_check_branch
      %67 = sbr.rel (0) target = $region33
    $region32: #{tpu_custom_call.1} parent=1 // pred_region
      _
    $region33: #{tpu_custom_call.1} parent=1 // pred_fallthru
      _
    // Predicated region
    $region34: #{tpu_custom_call.1} parent=1 // pred_check
      _
    $region35: #{tpu_custom_call.1} parent=1 // pred_check_branch
      %69 = sbr.rel (0) target = $region37
    $region36: #{tpu_custom_call.1} parent=1 // pred_region
      _
    $region37: #{tpu_custom_call.1} parent=1 // pred_fallthru
      _
    // Predicated region
    $region38: #{tpu_custom_call.1} parent=1 // pred_check
      _
    $region39: #{tpu_custom_call.1} parent=1 // pred_check_branch
      %71 = sbr.rel (0) target = $region41
    $region40: #{tpu_custom_call.1} parent=1 // pred_region
      _
    $region41: #{tpu_custom_call.1} parent=1 // pred_fallthru
      _
    // Predicated region
    $region42: #{tpu_custom_call.1} parent=1 // pred_check
      _
    $region43: #{tpu_custom_call.1} parent=1 // pred_check_branch
      %73 = sbr.rel (0) target = $region45
    $region44: #{tpu_custom_call.1} parent=1 // pred_region
      %75 = vsyncadd [#allocation9], 0
      %s76 = sshll.u32 %s10, 4
      %s77 = int_to_ptr.hbm [resolvable:$true] %s76
      %s78 = sshll.u32 [#allocation8], 4
      %s79 = int_to_ptr.vmem [resolvable:$true] %s78
      %84 = dma.hbm_to_vmem [thread:$0]  %s77, 256, %s79, [#allocation9], 64, 64, 4
    $region45: #{tpu_custom_call.1} parent=1 // pred_fallthru
      _
    // Predicated region
    $region46: #{tpu_custom_call.1} parent=1 // pred_check
      _
    $region47: #{tpu_custom_call.1} parent=1 // pred_check_branch
      %86 = sbr.rel (0) target = $region49
    $region48: #{tpu_custom_call.1} parent=1 // pred_region
      %88 = vsyncadd [#allocation9], 0
      %s90 = sshll.u32 %s11, 4
      %s91 = int_to_ptr.hbm [resolvable:$true] %s90
      %s92 = sshll.u32 [#allocation10], 4
      %s93 = int_to_ptr.vmem [resolvable:$true] %s92
      %95 = dma.hbm_to_vmem [thread:$0]  %s91, 16, %s93, [#allocation9]
    $region49: #{tpu_custom_call.1} parent=1 // pred_fallthru
      _
    // Predicated region
    $region50: #{tpu_custom_call.1} parent=1 // pred_check
      _
    $region51: #{tpu_custom_call.1} parent=1 // pred_check_branch
      %97 = sbr.rel (0) target = $region53
    $region52: #{tpu_custom_call.1} parent=1 // pred_region
      _
    $region53: #{tpu_custom_call.1} parent=1 // pred_fallthru
      _
    // Predicated region
    $region54: #{tpu_custom_call.1} parent=1 // pred_check
      _
    $region55: #{tpu_custom_call.1} parent=1 // pred_check_branch
      %99 = sbr.rel (0) target = $region57
    $region56: #{tpu_custom_call.1} parent=1 // pred_region
      %101 = vsyncadd [#allocation12], 0
      %s103 = sshll.u32 %s13, 4
      %s104 = int_to_ptr.hbm [resolvable:$true] %s103
      %s105 = sshll.u32 [#allocation11], 4
      %s106 = int_to_ptr.vmem [resolvable:$true] %s105
      %108 = dma.hbm_to_vmem [thread:$0]  %s104, 128, %s106, [#allocation12]
    $region57: #{tpu_custom_call.1} parent=1 // pred_fallthru
      _
    // Predicated region
    $region58: #{tpu_custom_call.1} parent=1 // pred_check
      _
    $region59: #{tpu_custom_call.1} parent=1 // pred_check_branch
      %110 = sbr.rel (0) target = $region61
    $region60: #{tpu_custom_call.1} parent=1 // pred_region
      %112 = vsyncadd [#allocation12], 0
      %s114 = sshll.u32 %s14, 4
      %s115 = int_to_ptr.hbm [resolvable:$true] %s114
      %s116 = sshll.u32 [#allocation13], 4
      %s117 = int_to_ptr.vmem [resolvable:$true] %s116
      %119 = dma.hbm_to_vmem [thread:$0]  %s115, 64, %s117, [#allocation12]
    $region61: #{tpu_custom_call.1} parent=1 // pred_fallthru
      _
    // Predicated region
    $region62: #{tpu_custom_call.1} parent=1 // pred_check
      _
    $region63: #{tpu_custom_call.1} parent=1 // pred_check_branch
      %121 = sbr.rel (0) target = $region65
    $region64: #{tpu_custom_call.1} parent=1 // pred_region
      %123 = dma.done [#allocation3], 16
    $region65: #{tpu_custom_call.1} parent=1 // pred_fallthru
      _
    // Predicated region
    $region66: #{tpu_custom_call.1} parent=1 // pred_check
      _
    $region67: #{tpu_custom_call.1} parent=1 // pred_check_branch
      %125 = sbr.rel (0) target = $region69
    $region68: #{tpu_custom_call.1} parent=1 // pred_region
      %127 = dma.done [#allocation6], 128
    $region69: #{tpu_custom_call.1} parent=1 // pred_fallthru
      _
    // Predicated region
    $region70: #{tpu_custom_call.1} parent=1 // pred_check
      _
    $region71: #{tpu_custom_call.1} parent=1 // pred_check_branch
      %129 = sbr.rel (0) target = $region73
    $region72: #{tpu_custom_call.1} parent=1 // pred_region
      %131 = dma.done [#allocation6], 128
    $region73: #{tpu_custom_call.1} parent=1 // pred_fallthru
      _
    // Predicated region
    $region74: #{tpu_custom_call.1} parent=1 // pred_check
      _
    $region75: #{tpu_custom_call.1} parent=1 // pred_check_branch
      %133 = sbr.rel (0) target = $region77
    $region76: #{tpu_custom_call.1} parent=1 // pred_region
      %135 = dma.done [#allocation9], 256
    $region77: #{tpu_custom_call.1} parent=1 // pred_fallthru
      _
    // Predicated region
    $region78: #{tpu_custom_call.1} parent=1 // pred_check
      _
    $region79: #{tpu_custom_call.1} parent=1 // pred_check_branch
      %137 = sbr.rel (0) target = $region81
    $region80: #{tpu_custom_call.1} parent=1 // pred_region
      %139 = dma.done [#allocation9], 16
    $region81: #{tpu_custom_call.1} parent=1 // pred_fallthru
      _
    // Predicated region
    $region82: #{tpu_custom_call.1} parent=1 // pred_check
      _
    $region83: #{tpu_custom_call.1} parent=1 // pred_check_branch
      %141 = sbr.rel (0) target = $region85
    $region84: #{tpu_custom_call.1} parent=1 // pred_region
      %143 = dma.done [#allocation12], 128
    $region85: #{tpu_custom_call.1} parent=1 // pred_fallthru
      _
    // Predicated region
    $region86: #{tpu_custom_call.1} parent=1 // pred_check
      _
    $region87: #{tpu_custom_call.1} parent=1 // pred_check_branch
      %145 = sbr.rel (0) target = $region89
    $region88: #{tpu_custom_call.1} parent=1 // pred_region
      %147 = dma.done [#allocation12], 64
    $region89: #{tpu_custom_call.1} parent=1 // pred_fallthru
      _
    %v149 = vld [vmem:[#allocation11] sm:$0xff]
    %v150 = vld [vmem:[%s0] sm:$0xff]
    %v151 = vld [vmem:[%s0 + $0x8] sm:$0xff]
    %v152 = vld [vmem:[%s0 + $0x10] sm:$0xff]
    %v153 = vld [vmem:[%s0 + $0x18] sm:$0xff]
    %v154 = vld [vmem:[%s0 + $0x20] sm:$0xff]
    %v155 = vld [vmem:[%s0 + $0x28] sm:$0xff]
    %v156 = vld [vmem:[%s0 + $0x30] sm:$0xff]
    %v157 = vld [vmem:[%s0 + $0x38] sm:$0xff]
    %v158 = vld [vmem:[%s0 + $0x40] sm:$0xff]
    %v159 = vld [vmem:[%s0 + $0x48] sm:$0xff]
    %v160 = vld [vmem:[%s0 + $0x50] sm:$0xff]
    %v161 = vld [vmem:[%s0 + $0x58] sm:$0xff]
    %v162 = vld [vmem:[%s0 + $0x60] sm:$0xff]
    %v163 = vld [vmem:[%s0 + $0x68] sm:$0xff]
    %v164 = vld [vmem:[%s0 + $0x70] sm:$0xff]
    %v165 = vld [vmem:[%s0 + $0x78] sm:$0xff]
    %v166 = vld [vmem:[#allocation7] sm:$0xff]
    %vm167 = vcmask 64512
    %v169 = vsel %vm167, %v150, 0
    %v172 = vsel %vm167, %v151, 0
    %v175 = vsel %vm167, %v152, 0
    %v178 = vsel %vm167, %v153, 0
    %v181 = vsel %vm167, %v154, 0
    %v184 = vsel %vm167, %v155, 0
    %v187 = vsel %vm167, %v156, 0
    %v190 = vsel %vm167, %v157, 0
    %v193 = vsel %vm167, %v158, 0
    %v196 = vsel %vm167, %v159, 0
    %v199 = vsel %vm167, %v160, 0
    %v202 = vsel %vm167, %v161, 0
    %v205 = vsel %vm167, %v162, 0
    %v208 = vsel %vm167, %v163, 0
    %v211 = vsel %vm167, %v164, 0
    %v214 = vsel %vm167, %v165, 0
    %216 = vmatpush.msra.mxu0 0.0
    %217 = vmatpush.msra.mxu0 0.0
    %218 = vmatpush.msra.mxu0 0.0
    %219 = vmatpush.msra.mxu0 0.0
    %220 = vmatpush.msra.mxu0 0.0
    %221 = vmatpush.msra.mxu0 0.0
    %222 = vmatpush.msra.mxu0 0.0
    %223 = vmatpush.msra.mxu0 0.0
    %224 = vmatpush.msra.mxu0 0.0
    %225 = vmatpush.msra.mxu0 0.0
    %226 = vmatpush.msra.mxu0 0.0
    %227 = vmatpush.msra.mxu0 0.0
    %228 = vmatpush.msra.mxu0 0.0
    %229 = vmatpush.msra.mxu0 0.0
    %230 = vmatpush.msra.mxu0 0.0
    %231 = vmatpush.msra.mxu0 %v166
    %232 = vmatmul.f32.gmra.mxu0 %v169
    %v233 = vpop.f32.mrf.mxu0
    %v234 = vadd.f32 0.0, %v233
    %235 = vmatmul.f32.gmra.mxu0 %v172
    %v236 = vpop.f32.mrf.mxu0
    %v237 = vadd.f32 0.0, %v236
    %238 = vmatmul.f32.gmra.mxu0 %v175
    %v239 = vpop.f32.mrf.mxu0
    %v240 = vadd.f32 0.0, %v239
    %241 = vmatmul.f32.gmra.mxu0 %v178
    %v242 = vpop.f32.mrf.mxu0
    %v243 = vadd.f32 0.0, %v242
    %244 = vmatmul.f32.gmra.mxu0 %v181
    %v245 = vpop.f32.mrf.mxu0
    %v246 = vadd.f32 0.0, %v245
    %247 = vmatmul.f32.gmra.mxu0 %v184
    %v248 = vpop.f32.mrf.mxu0
    %v249 = vadd.f32 0.0, %v248
    %250 = vmatmul.f32.gmra.mxu0 %v187
    %v251 = vpop.f32.mrf.mxu0
    %v252 = vadd.f32 0.0, %v251
    %253 = vmatmul.f32.gmra.mxu0 %v190
    %v254 = vpop.f32.mrf.mxu0
    %v255 = vadd.f32 0.0, %v254
    %256 = vmatmul.f32.gmra.mxu0 %v193
    %v257 = vpop.f32.mrf.mxu0
    %v258 = vadd.f32 0.0, %v257
    %259 = vmatmul.f32.gmra.mxu0 %v196
    %v260 = vpop.f32.mrf.mxu0
    %v261 = vadd.f32 0.0, %v260
    %262 = vmatmul.f32.gmra.mxu0 %v199
    %v263 = vpop.f32.mrf.mxu0
    %v264 = vadd.f32 0.0, %v263
    %265 = vmatmul.f32.gmra.mxu0 %v202
    %v266 = vpop.f32.mrf.mxu0
    %v267 = vadd.f32 0.0, %v266
    %268 = vmatmul.f32.gmra.mxu0 %v205
    %v269 = vpop.f32.mrf.mxu0
    %v270 = vadd.f32 0.0, %v269
    %271 = vmatmul.f32.gmra.mxu0 %v208
    %v272 = vpop.f32.mrf.mxu0
    %v273 = vadd.f32 0.0, %v272
    %274 = vmatmul.f32.gmra.mxu0 %v211
    %v275 = vpop.f32.mrf.mxu0
    %v276 = vadd.f32 0.0, %v275
    %277 = vmatmul.f32.gmra.mxu0 %v214
    %v278 = vpop.f32.mrf.mxu0
    %v279 = vadd.f32 0.0, %v278
    %280 = vdwg.mxu0
    %v281 = vld [vmem:[#allocation5] sm:$0xff]
    %v282 = vadd.f32 %v234, %v281
    %v283 = vadd.f32 %v237, %v281
    %v284 = vadd.f32 %v240, %v281
    %v285 = vadd.f32 %v243, %v281
    %v286 = vadd.f32 %v246, %v281
    %v287 = vadd.f32 %v249, %v281
    %v288 = vadd.f32 %v252, %v281
    %v289 = vadd.f32 %v255, %v281
    %v290 = vadd.f32 %v258, %v281
    %v291 = vadd.f32 %v261, %v281
    %v292 = vadd.f32 %v264, %v281
    %v293 = vadd.f32 %v267, %v281
    %v294 = vadd.f32 %v270, %v281
    %v295 = vadd.f32 %v273, %v281
    %v296 = vadd.f32 %v276, %v281
    %v297 = vadd.f32 %v279, %v281
    %v298 = vpack.c.bf16 %v283, %v282
    %v299 = vpack.c.bf16 %v285, %v284
    %v300 = vpack.c.bf16 %v287, %v286
    %v301 = vpack.c.bf16 %v289, %v288
    %v302 = vpack.c.bf16 %v291, %v290
    %v303 = vpack.c.bf16 %v293, %v292
    %v304 = vpack.c.bf16 %v295, %v294
    %v305 = vpack.c.bf16 %v297, %v296
    %v306 = vld [vmem:[%s6] sm:$0xf]
    %v307 = vld [vmem:[%s6 + $0x4] sm:$0xf]
    %v308 = vld [vmem:[%s6 + $0x8] sm:$0xf]
    %v309 = vld [vmem:[%s6 + $0xc] sm:$0xf]
    %v310 = vperm.slane %v149, 0
    %v315 = vunpack.c.l.b16 %v306
    %v316 = vunpack.c.l.b16 %v307
    %v317 = vunpack.c.l.b16 %v308
    %v318 = vunpack.c.l.b16 %v309
    %v319 = vpack.c.b16 %v316, %v315
    %v320 = vpack.c.b16 %v318, %v317
    %vm323 = vcmask 261120
    %v325 = vsel %vm323, %v298, 0
    %v328 = vsel %vm323, %v299, 0
    %v331 = vsel %vm323, %v300, 0
    %v334 = vsel %vm323, %v301, 0
    %v337 = vsel %vm323, %v302, 0
    %v340 = vsel %vm323, %v303, 0
    %v343 = vsel %vm323, %v304, 0
    %v346 = vsel %vm323, %v305, 0
    %348 = vmatpush.bf16.msra.mxu0 0
    %349 = vmatpush.bf16.msra.mxu0 0
    %350 = vmatpush.bf16.msra.mxu0 0
    %351 = vmatpush.bf16.msra.mxu0 0
    %352 = vmatpush.bf16.msra.mxu0 0
    %353 = vmatpush.bf16.msra.mxu0 0
    %354 = vmatpush.bf16.msra.mxu0 %v320
    %355 = vmatpush.bf16.msra.mxu0 %v319
    %356 = vmatmul.bf16.gmra.mxu0 %v325
    %v357 = vpop.f32.mrf.mxu0
    %v358 = vadd.f32 %v310, %v357
    %v359 = vpop.f32.mrf.mxu0
    %v360 = vadd.f32 %v310, %v359
    %361 = vmatmul.bf16.gmra.mxu0 %v328
    %v362 = vpop.f32.mrf.mxu0
    %v363 = vadd.f32 %v310, %v362
    %v364 = vpop.f32.mrf.mxu0
    %v365 = vadd.f32 %v310, %v364
    %366 = vmatmul.bf16.gmra.mxu0 %v331
    %v367 = vpop.f32.mrf.mxu0
    %v368 = vadd.f32 %v310, %v367
    %v369 = vpop.f32.mrf.mxu0
    %v370 = vadd.f32 %v310, %v369
    %371 = vmatmul.bf16.gmra.mxu0 %v334
    %v372 = vpop.f32.mrf.mxu0
    %v373 = vadd.f32 %v310, %v372
    %v374 = vpop.f32.mrf.mxu0
    %v375 = vadd.f32 %v310, %v374
    %376 = vmatmul.bf16.gmra.mxu0 %v337
    %v377 = vpop.f32.mrf.mxu0
    %v378 = vadd.f32 %v310, %v377
    %v379 = vpop.f32.mrf.mxu0
    %v380 = vadd.f32 %v310, %v379
    %381 = vmatmul.bf16.gmra.mxu0 %v340
    %v382 = vpop.f32.mrf.mxu0
    %v383 = vadd.f32 %v310, %v382
    %v384 = vpop.f32.mrf.mxu0
    %v385 = vadd.f32 %v310, %v384
    %386 = vmatmul.bf16.gmra.mxu0 %v343
    %v387 = vpop.f32.mrf.mxu0
    %v388 = vadd.f32 %v310, %v387
    %v389 = vpop.f32.mrf.mxu0
    %v390 = vadd.f32 %v310, %v389
    %391 = vmatmul.bf16.gmra.mxu0 %v346
    %v392 = vpop.f32.mrf.mxu0
    %v393 = vadd.f32 %v310, %v392
    %v394 = vpop.f32.mrf.mxu0
    %v395 = vadd.f32 %v310, %v394
    %396 = vdwg.mxu0
    %v397 = vld [vmem:[%s7] sm:$0xf]
    %v398 = vld [vmem:[%s7 + $0x4] sm:$0xf]
    %v399 = vld [vmem:[%s7 + $0x8] sm:$0xf]
    %v400 = vld [vmem:[%s7 + $0xc] sm:$0xf]
    %v405 = vunpack.c.l.b16 %v397
    %v406 = vunpack.c.l.b16 %v398
    %v407 = vunpack.c.l.b16 %v399
    %v408 = vunpack.c.l.b16 %v400
    %v409 = vpack.c.b16 %v406, %v405
    %v410 = vpack.c.b16 %v408, %v407
    %413 = vmatpush.bf16.msra.mxu0 0
    %414 = vmatpush.bf16.msra.mxu0 0
    %415 = vmatpush.bf16.msra.mxu0 0
    %416 = vmatpush.bf16.msra.mxu0 0
    %417 = vmatpush.bf16.msra.mxu0 0
    %418 = vmatpush.bf16.msra.mxu0 0
    %419 = vmatpush.bf16.msra.mxu0 %v410
    %420 = vmatpush.bf16.msra.mxu0 %v409
    %421 = vmatmul.bf16.gmra.mxu0 %v325
    %v422 = vpop.f32.mrf.mxu0
    %v423 = vadd.f32 0.0, %v422
    %v424 = vpop.f32.mrf.mxu0
    %v425 = vadd.f32 0.0, %v424
    %426 = vmatmul.bf16.gmra.mxu0 %v328
    %v427 = vpop.f32.mrf.mxu0
    %v428 = vadd.f32 0.0, %v427
    %v429 = vpop.f32.mrf.mxu0
    %v430 = vadd.f32 0.0, %v429
    %431 = vmatmul.bf16.gmra.mxu0 %v331
    %v432 = vpop.f32.mrf.mxu0
    %v433 = vadd.f32 0.0, %v432
    %v434 = vpop.f32.mrf.mxu0
    %v435 = vadd.f32 0.0, %v434
    %436 = vmatmul.bf16.gmra.mxu0 %v334
    %v437 = vpop.f32.mrf.mxu0
    %v438 = vadd.f32 0.0, %v437
    %v439 = vpop.f32.mrf.mxu0
    %v440 = vadd.f32 0.0, %v439
    %441 = vmatmul.bf16.gmra.mxu0 %v337
    %v442 = vpop.f32.mrf.mxu0
    %v443 = vadd.f32 0.0, %v442
    %v444 = vpop.f32.mrf.mxu0
    %v445 = vadd.f32 0.0, %v444
    %446 = vmatmul.bf16.gmra.mxu0 %v340
    %v447 = vpop.f32.mrf.mxu0
    %v448 = vadd.f32 0.0, %v447
    %v449 = vpop.f32.mrf.mxu0
    %v450 = vadd.f32 0.0, %v449
    %451 = vmatmul.bf16.gmra.mxu0 %v343
    %v452 = vpop.f32.mrf.mxu0
    %v453 = vadd.f32 0.0, %v452
    %v454 = vpop.f32.mrf.mxu0
    %v455 = vadd.f32 0.0, %v454
    %456 = vmatmul.bf16.gmra.mxu0 %v346
    %v457 = vpop.f32.mrf.mxu0
    %v458 = vadd.f32 0.0, %v457
    %v459 = vpop.f32.mrf.mxu0
    %v460 = vadd.f32 0.0, %v459
    %461 = vdwg.mxu0
    %v462 = vld [vmem:[%s8] sm:$0xf]
    %v463 = vld [vmem:[%s8 + $0x4] sm:$0xf]
    %v464 = vld [vmem:[%s8 + $0x8] sm:$0xf]
    %v465 = vld [vmem:[%s8 + $0xc] sm:$0xf]
    %v466 = vperm.slane %v149, 1
    %v471 = vunpack.c.l.b16 %v462
    %v472 = vunpack.c.l.b16 %v463
    %v473 = vunpack.c.l.b16 %v464
    %v474 = vunpack.c.l.b16 %v465
    %v475 = vpack.c.b16 %v472, %v471
    %v476 = vpack.c.b16 %v474, %v473
    %479 = vmatpush.bf16.msra.mxu0 0
    %480 = vmatpush.bf16.msra.mxu0 0
    %481 = vmatpush.bf16.msra.mxu0 0
    %482 = vmatpush.bf16.msra.mxu0 0
    %483 = vmatpush.bf16.msra.mxu0 0
    %484 = vmatpush.bf16.msra.mxu0 0
    %485 = vmatpush.bf16.msra.mxu0 %v476
    %486 = vmatpush.bf16.msra.mxu0 %v475
    %487 = vmatmul.bf16.gmra.mxu0 %v325
    %v488 = vpop.f32.mrf.mxu0
    %v489 = vadd.f32 %v466, %v488
    %v490 = vpop.f32.mrf.mxu0
    %v491 = vadd.f32 %v466, %v490
    %492 = vmatmul.bf16.gmra.mxu0 %v328
    %v493 = vpop.f32.mrf.mxu0
    %v494 = vadd.f32 %v466, %v493
    %v495 = vpop.f32.mrf.mxu0
    %v496 = vadd.f32 %v466, %v495
    %497 = vmatmul.bf16.gmra.mxu0 %v331
    %v498 = vpop.f32.mrf.mxu0
    %v499 = vadd.f32 %v466, %v498
    %v500 = vpop.f32.mrf.mxu0
    %v501 = vadd.f32 %v466, %v500
    %502 = vmatmul.bf16.gmra.mxu0 %v334
    %v503 = vpop.f32.mrf.mxu0
    %v504 = vadd.f32 %v466, %v503
    %v505 = vpop.f32.mrf.mxu0
    %v506 = vadd.f32 %v466, %v505
    %507 = vmatmul.bf16.gmra.mxu0 %v337
    %v508 = vpop.f32.mrf.mxu0
    %v509 = vadd.f32 %v466, %v508
    %v510 = vpop.f32.mrf.mxu0
    %v511 = vadd.f32 %v466, %v510
    %512 = vmatmul.bf16.gmra.mxu0 %v340
    %v513 = vpop.f32.mrf.mxu0
    %v514 = vadd.f32 %v466, %v513
    %v515 = vpop.f32.mrf.mxu0
    %v516 = vadd.f32 %v466, %v515
    %517 = vmatmul.bf16.gmra.mxu0 %v343
    %v518 = vpop.f32.mrf.mxu0
    %v519 = vadd.f32 %v466, %v518
    %v520 = vpop.f32.mrf.mxu0
    %v521 = vadd.f32 %v466, %v520
    %522 = vmatmul.bf16.gmra.mxu0 %v346
    %v523 = vpop.f32.mrf.mxu0
    %v524 = vadd.f32 %v466, %v523
    %v525 = vpop.f32.mrf.mxu0
    %v526 = vadd.f32 %v466, %v525
    %527 = vdwg.mxu0
    %v528 = vpack.c.bf16 %v423, %v423
    %v529 = vpack.c.bf16 %v425, %v425
    %v530 = vpack.c.bf16 %v428, %v428
    %v531 = vpack.c.bf16 %v430, %v430
    %v532 = vpack.c.bf16 %v433, %v433
    %v533 = vpack.c.bf16 %v435, %v435
    %v534 = vpack.c.bf16 %v438, %v438
    %v535 = vpack.c.bf16 %v440, %v440
    %v536 = vpack.c.bf16 %v443, %v443
    %v537 = vpack.c.bf16 %v445, %v445
    %v538 = vpack.c.bf16 %v448, %v448
    %v539 = vpack.c.bf16 %v450, %v450
    %v540 = vpack.c.bf16 %v453, %v453
    %v541 = vpack.c.bf16 %v455, %v455
    %v542 = vpack.c.bf16 %v458, %v458
    %v543 = vpack.c.bf16 %v460, %v460
    %v544 = vpack.c.bf16 %v489, %v489
    %v545 = vpack.c.bf16 %v491, %v491
    %v546 = vpack.c.bf16 %v494, %v494
    %v547 = vpack.c.bf16 %v496, %v496
    %v548 = vpack.c.bf16 %v499, %v499
    %v549 = vpack.c.bf16 %v501, %v501
    %v550 = vpack.c.bf16 %v504, %v504
    %v551 = vpack.c.bf16 %v506, %v506
    %v552 = vpack.c.bf16 %v509, %v509
    %v553 = vpack.c.bf16 %v511, %v511
    %v554 = vpack.c.bf16 %v514, %v514
    %v555 = vpack.c.bf16 %v516, %v516
    %v556 = vpack.c.bf16 %v519, %v519
    %v557 = vpack.c.bf16 %v521, %v521
    %v558 = vpack.c.bf16 %v524, %v524
    %v559 = vpack.c.bf16 %v526, %v526
    %v560 = vld [vmem:[%s3] sm:$0xff]
    %v561 = vld [vmem:[%s3 + $0x8] sm:$0xff]
    %v562 = vld [vmem:[%s3 + $0x10] sm:$0xff]
    %v563 = vld [vmem:[%s3 + $0x18] sm:$0xff]
    %v564 = vld [vmem:[%s3 + $0x20] sm:$0xff]
    %v565 = vld [vmem:[%s3 + $0x28] sm:$0xff]
    %v566 = vld [vmem:[%s3 + $0x30] sm:$0xff]
    %v567 = vld [vmem:[%s3 + $0x38] sm:$0xff]
    %v568 = vld [vmem:[%s3 + $0x40] sm:$0xff]
    %v569 = vld [vmem:[%s3 + $0x48] sm:$0xff]
    %v570 = vld [vmem:[%s3 + $0x50] sm:$0xff]
    %v571 = vld [vmem:[%s3 + $0x58] sm:$0xff]
    %v572 = vld [vmem:[%s3 + $0x60] sm:$0xff]
    %v573 = vld [vmem:[%s3 + $0x68] sm:$0xff]
    %v574 = vld [vmem:[%s3 + $0x70] sm:$0xff]
    %v575 = vld [vmem:[%s3 + $0x78] sm:$0xff]
    %v576 = vld [vmem:[#allocation2] sm:$0x1]
    %v578 = vperm.slane %v576, 0
    %v580 = vadd.f32 %v560, %v578
    %v581 = vadd.f32 %v561, %v578
    %v582 = vadd.f32 %v562, %v578
    %v583 = vadd.f32 %v563, %v578
    %v584 = vadd.f32 %v564, %v578
    %v585 = vadd.f32 %v565, %v578
    %v586 = vadd.f32 %v566, %v578
    %v587 = vadd.f32 %v567, %v578
    %v588 = vadd.f32 %v568, %v578
    %v589 = vadd.f32 %v569, %v578
    %v590 = vadd.f32 %v570, %v578
    %v591 = vadd.f32 %v571, %v578
    %v592 = vadd.f32 %v572, %v578
    %v593 = vadd.f32 %v573, %v578
    %v594 = vadd.f32 %v574, %v578
    %v595 = vadd.f32 %v575, %v578
    %v596 = vld [vmem:[#allocation13] sm:$0x1]
    %v597 = vperm.slane %v596, 0
    %v598 = vmul.f32 %v358, %v597
    %v599 = vmul.f32 %v360, %v597
    %v600 = vmul.f32 %v363, %v597
    %v601 = vmul.f32 %v365, %v597
    %v602 = vmul.f32 %v368, %v597
    %v603 = vmul.f32 %v370, %v597
    %v604 = vmul.f32 %v373, %v597
    %v605 = vmul.f32 %v375, %v597
    %v606 = vmul.f32 %v378, %v597
    %v607 = vmul.f32 %v380, %v597
    %v608 = vmul.f32 %v383, %v597
    %v609 = vmul.f32 %v385, %v597
    %v610 = vmul.f32 %v388, %v597
    %v611 = vmul.f32 %v390, %v597
    %v612 = vmul.f32 %v393, %v597
    %v613 = vmul.f32 %v395, %v597
    %v614 = vpack.c.bf16 %v598, %v598
    %v615 = vpack.c.bf16 %v599, %v599
    %v616 = vpack.c.bf16 %v600, %v600
    %v617 = vpack.c.bf16 %v601, %v601
    %v618 = vpack.c.bf16 %v602, %v602
    %v619 = vpack.c.bf16 %v603, %v603
    %v620 = vpack.c.bf16 %v604, %v604
    %v621 = vpack.c.bf16 %v605, %v605
    %v622 = vpack.c.bf16 %v606, %v606
    %v623 = vpack.c.bf16 %v607, %v607
    %v624 = vpack.c.bf16 %v608, %v608
    %v625 = vpack.c.bf16 %v609, %v609
    %v626 = vpack.c.bf16 %v610, %v610
    %v627 = vpack.c.bf16 %v611, %v611
    %v628 = vpack.c.bf16 %v612, %v612
    %v629 = vpack.c.bf16 %v613, %v613
    %v646 = vunpack.c.l.b16 %v614
    %v647 = vunpack.c.l.b16 %v615
    %v648 = vunpack.c.l.b16 %v616
    %v649 = vunpack.c.l.b16 %v617
    %v650 = vunpack.c.l.b16 %v618
    %v651 = vunpack.c.l.b16 %v619
    %v652 = vunpack.c.l.b16 %v620
    %v653 = vunpack.c.l.b16 %v621
    %v654 = vunpack.c.l.b16 %v622
    %v655 = vunpack.c.l.b16 %v623
    %v656 = vunpack.c.l.b16 %v624
    %v657 = vunpack.c.l.b16 %v625
    %v658 = vunpack.c.l.b16 %v626
    %v659 = vunpack.c.l.b16 %v627
    %v660 = vunpack.c.l.b16 %v628
    %v661 = vunpack.c.l.b16 %v629
    %v662 = vpack.c.b16 %v647, %v646
    %v663 = vpack.c.b16 %v649, %v648
    %v664 = vpack.c.b16 %v651, %v650
    %v665 = vpack.c.b16 %v653, %v652
    %v666 = vpack.c.b16 %v655, %v654
    %v667 = vpack.c.b16 %v657, %v656
    %v668 = vpack.c.b16 %v659, %v658
    %v669 = vpack.c.b16 %v661, %v660
    %v686 = vunpack.c.l.b16 %v528
    %v687 = vunpack.c.l.b16 %v529
    %v688 = vunpack.c.l.b16 %v530
    %v689 = vunpack.c.l.b16 %v531
    %v690 = vunpack.c.l.b16 %v532
    %v691 = vunpack.c.l.b16 %v533
    %v692 = vunpack.c.l.b16 %v534
    %v693 = vunpack.c.l.b16 %v535
    %v694 = vunpack.c.l.b16 %v536
    %v695 = vunpack.c.l.b16 %v537
    %v696 = vunpack.c.l.b16 %v538
    %v697 = vunpack.c.l.b16 %v539
    %v698 = vunpack.c.l.b16 %v540
    %v699 = vunpack.c.l.b16 %v541
    %v700 = vunpack.c.l.b16 %v542
    %v701 = vunpack.c.l.b16 %v543
    %v702 = vpack.c.b16 %v687, %v686
    %v703 = vpack.c.b16 %v689, %v688
    %v704 = vpack.c.b16 %v691, %v690
    %v705 = vpack.c.b16 %v693, %v692
    %v706 = vpack.c.b16 %v695, %v694
    %v707 = vpack.c.b16 %v697, %v696
    %v708 = vpack.c.b16 %v699, %v698
    %v709 = vpack.c.b16 %v701, %v700
    %v711 = vsel %vm323, %v662, 0
    %v714 = vsel %vm323, %v663, 0
    %v717 = vsel %vm323, %v664, 0
    %v720 = vsel %vm323, %v665, 0
    %v723 = vsel %vm323, %v666, 0
    %v726 = vsel %vm323, %v667, 0
    %v729 = vsel %vm323, %v668, 0
    %v732 = vsel %vm323, %v669, 0
    %v735 = vsel %vm323, %v702, 0
    %v738 = vsel %vm323, %v703, 0
    %v741 = vsel %vm323, %v704, 0
    %v744 = vsel %vm323, %v705, 0
    %v747 = vsel %vm323, %v706, 0
    %v750 = vsel %vm323, %v707, 0
    %v753 = vsel %vm323, %v708, 0
    %v756 = vsel %vm323, %v709, 0
    %758 = vmatpush.bf16.xpose.msra.mxu0 %v756
    %759 = vmatpush.bf16.xpose.msra.mxu0 %v753
    %760 = vmatpush.bf16.xpose.msra.mxu0 %v750
    %761 = vmatpush.bf16.xpose.msra.mxu0 %v747
    %762 = vmatpush.bf16.xpose.msra.mxu0 %v744
    %763 = vmatpush.bf16.xpose.msra.mxu0 %v741
    %764 = vmatpush.bf16.xpose.msra.mxu0 %v738
    %765 = vmatpush.bf16.xpose.msra.mxu0 %v735
    %766 = vmatmul.bf16.gmra.mxu0 %v711
    %v767 = vpop.f32.mrf.mxu0
    %v768 = vadd.f32 %v580, %v767
    %v769 = vpop.f32.mrf.mxu0
    %v770 = vadd.f32 %v581, %v769
    %771 = vmatmul.bf16.gmra.mxu0 %v714
    %v772 = vpop.f32.mrf.mxu0
    %v773 = vadd.f32 %v582, %v772
    %v774 = vpop.f32.mrf.mxu0
    %v775 = vadd.f32 %v583, %v774
    %776 = vmatmul.bf16.gmra.mxu0 %v717
    %v777 = vpop.f32.mrf.mxu0
    %v778 = vadd.f32 %v584, %v777
    %v779 = vpop.f32.mrf.mxu0
    %v780 = vadd.f32 %v585, %v779
    %781 = vmatmul.bf16.gmra.mxu0 %v720
    %v782 = vpop.f32.mrf.mxu0
    %v783 = vadd.f32 %v586, %v782
    %v784 = vpop.f32.mrf.mxu0
    %v785 = vadd.f32 %v587, %v784
    %786 = vmatmul.bf16.gmra.mxu0 %v723
    %v787 = vpop.f32.mrf.mxu0
    %v788 = vadd.f32 %v588, %v787
    %v789 = vpop.f32.mrf.mxu0
    %v790 = vadd.f32 %v589, %v789
    %791 = vmatmul.bf16.gmra.mxu0 %v726
    %v792 = vpop.f32.mrf.mxu0
    %v793 = vadd.f32 %v590, %v792
    %v794 = vpop.f32.mrf.mxu0
    %v795 = vadd.f32 %v591, %v794
    %796 = vmatmul.bf16.gmra.mxu0 %v729
    %v797 = vpop.f32.mrf.mxu0
    %v798 = vadd.f32 %v592, %v797
    %v799 = vpop.f32.mrf.mxu0
    %v800 = vadd.f32 %v593, %v799
    %801 = vmatmul.bf16.gmra.mxu0 %v732
    %v802 = vpop.f32.mrf.mxu0
    %v803 = vadd.f32 %v594, %v802
    %v804 = vpop.f32.mrf.mxu0
    %v805 = vadd.f32 %v595, %v804
    %806 = vdwg.mxu0
    %807 = vmax.xlane.f32.xlu0 %v768
    %v808 = vpop.xlane.xlu0 %807
    %809 = vmax.xlane.f32.xlu0 %v770
    %v810 = vpop.xlane.xlu0 %809
    %811 = vmax.xlane.f32.xlu0 %v773
    %v812 = vpop.xlane.xlu0 %811
    %813 = vmax.xlane.f32.xlu0 %v775
    %v814 = vpop.xlane.xlu0 %813
    %815 = vmax.xlane.f32.xlu0 %v778
    %v816 = vpop.xlane.xlu0 %815
    %817 = vmax.xlane.f32.xlu0 %v780
    %v818 = vpop.xlane.xlu0 %817
    %819 = vmax.xlane.f32.xlu0 %v783
    %v820 = vpop.xlane.xlu0 %819
    %821 = vmax.xlane.f32.xlu0 %v785
    %v822 = vpop.xlane.xlu0 %821
    %823 = vmax.xlane.f32.xlu0 %v788
    %v824 = vpop.xlane.xlu0 %823
    %825 = vmax.xlane.f32.xlu0 %v790
    %v826 = vpop.xlane.xlu0 %825
    %827 = vmax.xlane.f32.xlu0 %v793
    %v828 = vpop.xlane.xlu0 %827
    %829 = vmax.xlane.f32.xlu0 %v795
    %v830 = vpop.xlane.xlu0 %829
    %831 = vmax.xlane.f32.xlu0 %v798
    %v832 = vpop.xlane.xlu0 %831
    %833 = vmax.xlane.f32.xlu0 %v800
    %v834 = vpop.xlane.xlu0 %833
    %835 = vmax.xlane.f32.xlu0 %v803
    %v836 = vpop.xlane.xlu0 %835
    %837 = vmax.xlane.f32.xlu0 %v805
    %v838 = vpop.xlane.xlu0 %837
    %v839 = vsub.f32 %v768, %v808
    %v840 = vsub.f32 %v770, %v810
    %v841 = vsub.f32 %v773, %v812
    %v842 = vsub.f32 %v775, %v814
    %v843 = vsub.f32 %v778, %v816
    %v844 = vsub.f32 %v780, %v818
    %v845 = vsub.f32 %v783, %v820
    %v846 = vsub.f32 %v785, %v822
    %v847 = vsub.f32 %v788, %v824
    %v848 = vsub.f32 %v790, %v826
    %v849 = vsub.f32 %v793, %v828
    %v850 = vsub.f32 %v795, %v830
    %v851 = vsub.f32 %v798, %v832
    %v852 = vsub.f32 %v800, %v834
    %v853 = vsub.f32 %v803, %v836
    %v854 = vsub.f32 %v805, %v838
    %v855 = vmul.f32 %v839, 1.442695
    %v856 = vpow.pop %v855
    %v857 = vmul.f32 %v840, 1.442695
    %v858 = vpow.pop %v857
    %v859 = vmul.f32 %v841, 1.442695
    %v860 = vpow.pop %v859
    %v861 = vmul.f32 %v842, 1.442695
    %v862 = vpow.pop %v861
    %v863 = vmul.f32 %v843, 1.442695
    %v864 = vpow.pop %v863
    %v865 = vmul.f32 %v844, 1.442695
    %v866 = vpow.pop %v865
    %v867 = vmul.f32 %v845, 1.442695
    %v868 = vpow.pop %v867
    %v869 = vmul.f32 %v846, 1.442695
    %v870 = vpow.pop %v869
    %v871 = vmul.f32 %v847, 1.442695
    %v872 = vpow.pop %v871
    %v873 = vmul.f32 %v848, 1.442695
    %v874 = vpow.pop %v873
    %v875 = vmul.f32 %v849, 1.442695
    %v876 = vpow.pop %v875
    %v877 = vmul.f32 %v850, 1.442695
    %v878 = vpow.pop %v877
    %v879 = vmul.f32 %v851, 1.442695
    %v880 = vpow.pop %v879
    %v881 = vmul.f32 %v852, 1.442695
    %v882 = vpow.pop %v881
    %v883 = vmul.f32 %v853, 1.442695
    %v884 = vpow.pop %v883
    %v885 = vmul.f32 %v854, 1.442695
    %v886 = vpow.pop %v885
    %887 = vadd.xlane.f32.xlu0 %v856
    %v888 = vpop.xlane.xlu0 %887
    %889 = vadd.xlane.f32.xlu0 %v858
    %v890 = vpop.xlane.xlu0 %889
    %891 = vadd.xlane.f32.xlu0 %v860
    %v892 = vpop.xlane.xlu0 %891
    %893 = vadd.xlane.f32.xlu0 %v862
    %v894 = vpop.xlane.xlu0 %893
    %895 = vadd.xlane.f32.xlu0 %v864
    %v896 = vpop.xlane.xlu0 %895
    %897 = vadd.xlane.f32.xlu0 %v866
    %v898 = vpop.xlane.xlu0 %897
    %899 = vadd.xlane.f32.xlu0 %v868
    %v900 = vpop.xlane.xlu0 %899
    %901 = vadd.xlane.f32.xlu0 %v870
    %v902 = vpop.xlane.xlu0 %901
    %903 = vadd.xlane.f32.xlu0 %v872
    %v904 = vpop.xlane.xlu0 %903
    %905 = vadd.xlane.f32.xlu0 %v874
    %v906 = vpop.xlane.xlu0 %905
    %907 = vadd.xlane.f32.xlu0 %v876
    %v908 = vpop.xlane.xlu0 %907
    %909 = vadd.xlane.f32.xlu0 %v878
    %v910 = vpop.xlane.xlu0 %909
    %911 = vadd.xlane.f32.xlu0 %v880
    %v912 = vpop.xlane.xlu0 %911
    %913 = vadd.xlane.f32.xlu0 %v882
    %v914 = vpop.xlane.xlu0 %913
    %915 = vadd.xlane.f32.xlu0 %v884
    %v916 = vpop.xlane.xlu0 %915
    %917 = vadd.xlane.f32.xlu0 %v886
    %v918 = vpop.xlane.xlu0 %917
    %v919 = vrcp.pop %v888
    %v920 = vrcp.pop %v890
    %v921 = vrcp.pop %v892
    %v922 = vrcp.pop %v894
    %v923 = vrcp.pop %v896
    %v924 = vrcp.pop %v898
    %v925 = vrcp.pop %v900
    %v926 = vrcp.pop %v902
    %v927 = vrcp.pop %v904
    %v928 = vrcp.pop %v906
    %v929 = vrcp.pop %v908
    %v930 = vrcp.pop %v910
    %v931 = vrcp.pop %v912
    %v932 = vrcp.pop %v914
    %v933 = vrcp.pop %v916
    %v934 = vrcp.pop %v918
    %v935 = vpack.c.bf16 %v856, %v856
    %v936 = vpack.c.bf16 %v858, %v858
    %v937 = vpack.c.bf16 %v860, %v860
    %v938 = vpack.c.bf16 %v862, %v862
    %v939 = vpack.c.bf16 %v864, %v864
    %v940 = vpack.c.bf16 %v866, %v866
    %v941 = vpack.c.bf16 %v868, %v868
    %v942 = vpack.c.bf16 %v870, %v870
    %v943 = vpack.c.bf16 %v872, %v872
    %v944 = vpack.c.bf16 %v874, %v874
    %v945 = vpack.c.bf16 %v876, %v876
    %v946 = vpack.c.bf16 %v878, %v878
    %v947 = vpack.c.bf16 %v880, %v880
    %v948 = vpack.c.bf16 %v882, %v882
    %v949 = vpack.c.bf16 %v884, %v884
    %v950 = vpack.c.bf16 %v886, %v886
    %v967 = vunpack.c.l.b16 %v935
    %v968 = vunpack.c.l.b16 %v936
    %v969 = vunpack.c.l.b16 %v937
    %v970 = vunpack.c.l.b16 %v938
    %v971 = vunpack.c.l.b16 %v939
    %v972 = vunpack.c.l.b16 %v940
    %v973 = vunpack.c.l.b16 %v941
    %v974 = vunpack.c.l.b16 %v942
    %v975 = vunpack.c.l.b16 %v943
    %v976 = vunpack.c.l.b16 %v944
    %v977 = vunpack.c.l.b16 %v945
    %v978 = vunpack.c.l.b16 %v946
    %v979 = vunpack.c.l.b16 %v947
    %v980 = vunpack.c.l.b16 %v948
    %v981 = vunpack.c.l.b16 %v949
    %v982 = vunpack.c.l.b16 %v950
    %v983 = vpack.c.b16 %v968, %v967
    %v984 = vpack.c.b16 %v970, %v969
    %v985 = vpack.c.b16 %v972, %v971
    %v986 = vpack.c.b16 %v974, %v973
    %v987 = vpack.c.b16 %v976, %v975
    %v988 = vpack.c.b16 %v978, %v977
    %v989 = vpack.c.b16 %v980, %v979
    %v990 = vpack.c.b16 %v982, %v981
    %v1015 = vunpack.c.l.b16 %v544
    %v1016 = vunpack.c.l.b16 %v545
    %v1017 = vunpack.c.l.b16 %v546
    %v1018 = vunpack.c.l.b16 %v547
    %v1019 = vunpack.c.l.b16 %v548
    %v1020 = vunpack.c.l.b16 %v549
    %v1021 = vunpack.c.l.b16 %v550
    %v1022 = vunpack.c.l.b16 %v551
    %v1023 = vunpack.c.l.b16 %v552
    %v1024 = vunpack.c.l.b16 %v553
    %v1025 = vunpack.c.l.b16 %v554
    %v1026 = vunpack.c.l.b16 %v555
    %v1027 = vunpack.c.l.b16 %v556
    %v1028 = vunpack.c.l.b16 %v557
    %v1029 = vunpack.c.l.b16 %v558
    %v1030 = vunpack.c.l.b16 %v559
    %v1031 = vpack.c.b16 %v1016, %v1015
    %v1032 = vpack.c.b16 %v1018, %v1017
    %v1033 = vpack.c.b16 %v1020, %v1019
    %v1034 = vpack.c.b16 %v1022, %v1021
    %v1035 = vpack.c.b16 %v1024, %v1023
    %v1036 = vpack.c.b16 %v1026, %v1025
    %v1037 = vpack.c.b16 %v1028, %v1027
    %v1038 = vpack.c.b16 %v1030, %v1029
    %1047 = vmatpush.bf16.msra.mxu0 %v1038
    %1048 = vmatpush.bf16.msra.mxu0 %v1037
    %1049 = vmatpush.bf16.msra.mxu0 %v1036
    %1050 = vmatpush.bf16.msra.mxu0 %v1035
    %1051 = vmatpush.bf16.msra.mxu0 %v1034
    %1052 = vmatpush.bf16.msra.mxu0 %v1033
    %1053 = vmatpush.bf16.msra.mxu0 %v1032
    %1054 = vmatpush.bf16.msra.mxu0 %v1031
    %1055 = vmatmul.bf16.gmra.mxu0 %v983
    %v1056 = vpop.f32.mrf.mxu0
    %v1057 = vadd.f32 0.0, %v1056
    %v1058 = vpop.f32.mrf.mxu0
    %v1059 = vadd.f32 0.0, %v1058
    %1060 = vmatmul.bf16.gmra.mxu0 %v984
    %v1061 = vpop.f32.mrf.mxu0
    %v1062 = vadd.f32 0.0, %v1061
    %v1063 = vpop.f32.mrf.mxu0
    %v1064 = vadd.f32 0.0, %v1063
    %1065 = vmatmul.bf16.gmra.mxu0 %v985
    %v1066 = vpop.f32.mrf.mxu0
    %v1067 = vadd.f32 0.0, %v1066
    %v1068 = vpop.f32.mrf.mxu0
    %v1069 = vadd.f32 0.0, %v1068
    %1070 = vmatmul.bf16.gmra.mxu0 %v986
    %v1071 = vpop.f32.mrf.mxu0
    %v1072 = vadd.f32 0.0, %v1071
    %v1073 = vpop.f32.mrf.mxu0
    %v1074 = vadd.f32 0.0, %v1073
    %1075 = vmatmul.bf16.gmra.mxu0 %v987
    %v1076 = vpop.f32.mrf.mxu0
    %v1077 = vadd.f32 0.0, %v1076
    %v1078 = vpop.f32.mrf.mxu0
    %v1079 = vadd.f32 0.0, %v1078
    %1080 = vmatmul.bf16.gmra.mxu0 %v988
    %v1081 = vpop.f32.mrf.mxu0
    %v1082 = vadd.f32 0.0, %v1081
    %v1083 = vpop.f32.mrf.mxu0
    %v1084 = vadd.f32 0.0, %v1083
    %1085 = vmatmul.bf16.gmra.mxu0 %v989
    %v1086 = vpop.f32.mrf.mxu0
    %v1087 = vadd.f32 0.0, %v1086
    %v1088 = vpop.f32.mrf.mxu0
    %v1089 = vadd.f32 0.0, %v1088
    %1090 = vmatmul.bf16.gmra.mxu0 %v990
    %v1091 = vpop.f32.mrf.mxu0
    %v1092 = vadd.f32 0.0, %v1091
    %v1093 = vpop.f32.mrf.mxu0
    %v1094 = vadd.f32 0.0, %v1093
    %1095 = vdwg.mxu0
    %v1096 = vmul.f32 %v919, %v597
    %v1097 = vmul.f32 %v920, %v597
    %v1098 = vmul.f32 %v921, %v597
    %v1099 = vmul.f32 %v922, %v597
    %v1100 = vmul.f32 %v923, %v597
    %v1101 = vmul.f32 %v924, %v597
    %v1102 = vmul.f32 %v925, %v597
    %v1103 = vmul.f32 %v926, %v597
    %v1104 = vmul.f32 %v927, %v597
    %v1105 = vmul.f32 %v928, %v597
    %v1106 = vmul.f32 %v929, %v597
    %v1107 = vmul.f32 %v930, %v597
    %v1108 = vmul.f32 %v931, %v597
    %v1109 = vmul.f32 %v932, %v597
    %v1110 = vmul.f32 %v933, %v597
    %v1111 = vmul.f32 %v934, %v597
    %v1112 = vmul.f32 %v1057, %v1096
    %v1113 = vmul.f32 %v1059, %v1097
    %v1114 = vmul.f32 %v1062, %v1098
    %v1115 = vmul.f32 %v1064, %v1099
    %v1116 = vmul.f32 %v1067, %v1100
    %v1117 = vmul.f32 %v1069, %v1101
    %v1118 = vmul.f32 %v1072, %v1102
    %v1119 = vmul.f32 %v1074, %v1103
    %v1120 = vmul.f32 %v1077, %v1104
    %v1121 = vmul.f32 %v1079, %v1105
    %v1122 = vmul.f32 %v1082, %v1106
    %v1123 = vmul.f32 %v1084, %v1107
    %v1124 = vmul.f32 %v1087, %v1108
    %v1125 = vmul.f32 %v1089, %v1109
    %v1126 = vmul.f32 %v1092, %v1110
    %v1127 = vmul.f32 %v1094, %v1111
    %v1128 = vadd.f32 %v1112, 0.0
    %v1129 = vadd.f32 %v1113, 0.0
    %v1130 = vadd.f32 %v1114, 0.0
    %v1131 = vadd.f32 %v1115, 0.0
    %v1132 = vadd.f32 %v1116, 0.0
    %v1133 = vadd.f32 %v1117, 0.0
    %v1134 = vadd.f32 %v1118, 0.0
    %v1135 = vadd.f32 %v1119, 0.0
    %v1136 = vadd.f32 %v1120, 0.0
    %v1137 = vadd.f32 %v1121, 0.0
    %v1138 = vadd.f32 %v1122, 0.0
    %v1139 = vadd.f32 %v1123, 0.0
    %v1140 = vadd.f32 %v1124, 0.0
    %v1141 = vadd.f32 %v1125, 0.0
    %v1142 = vadd.f32 %v1126, 0.0
    %v1143 = vadd.f32 %v1127, 0.0
    %v1144 = vld [vmem:[#allocation13 + $0x1] sm:$0x1]
    %v1145 = vperm.slane %v1144, 0
    %v1146 = vmul.f32 %v358, %v1145
    %v1147 = vmul.f32 %v360, %v1145
    %v1148 = vmul.f32 %v363, %v1145
    %v1149 = vmul.f32 %v365, %v1145
    %v1150 = vmul.f32 %v368, %v1145
    %v1151 = vmul.f32 %v370, %v1145
    %v1152 = vmul.f32 %v373, %v1145
    %v1153 = vmul.f32 %v375, %v1145
    %v1154 = vmul.f32 %v378, %v1145
    %v1155 = vmul.f32 %v380, %v1145
    %v1156 = vmul.f32 %v383, %v1145
    %v1157 = vmul.f32 %v385, %v1145
    %v1158 = vmul.f32 %v388, %v1145
    %v1159 = vmul.f32 %v390, %v1145
    %v1160 = vmul.f32 %v393, %v1145
    %v1161 = vmul.f32 %v395, %v1145
    %v1162 = vpack.c.bf16 %v1146, %v1146
    %v1163 = vpack.c.bf16 %v1147, %v1147
    %v1164 = vpack.c.bf16 %v1148, %v1148
    %v1165 = vpack.c.bf16 %v1149, %v1149
    %v1166 = vpack.c.bf16 %v1150, %v1150
    %v1167 = vpack.c.bf16 %v1151, %v1151
    %v1168 = vpack.c.bf16 %v1152, %v1152
    %v1169 = vpack.c.bf16 %v1153, %v1153
    %v1170 = vpack.c.bf16 %v1154, %v1154
    %v1171 = vpack.c.bf16 %v1155, %v1155
    %v1172 = vpack.c.bf16 %v1156, %v1156
    %v1173 = vpack.c.bf16 %v1157, %v1157
    %v1174 = vpack.c.bf16 %v1158, %v1158
    %v1175 = vpack.c.bf16 %v1159, %v1159
    %v1176 = vpack.c.bf16 %v1160, %v1160
    %v1177 = vpack.c.bf16 %v1161, %v1161
    %v1194 = vunpack.c.l.b16 %v1162
    %v1195 = vunpack.c.l.b16 %v1163
    %v1196 = vunpack.c.l.b16 %v1164
    %v1197 = vunpack.c.l.b16 %v1165
    %v1198 = vunpack.c.l.b16 %v1166
    %v1199 = vunpack.c.l.b16 %v1167
    %v1200 = vunpack.c.l.b16 %v1168
    %v1201 = vunpack.c.l.b16 %v1169
    %v1202 = vunpack.c.l.b16 %v1170
    %v1203 = vunpack.c.l.b16 %v1171
    %v1204 = vunpack.c.l.b16 %v1172
    %v1205 = vunpack.c.l.b16 %v1173
    %v1206 = vunpack.c.l.b16 %v1174
    %v1207 = vunpack.c.l.b16 %v1175
    %v1208 = vunpack.c.l.b16 %v1176
    %v1209 = vunpack.c.l.b16 %v1177
    %v1210 = vpack.c.b16 %v1195, %v1194
    %v1211 = vpack.c.b16 %v1197, %v1196
    %v1212 = vpack.c.b16 %v1199, %v1198
    %v1213 = vpack.c.b16 %v1201, %v1200
    %v1214 = vpack.c.b16 %v1203, %v1202
    %v1215 = vpack.c.b16 %v1205, %v1204
    %v1216 = vpack.c.b16 %v1207, %v1206
    %v1217 = vpack.c.b16 %v1209, %v1208
    %v1219 = vsel %vm323, %v1210, 0
    %v1222 = vsel %vm323, %v1211, 0
    %v1225 = vsel %vm323, %v1212, 0
    %v1228 = vsel %vm323, %v1213, 0
    %v1231 = vsel %vm323, %v1214, 0
    %v1234 = vsel %vm323, %v1215, 0
    %v1237 = vsel %vm323, %v1216, 0
    %v1240 = vsel %vm323, %v1217, 0
    %1242 = vmatpush.bf16.xpose.msra.mxu0 %v756
    %1243 = vmatpush.bf16.xpose.msra.mxu0 %v753
    %1244 = vmatpush.bf16.xpose.msra.mxu0 %v750
    %1245 = vmatpush.bf16.xpose.msra.mxu0 %v747
    %1246 = vmatpush.bf16.xpose.msra.mxu0 %v744
    %1247 = vmatpush.bf16.xpose.msra.mxu0 %v741
    %1248 = vmatpush.bf16.xpose.msra.mxu0 %v738
    %1249 = vmatpush.bf16.xpose.msra.mxu0 %v735
    %1250 = vmatmul.bf16.gmra.mxu0 %v1219
    %v1251 = vpop.f32.mrf.mxu0
    %v1252 = vadd.f32 %v580, %v1251
    %v1253 = vpop.f32.mrf.mxu0
    %v1254 = vadd.f32 %v581, %v1253
    %1255 = vmatmul.bf16.gmra.mxu0 %v1222
    %v1256 = vpop.f32.mrf.mxu0
    %v1257 = vadd.f32 %v582, %v1256
    %v1258 = vpop.f32.mrf.mxu0
    %v1259 = vadd.f32 %v583, %v1258
    %1260 = vmatmul.bf16.gmra.mxu0 %v1225
    %v1261 = vpop.f32.mrf.mxu0
    %v1262 = vadd.f32 %v584, %v1261
    %v1263 = vpop.f32.mrf.mxu0
    %v1264 = vadd.f32 %v585, %v1263
    %1265 = vmatmul.bf16.gmra.mxu0 %v1228
    %v1266 = vpop.f32.mrf.mxu0
    %v1267 = vadd.f32 %v586, %v1266
    %v1268 = vpop.f32.mrf.mxu0
    %v1269 = vadd.f32 %v587, %v1268
    %1270 = vmatmul.bf16.gmra.mxu0 %v1231
    %v1271 = vpop.f32.mrf.mxu0
    %v1272 = vadd.f32 %v588, %v1271
    %v1273 = vpop.f32.mrf.mxu0
    %v1274 = vadd.f32 %v589, %v1273
    %1275 = vmatmul.bf16.gmra.mxu0 %v1234
    %v1276 = vpop.f32.mrf.mxu0
    %v1277 = vadd.f32 %v590, %v1276
    %v1278 = vpop.f32.mrf.mxu0
    %v1279 = vadd.f32 %v591, %v1278
    %1280 = vmatmul.bf16.gmra.mxu0 %v1237
    %v1281 = vpop.f32.mrf.mxu0
    %v1282 = vadd.f32 %v592, %v1281
    %v1283 = vpop.f32.mrf.mxu0
    %v1284 = vadd.f32 %v593, %v1283
    %1285 = vmatmul.bf16.gmra.mxu0 %v1240
    %v1286 = vpop.f32.mrf.mxu0
    %v1287 = vadd.f32 %v594, %v1286
    %v1288 = vpop.f32.mrf.mxu0
    %v1289 = vadd.f32 %v595, %v1288
    %1290 = vdwg.mxu0
    %1291 = vmax.xlane.f32.xlu0 %v1252
    %v1292 = vpop.xlane.xlu0 %1291
    %1293 = vmax.xlane.f32.xlu0 %v1254
    %v1294 = vpop.xlane.xlu0 %1293
    %1295 = vmax.xlane.f32.xlu0 %v1257
    %v1296 = vpop.xlane.xlu0 %1295
    %1297 = vmax.xlane.f32.xlu0 %v1259
    %v1298 = vpop.xlane.xlu0 %1297
    %1299 = vmax.xlane.f32.xlu0 %v1262
    %v1300 = vpop.xlane.xlu0 %1299
    %1301 = vmax.xlane.f32.xlu0 %v1264
    %v1302 = vpop.xlane.xlu0 %1301
    %1303 = vmax.xlane.f32.xlu0 %v1267
    %v1304 = vpop.xlane.xlu0 %1303
    %1305 = vmax.xlane.f32.xlu0 %v1269
    %v1306 = vpop.xlane.xlu0 %1305
    %1307 = vmax.xlane.f32.xlu0 %v1272
    %v1308 = vpop.xlane.xlu0 %1307
    %1309 = vmax.xlane.f32.xlu0 %v1274
    %v1310 = vpop.xlane.xlu0 %1309
    %1311 = vmax.xlane.f32.xlu0 %v1277
    %v1312 = vpop.xlane.xlu0 %1311
    %1313 = vmax.xlane.f32.xlu0 %v1279
    %v1314 = vpop.xlane.xlu0 %1313
    %1315 = vmax.xlane.f32.xlu0 %v1282
    %v1316 = vpop.xlane.xlu0 %1315
    %1317 = vmax.xlane.f32.xlu0 %v1284
    %v1318 = vpop.xlane.xlu0 %1317
    %1319 = vmax.xlane.f32.xlu0 %v1287
    %v1320 = vpop.xlane.xlu0 %1319
    %1321 = vmax.xlane.f32.xlu0 %v1289
    %v1322 = vpop.xlane.xlu0 %1321
    %v1323 = vsub.f32 %v1252, %v1292
    %v1324 = vsub.f32 %v1254, %v1294
    %v1325 = vsub.f32 %v1257, %v1296
    %v1326 = vsub.f32 %v1259, %v1298
    %v1327 = vsub.f32 %v1262, %v1300
    %v1328 = vsub.f32 %v1264, %v1302
    %v1329 = vsub.f32 %v1267, %v1304
    %v1330 = vsub.f32 %v1269, %v1306
    %v1331 = vsub.f32 %v1272, %v1308
    %v1332 = vsub.f32 %v1274, %v1310
    %v1333 = vsub.f32 %v1277, %v1312
    %v1334 = vsub.f32 %v1279, %v1314
    %v1335 = vsub.f32 %v1282, %v1316
    %v1336 = vsub.f32 %v1284, %v1318
    %v1337 = vsub.f32 %v1287, %v1320
    %v1338 = vsub.f32 %v1289, %v1322
    %v1339 = vmul.f32 %v1323, 1.442695
    %v1340 = vpow.pop %v1339
    %v1341 = vmul.f32 %v1324, 1.442695
    %v1342 = vpow.pop %v1341
    %v1343 = vmul.f32 %v1325, 1.442695
    %v1344 = vpow.pop %v1343
    %v1345 = vmul.f32 %v1326, 1.442695
    %v1346 = vpow.pop %v1345
    %v1347 = vmul.f32 %v1327, 1.442695
    %v1348 = vpow.pop %v1347
    %v1349 = vmul.f32 %v1328, 1.442695
    %v1350 = vpow.pop %v1349
    %v1351 = vmul.f32 %v1329, 1.442695
    %v1352 = vpow.pop %v1351
    %v1353 = vmul.f32 %v1330, 1.442695
    %v1354 = vpow.pop %v1353
    %v1355 = vmul.f32 %v1331, 1.442695
    %v1356 = vpow.pop %v1355
    %v1357 = vmul.f32 %v1332, 1.442695
    %v1358 = vpow.pop %v1357
    %v1359 = vmul.f32 %v1333, 1.442695
    %v1360 = vpow.pop %v1359
    %v1361 = vmul.f32 %v1334, 1.442695
    %v1362 = vpow.pop %v1361
    %v1363 = vmul.f32 %v1335, 1.442695
    %v1364 = vpow.pop %v1363
    %v1365 = vmul.f32 %v1336, 1.442695
    %v1366 = vpow.pop %v1365
    %v1367 = vmul.f32 %v1337, 1.442695
    %v1368 = vpow.pop %v1367
    %v1369 = vmul.f32 %v1338, 1.442695
    %v1370 = vpow.pop %v1369
    %1371 = vadd.xlane.f32.xlu0 %v1340
    %v1372 = vpop.xlane.xlu0 %1371
    %1373 = vadd.xlane.f32.xlu0 %v1342
    %v1374 = vpop.xlane.xlu0 %1373
    %1375 = vadd.xlane.f32.xlu0 %v1344
    %v1376 = vpop.xlane.xlu0 %1375
    %1377 = vadd.xlane.f32.xlu0 %v1346
    %v1378 = vpop.xlane.xlu0 %1377
    %1379 = vadd.xlane.f32.xlu0 %v1348
    %v1380 = vpop.xlane.xlu0 %1379
    %1381 = vadd.xlane.f32.xlu0 %v1350
    %v1382 = vpop.xlane.xlu0 %1381
    %1383 = vadd.xlane.f32.xlu0 %v1352
    %v1384 = vpop.xlane.xlu0 %1383
    %1385 = vadd.xlane.f32.xlu0 %v1354
    %v1386 = vpop.xlane.xlu0 %1385
    %1387 = vadd.xlane.f32.xlu0 %v1356
    %v1388 = vpop.xlane.xlu0 %1387
    %1389 = vadd.xlane.f32.xlu0 %v1358
    %v1390 = vpop.xlane.xlu0 %1389
    %1391 = vadd.xlane.f32.xlu0 %v1360
    %v1392 = vpop.xlane.xlu0 %1391
    %1393 = vadd.xlane.f32.xlu0 %v1362
    %v1394 = vpop.xlane.xlu0 %1393
    %1395 = vadd.xlane.f32.xlu0 %v1364
    %v1396 = vpop.xlane.xlu0 %1395
    %1397 = vadd.xlane.f32.xlu0 %v1366
    %v1398 = vpop.xlane.xlu0 %1397
    %1399 = vadd.xlane.f32.xlu0 %v1368
    %v1400 = vpop.xlane.xlu0 %1399
    %1401 = vadd.xlane.f32.xlu0 %v1370
    %v1402 = vpop.xlane.xlu0 %1401
    %v1403 = vrcp.pop %v1372
    %v1404 = vrcp.pop %v1374
    %v1405 = vrcp.pop %v1376
    %v1406 = vrcp.pop %v1378
    %v1407 = vrcp.pop %v1380
    %v1408 = vrcp.pop %v1382
    %v1409 = vrcp.pop %v1384
    %v1410 = vrcp.pop %v1386
    %v1411 = vrcp.pop %v1388
    %v1412 = vrcp.pop %v1390
    %v1413 = vrcp.pop %v1392
    %v1414 = vrcp.pop %v1394
    %v1415 = vrcp.pop %v1396
    %v1416 = vrcp.pop %v1398
    %v1417 = vrcp.pop %v1400
    %v1418 = vrcp.pop %v1402
    %v1419 = vpack.c.bf16 %v1340, %v1340
    %v1420 = vpack.c.bf16 %v1342, %v1342
    %v1421 = vpack.c.bf16 %v1344, %v1344
    %v1422 = vpack.c.bf16 %v1346, %v1346
    %v1423 = vpack.c.bf16 %v1348, %v1348
    %v1424 = vpack.c.bf16 %v1350, %v1350
    %v1425 = vpack.c.bf16 %v1352, %v1352
    %v1426 = vpack.c.bf16 %v1354, %v1354
    %v1427 = vpack.c.bf16 %v1356, %v1356
    %v1428 = vpack.c.bf16 %v1358, %v1358
    %v1429 = vpack.c.bf16 %v1360, %v1360
    %v1430 = vpack.c.bf16 %v1362, %v1362
    %v1431 = vpack.c.bf16 %v1364, %v1364
    %v1432 = vpack.c.bf16 %v1366, %v1366
    %v1433 = vpack.c.bf16 %v1368, %v1368
    %v1434 = vpack.c.bf16 %v1370, %v1370
    %v1451 = vunpack.c.l.b16 %v1419
    %v1452 = vunpack.c.l.b16 %v1420
    %v1453 = vunpack.c.l.b16 %v1421
    %v1454 = vunpack.c.l.b16 %v1422
    %v1455 = vunpack.c.l.b16 %v1423
    %v1456 = vunpack.c.l.b16 %v1424
    %v1457 = vunpack.c.l.b16 %v1425
    %v1458 = vunpack.c.l.b16 %v1426
    %v1459 = vunpack.c.l.b16 %v1427
    %v1460 = vunpack.c.l.b16 %v1428
    %v1461 = vunpack.c.l.b16 %v1429
    %v1462 = vunpack.c.l.b16 %v1430
    %v1463 = vunpack.c.l.b16 %v1431
    %v1464 = vunpack.c.l.b16 %v1432
    %v1465 = vunpack.c.l.b16 %v1433
    %v1466 = vunpack.c.l.b16 %v1434
    %v1467 = vpack.c.b16 %v1452, %v1451
    %v1468 = vpack.c.b16 %v1454, %v1453
    %v1469 = vpack.c.b16 %v1456, %v1455
    %v1470 = vpack.c.b16 %v1458, %v1457
    %v1471 = vpack.c.b16 %v1460, %v1459
    %v1472 = vpack.c.b16 %v1462, %v1461
    %v1473 = vpack.c.b16 %v1464, %v1463
    %v1474 = vpack.c.b16 %v1466, %v1465
    %1483 = vmatpush.bf16.msra.mxu0 %v1038
    %1484 = vmatpush.bf16.msra.mxu0 %v1037
    %1485 = vmatpush.bf16.msra.mxu0 %v1036
    %1486 = vmatpush.bf16.msra.mxu0 %v1035
    %1487 = vmatpush.bf16.msra.mxu0 %v1034
    %1488 = vmatpush.bf16.msra.mxu0 %v1033
    %1489 = vmatpush.bf16.msra.mxu0 %v1032
    %1490 = vmatpush.bf16.msra.mxu0 %v1031
    %1491 = vmatmul.bf16.gmra.mxu0 %v1467
    %v1492 = vpop.f32.mrf.mxu0
    %v1493 = vadd.f32 0.0, %v1492
    %v1494 = vpop.f32.mrf.mxu0
    %v1495 = vadd.f32 0.0, %v1494
    %1496 = vmatmul.bf16.gmra.mxu0 %v1468
    %v1497 = vpop.f32.mrf.mxu0
    %v1498 = vadd.f32 0.0, %v1497
    %v1499 = vpop.f32.mrf.mxu0
    %v1500 = vadd.f32 0.0, %v1499
    %1501 = vmatmul.bf16.gmra.mxu0 %v1469
    %v1502 = vpop.f32.mrf.mxu0
    %v1503 = vadd.f32 0.0, %v1502
    %v1504 = vpop.f32.mrf.mxu0
    %v1505 = vadd.f32 0.0, %v1504
    %1506 = vmatmul.bf16.gmra.mxu0 %v1470
    %v1507 = vpop.f32.mrf.mxu0
    %v1508 = vadd.f32 0.0, %v1507
    %v1509 = vpop.f32.mrf.mxu0
    %v1510 = vadd.f32 0.0, %v1509
    %1511 = vmatmul.bf16.gmra.mxu0 %v1471
    %v1512 = vpop.f32.mrf.mxu0
    %v1513 = vadd.f32 0.0, %v1512
    %v1514 = vpop.f32.mrf.mxu0
    %v1515 = vadd.f32 0.0, %v1514
    %1516 = vmatmul.bf16.gmra.mxu0 %v1472
    %v1517 = vpop.f32.mrf.mxu0
    %v1518 = vadd.f32 0.0, %v1517
    %v1519 = vpop.f32.mrf.mxu0
    %v1520 = vadd.f32 0.0, %v1519
    %1521 = vmatmul.bf16.gmra.mxu0 %v1473
    %v1522 = vpop.f32.mrf.mxu0
    %v1523 = vadd.f32 0.0, %v1522
    %v1524 = vpop.f32.mrf.mxu0
    %v1525 = vadd.f32 0.0, %v1524
    %1526 = vmatmul.bf16.gmra.mxu0 %v1474
    %v1527 = vpop.f32.mrf.mxu0
    %v1528 = vadd.f32 0.0, %v1527
    %v1529 = vpop.f32.mrf.mxu0
    %v1530 = vadd.f32 0.0, %v1529
    %1531 = vdwg.mxu0
    %v1532 = vmul.f32 %v1403, %v1145
    %v1533 = vmul.f32 %v1404, %v1145
    %v1534 = vmul.f32 %v1405, %v1145
    %v1535 = vmul.f32 %v1406, %v1145
    %v1536 = vmul.f32 %v1407, %v1145
    %v1537 = vmul.f32 %v1408, %v1145
    %v1538 = vmul.f32 %v1409, %v1145
    %v1539 = vmul.f32 %v1410, %v1145
    %v1540 = vmul.f32 %v1411, %v1145
    %v1541 = vmul.f32 %v1412, %v1145
    %v1542 = vmul.f32 %v1413, %v1145
    %v1543 = vmul.f32 %v1414, %v1145
    %v1544 = vmul.f32 %v1415, %v1145
    %v1545 = vmul.f32 %v1416, %v1145
    %v1546 = vmul.f32 %v1417, %v1145
    %v1547 = vmul.f32 %v1418, %v1145
    %v1548 = vmul.f32 %v1493, %v1532
    %v1549 = vmul.f32 %v1495, %v1533
    %v1550 = vmul.f32 %v1498, %v1534
    %v1551 = vmul.f32 %v1500, %v1535
    %v1552 = vmul.f32 %v1503, %v1536
    %v1553 = vmul.f32 %v1505, %v1537
    %v1554 = vmul.f32 %v1508, %v1538
    %v1555 = vmul.f32 %v1510, %v1539
    %v1556 = vmul.f32 %v1513, %v1540
    %v1557 = vmul.f32 %v1515, %v1541
    %v1558 = vmul.f32 %v1518, %v1542
    %v1559 = vmul.f32 %v1520, %v1543
    %v1560 = vmul.f32 %v1523, %v1544
    %v1561 = vmul.f32 %v1525, %v1545
    %v1562 = vmul.f32 %v1528, %v1546
    %v1563 = vmul.f32 %v1530, %v1547
    %v1564 = vadd.f32 %v1128, %v1548
    %v1565 = vadd.f32 %v1129, %v1549
    %v1566 = vadd.f32 %v1130, %v1550
    %v1567 = vadd.f32 %v1131, %v1551
    %v1568 = vadd.f32 %v1132, %v1552
    %v1569 = vadd.f32 %v1133, %v1553
    %v1570 = vadd.f32 %v1134, %v1554
    %v1571 = vadd.f32 %v1135, %v1555
    %v1572 = vadd.f32 %v1136, %v1556
    %v1573 = vadd.f32 %v1137, %v1557
    %v1574 = vadd.f32 %v1138, %v1558
    %v1575 = vadd.f32 %v1139, %v1559
    %v1576 = vadd.f32 %v1140, %v1560
    %v1577 = vadd.f32 %v1141, %v1561
    %v1578 = vadd.f32 %v1142, %v1562
    %v1579 = vadd.f32 %v1143, %v1563
    %v1580 = vld [vmem:[#allocation13 + $0x2] sm:$0x1]
    %v1581 = vperm.slane %v1580, 0
    %v1582 = vmul.f32 %v358, %v1581
    %v1583 = vmul.f32 %v360, %v1581
    %v1584 = vmul.f32 %v363, %v1581
    %v1585 = vmul.f32 %v365, %v1581
    %v1586 = vmul.f32 %v368, %v1581
    %v1587 = vmul.f32 %v370, %v1581
    %v1588 = vmul.f32 %v373, %v1581
    %v1589 = vmul.f32 %v375, %v1581
    %v1590 = vmul.f32 %v378, %v1581
    %v1591 = vmul.f32 %v380, %v1581
    %v1592 = vmul.f32 %v383, %v1581
    %v1593 = vmul.f32 %v385, %v1581
    %v1594 = vmul.f32 %v388, %v1581
    %v1595 = vmul.f32 %v390, %v1581
    %v1596 = vmul.f32 %v393, %v1581
    %v1597 = vmul.f32 %v395, %v1581
    %v1598 = vpack.c.bf16 %v1582, %v1582
    %v1599 = vpack.c.bf16 %v1583, %v1583
    %v1600 = vpack.c.bf16 %v1584, %v1584
    %v1601 = vpack.c.bf16 %v1585, %v1585
    %v1602 = vpack.c.bf16 %v1586, %v1586
    %v1603 = vpack.c.bf16 %v1587, %v1587
    %v1604 = vpack.c.bf16 %v1588, %v1588
    %v1605 = vpack.c.bf16 %v1589, %v1589
    %v1606 = vpack.c.bf16 %v1590, %v1590
    %v1607 = vpack.c.bf16 %v1591, %v1591
    %v1608 = vpack.c.bf16 %v1592, %v1592
    %v1609 = vpack.c.bf16 %v1593, %v1593
    %v1610 = vpack.c.bf16 %v1594, %v1594
    %v1611 = vpack.c.bf16 %v1595, %v1595
    %v1612 = vpack.c.bf16 %v1596, %v1596
    %v1613 = vpack.c.bf16 %v1597, %v1597
    %v1630 = vunpack.c.l.b16 %v1598
    %v1631 = vunpack.c.l.b16 %v1599
    %v1632 = vunpack.c.l.b16 %v1600
    %v1633 = vunpack.c.l.b16 %v1601
    %v1634 = vunpack.c.l.b16 %v1602
    %v1635 = vunpack.c.l.b16 %v1603
    %v1636 = vunpack.c.l.b16 %v1604
    %v1637 = vunpack.c.l.b16 %v1605
    %v1638 = vunpack.c.l.b16 %v1606
    %v1639 = vunpack.c.l.b16 %v1607
    %v1640 = vunpack.c.l.b16 %v1608
    %v1641 = vunpack.c.l.b16 %v1609
    %v1642 = vunpack.c.l.b16 %v1610
    %v1643 = vunpack.c.l.b16 %v1611
    %v1644 = vunpack.c.l.b16 %v1612
    %v1645 = vunpack.c.l.b16 %v1613
    %v1646 = vpack.c.b16 %v1631, %v1630
    %v1647 = vpack.c.b16 %v1633, %v1632
    %v1648 = vpack.c.b16 %v1635, %v1634
    %v1649 = vpack.c.b16 %v1637, %v1636
    %v1650 = vpack.c.b16 %v1639, %v1638
    %v1651 = vpack.c.b16 %v1641, %v1640
    %v1652 = vpack.c.b16 %v1643, %v1642
    %v1653 = vpack.c.b16 %v1645, %v1644
    %v1655 = vsel %vm323, %v1646, 0
    %v1658 = vsel %vm323, %v1647, 0
    %v1661 = vsel %vm323, %v1648, 0
    %v1664 = vsel %vm323, %v1649, 0
    %v1667 = vsel %vm323, %v1650, 0
    %v1670 = vsel %vm323, %v1651, 0
    %v1673 = vsel %vm323, %v1652, 0
    %v1676 = vsel %vm323, %v1653, 0
    %1678 = vmatpush.bf16.xpose.msra.mxu0 %v756
    %1679 = vmatpush.bf16.xpose.msra.mxu0 %v753
    %1680 = vmatpush.bf16.xpose.msra.mxu0 %v750
    %1681 = vmatpush.bf16.xpose.msra.mxu0 %v747
    %1682 = vmatpush.bf16.xpose.msra.mxu0 %v744
    %1683 = vmatpush.bf16.xpose.msra.mxu0 %v741
    %1684 = vmatpush.bf16.xpose.msra.mxu0 %v738
    %1685 = vmatpush.bf16.xpose.msra.mxu0 %v735
    %1686 = vmatmul.bf16.gmra.mxu0 %v1655
    %v1687 = vpop.f32.mrf.mxu0
    %v1688 = vadd.f32 %v580, %v1687
    %v1689 = vpop.f32.mrf.mxu0
    %v1690 = vadd.f32 %v581, %v1689
    %1691 = vmatmul.bf16.gmra.mxu0 %v1658
    %v1692 = vpop.f32.mrf.mxu0
    %v1693 = vadd.f32 %v582, %v1692
    %v1694 = vpop.f32.mrf.mxu0
    %v1695 = vadd.f32 %v583, %v1694
    %1696 = vmatmul.bf16.gmra.mxu0 %v1661
    %v1697 = vpop.f32.mrf.mxu0
    %v1698 = vadd.f32 %v584, %v1697
    %v1699 = vpop.f32.mrf.mxu0
    %v1700 = vadd.f32 %v585, %v1699
    %1701 = vmatmul.bf16.gmra.mxu0 %v1664
    %v1702 = vpop.f32.mrf.mxu0
    %v1703 = vadd.f32 %v586, %v1702
    %v1704 = vpop.f32.mrf.mxu0
    %v1705 = vadd.f32 %v587, %v1704
    %1706 = vmatmul.bf16.gmra.mxu0 %v1667
    %v1707 = vpop.f32.mrf.mxu0
    %v1708 = vadd.f32 %v588, %v1707
    %v1709 = vpop.f32.mrf.mxu0
    %v1710 = vadd.f32 %v589, %v1709
    %1711 = vmatmul.bf16.gmra.mxu0 %v1670
    %v1712 = vpop.f32.mrf.mxu0
    %v1713 = vadd.f32 %v590, %v1712
    %v1714 = vpop.f32.mrf.mxu0
    %v1715 = vadd.f32 %v591, %v1714
    %1716 = vmatmul.bf16.gmra.mxu0 %v1673
    %v1717 = vpop.f32.mrf.mxu0
    %v1718 = vadd.f32 %v592, %v1717
    %v1719 = vpop.f32.mrf.mxu0
    %v1720 = vadd.f32 %v593, %v1719
    %1721 = vmatmul.bf16.gmra.mxu0 %v1676
    %v1722 = vpop.f32.mrf.mxu0
    %v1723 = vadd.f32 %v594, %v1722
    %v1724 = vpop.f32.mrf.mxu0
    %v1725 = vadd.f32 %v595, %v1724
    %1726 = vdwg.mxu0
    %1727 = vmax.xlane.f32.xlu0 %v1688
    %v1728 = vpop.xlane.xlu0 %1727
    %1729 = vmax.xlane.f32.xlu0 %v1690
    %v1730 = vpop.xlane.xlu0 %1729
    %1731 = vmax.xlane.f32.xlu0 %v1693
    %v1732 = vpop.xlane.xlu0 %1731
    %1733 = vmax.xlane.f32.xlu0 %v1695
    %v1734 = vpop.xlane.xlu0 %1733
    %1735 = vmax.xlane.f32.xlu0 %v1698
    %v1736 = vpop.xlane.xlu0 %1735
    %1737 = vmax.xlane.f32.xlu0 %v1700
    %v1738 = vpop.xlane.xlu0 %1737
    %1739 = vmax.xlane.f32.xlu0 %v1703
    %v1740 = vpop.xlane.xlu0 %1739
    %1741 = vmax.xlane.f32.xlu0 %v1705
    %v1742 = vpop.xlane.xlu0 %1741
    %1743 = vmax.xlane.f32.xlu0 %v1708
    %v1744 = vpop.xlane.xlu0 %1743
    %1745 = vmax.xlane.f32.xlu0 %v1710
    %v1746 = vpop.xlane.xlu0 %1745
    %1747 = vmax.xlane.f32.xlu0 %v1713
    %v1748 = vpop.xlane.xlu0 %1747
    %1749 = vmax.xlane.f32.xlu0 %v1715
    %v1750 = vpop.xlane.xlu0 %1749
    %1751 = vmax.xlane.f32.xlu0 %v1718
    %v1752 = vpop.xlane.xlu0 %1751
    %1753 = vmax.xlane.f32.xlu0 %v1720
    %v1754 = vpop.xlane.xlu0 %1753
    %1755 = vmax.xlane.f32.xlu0 %v1723
    %v1756 = vpop.xlane.xlu0 %1755
    %1757 = vmax.xlane.f32.xlu0 %v1725
    %v1758 = vpop.xlane.xlu0 %1757
    %v1759 = vsub.f32 %v1688, %v1728
    %v1760 = vsub.f32 %v1690, %v1730
    %v1761 = vsub.f32 %v1693, %v1732
    %v1762 = vsub.f32 %v1695, %v1734
    %v1763 = vsub.f32 %v1698, %v1736
    %v1764 = vsub.f32 %v1700, %v1738
    %v1765 = vsub.f32 %v1703, %v1740
    %v1766 = vsub.f32 %v1705, %v1742
    %v1767 = vsub.f32 %v1708, %v1744
    %v1768 = vsub.f32 %v1710, %v1746
    %v1769 = vsub.f32 %v1713, %v1748
    %v1770 = vsub.f32 %v1715, %v1750
    %v1771 = vsub.f32 %v1718, %v1752
    %v1772 = vsub.f32 %v1720, %v1754
    %v1773 = vsub.f32 %v1723, %v1756
    %v1774 = vsub.f32 %v1725, %v1758
    %v1775 = vmul.f32 %v1759, 1.442695
    %v1776 = vpow.pop %v1775
    %v1777 = vmul.f32 %v1760, 1.442695
    %v1778 = vpow.pop %v1777
    %v1779 = vmul.f32 %v1761, 1.442695
    %v1780 = vpow.pop %v1779
    %v1781 = vmul.f32 %v1762, 1.442695
    %v1782 = vpow.pop %v1781
    %v1783 = vmul.f32 %v1763, 1.442695
    %v1784 = vpow.pop %v1783
    %v1785 = vmul.f32 %v1764, 1.442695
    %v1786 = vpow.pop %v1785
    %v1787 = vmul.f32 %v1765, 1.442695
    %v1788 = vpow.pop %v1787
    %v1789 = vmul.f32 %v1766, 1.442695
    %v1790 = vpow.pop %v1789
    %v1791 = vmul.f32 %v1767, 1.442695
    %v1792 = vpow.pop %v1791
    %v1793 = vmul.f32 %v1768, 1.442695
    %v1794 = vpow.pop %v1793
    %v1795 = vmul.f32 %v1769, 1.442695
    %v1796 = vpow.pop %v1795
    %v1797 = vmul.f32 %v1770, 1.442695
    %v1798 = vpow.pop %v1797
    %v1799 = vmul.f32 %v1771, 1.442695
    %v1800 = vpow.pop %v1799
    %v1801 = vmul.f32 %v1772, 1.442695
    %v1802 = vpow.pop %v1801
    %v1803 = vmul.f32 %v1773, 1.442695
    %v1804 = vpow.pop %v1803
    %v1805 = vmul.f32 %v1774, 1.442695
    %v1806 = vpow.pop %v1805
    %1807 = vadd.xlane.f32.xlu0 %v1776
    %v1808 = vpop.xlane.xlu0 %1807
    %1809 = vadd.xlane.f32.xlu0 %v1778
    %v1810 = vpop.xlane.xlu0 %1809
    %1811 = vadd.xlane.f32.xlu0 %v1780
    %v1812 = vpop.xlane.xlu0 %1811
    %1813 = vadd.xlane.f32.xlu0 %v1782
    %v1814 = vpop.xlane.xlu0 %1813
    %1815 = vadd.xlane.f32.xlu0 %v1784
    %v1816 = vpop.xlane.xlu0 %1815
    %1817 = vadd.xlane.f32.xlu0 %v1786
    %v1818 = vpop.xlane.xlu0 %1817
    %1819 = vadd.xlane.f32.xlu0 %v1788
    %v1820 = vpop.xlane.xlu0 %1819
    %1821 = vadd.xlane.f32.xlu0 %v1790
    %v1822 = vpop.xlane.xlu0 %1821
    %1823 = vadd.xlane.f32.xlu0 %v1792
    %v1824 = vpop.xlane.xlu0 %1823
    %1825 = vadd.xlane.f32.xlu0 %v1794
    %v1826 = vpop.xlane.xlu0 %1825
    %1827 = vadd.xlane.f32.xlu0 %v1796
    %v1828 = vpop.xlane.xlu0 %1827
    %1829 = vadd.xlane.f32.xlu0 %v1798
    %v1830 = vpop.xlane.xlu0 %1829
    %1831 = vadd.xlane.f32.xlu0 %v1800
    %v1832 = vpop.xlane.xlu0 %1831
    %1833 = vadd.xlane.f32.xlu0 %v1802
    %v1834 = vpop.xlane.xlu0 %1833
    %1835 = vadd.xlane.f32.xlu0 %v1804
    %v1836 = vpop.xlane.xlu0 %1835
    %1837 = vadd.xlane.f32.xlu0 %v1806
    %v1838 = vpop.xlane.xlu0 %1837
    %v1839 = vrcp.pop %v1808
    %v1840 = vrcp.pop %v1810
    %v1841 = vrcp.pop %v1812
    %v1842 = vrcp.pop %v1814
    %v1843 = vrcp.pop %v1816
    %v1844 = vrcp.pop %v1818
    %v1845 = vrcp.pop %v1820
    %v1846 = vrcp.pop %v1822
    %v1847 = vrcp.pop %v1824
    %v1848 = vrcp.pop %v1826
    %v1849 = vrcp.pop %v1828
    %v1850 = vrcp.pop %v1830
    %v1851 = vrcp.pop %v1832
    %v1852 = vrcp.pop %v1834
    %v1853 = vrcp.pop %v1836
    %v1854 = vrcp.pop %v1838
    %v1855 = vpack.c.bf16 %v1776, %v1776
    %v1856 = vpack.c.bf16 %v1778, %v1778
    %v1857 = vpack.c.bf16 %v1780, %v1780
    %v1858 = vpack.c.bf16 %v1782, %v1782
    %v1859 = vpack.c.bf16 %v1784, %v1784
    %v1860 = vpack.c.bf16 %v1786, %v1786
    %v1861 = vpack.c.bf16 %v1788, %v1788
    %v1862 = vpack.c.bf16 %v1790, %v1790
    %v1863 = vpack.c.bf16 %v1792, %v1792
    %v1864 = vpack.c.bf16 %v1794, %v1794
    %v1865 = vpack.c.bf16 %v1796, %v1796
    %v1866 = vpack.c.bf16 %v1798, %v1798
    %v1867 = vpack.c.bf16 %v1800, %v1800
    %v1868 = vpack.c.bf16 %v1802, %v1802
    %v1869 = vpack.c.bf16 %v1804, %v1804
    %v1870 = vpack.c.bf16 %v1806, %v1806
    %v1887 = vunpack.c.l.b16 %v1855
    %v1888 = vunpack.c.l.b16 %v1856
    %v1889 = vunpack.c.l.b16 %v1857
    %v1890 = vunpack.c.l.b16 %v1858
    %v1891 = vunpack.c.l.b16 %v1859
    %v1892 = vunpack.c.l.b16 %v1860
    %v1893 = vunpack.c.l.b16 %v1861
    %v1894 = vunpack.c.l.b16 %v1862
    %v1895 = vunpack.c.l.b16 %v1863
    %v1896 = vunpack.c.l.b16 %v1864
    %v1897 = vunpack.c.l.b16 %v1865
    %v1898 = vunpack.c.l.b16 %v1866
    %v1899 = vunpack.c.l.b16 %v1867
    %v1900 = vunpack.c.l.b16 %v1868
    %v1901 = vunpack.c.l.b16 %v1869
    %v1902 = vunpack.c.l.b16 %v1870
    %v1903 = vpack.c.b16 %v1888, %v1887
    %v1904 = vpack.c.b16 %v1890, %v1889
    %v1905 = vpack.c.b16 %v1892, %v1891
    %v1906 = vpack.c.b16 %v1894, %v1893
    %v1907 = vpack.c.b16 %v1896, %v1895
    %v1908 = vpack.c.b16 %v1898, %v1897
    %v1909 = vpack.c.b16 %v1900, %v1899
    %v1910 = vpack.c.b16 %v1902, %v1901
    %1919 = vmatpush.bf16.msra.mxu0 %v1038
    %1920 = vmatpush.bf16.msra.mxu0 %v1037
    %1921 = vmatpush.bf16.msra.mxu0 %v1036
    %1922 = vmatpush.bf16.msra.mxu0 %v1035
    %1923 = vmatpush.bf16.msra.mxu0 %v1034
    %1924 = vmatpush.bf16.msra.mxu0 %v1033
    %1925 = vmatpush.bf16.msra.mxu0 %v1032
    %1926 = vmatpush.bf16.msra.mxu0 %v1031
    %1927 = vmatmul.bf16.gmra.mxu0 %v1903
    %v1928 = vpop.f32.mrf.mxu0
    %v1929 = vadd.f32 0.0, %v1928
    %v1930 = vpop.f32.mrf.mxu0
    %v1931 = vadd.f32 0.0, %v1930
    %1932 = vmatmul.bf16.gmra.mxu0 %v1904
    %v1933 = vpop.f32.mrf.mxu0
    %v1934 = vadd.f32 0.0, %v1933
    %v1935 = vpop.f32.mrf.mxu0
    %v1936 = vadd.f32 0.0, %v1935
    %1937 = vmatmul.bf16.gmra.mxu0 %v1905
    %v1938 = vpop.f32.mrf.mxu0
    %v1939 = vadd.f32 0.0, %v1938
    %v1940 = vpop.f32.mrf.mxu0
    %v1941 = vadd.f32 0.0, %v1940
    %1942 = vmatmul.bf16.gmra.mxu0 %v1906
    %v1943 = vpop.f32.mrf.mxu0
    %v1944 = vadd.f32 0.0, %v1943
    %v1945 = vpop.f32.mrf.mxu0
    %v1946 = vadd.f32 0.0, %v1945
    %1947 = vmatmul.bf16.gmra.mxu0 %v1907
    %v1948 = vpop.f32.mrf.mxu0
    %v1949 = vadd.f32 0.0, %v1948
    %v1950 = vpop.f32.mrf.mxu0
    %v1951 = vadd.f32 0.0, %v1950
    %1952 = vmatmul.bf16.gmra.mxu0 %v1908
    %v1953 = vpop.f32.mrf.mxu0
    %v1954 = vadd.f32 0.0, %v1953
    %v1955 = vpop.f32.mrf.mxu0
    %v1956 = vadd.f32 0.0, %v1955
    %1957 = vmatmul.bf16.gmra.mxu0 %v1909
    %v1958 = vpop.f32.mrf.mxu0
    %v1959 = vadd.f32 0.0, %v1958
    %v1960 = vpop.f32.mrf.mxu0
    %v1961 = vadd.f32 0.0, %v1960
    %1962 = vmatmul.bf16.gmra.mxu0 %v1910
    %v1963 = vpop.f32.mrf.mxu0
    %v1964 = vadd.f32 0.0, %v1963
    %v1965 = vpop.f32.mrf.mxu0
    %v1966 = vadd.f32 0.0, %v1965
    %1967 = vdwg.mxu0
    %v1968 = vmul.f32 %v1839, %v1581
    %v1969 = vmul.f32 %v1840, %v1581
    %v1970 = vmul.f32 %v1841, %v1581
    %v1971 = vmul.f32 %v1842, %v1581
    %v1972 = vmul.f32 %v1843, %v1581
    %v1973 = vmul.f32 %v1844, %v1581
    %v1974 = vmul.f32 %v1845, %v1581
    %v1975 = vmul.f32 %v1846, %v1581
    %v1976 = vmul.f32 %v1847, %v1581
    %v1977 = vmul.f32 %v1848, %v1581
    %v1978 = vmul.f32 %v1849, %v1581
    %v1979 = vmul.f32 %v1850, %v1581
    %v1980 = vmul.f32 %v1851, %v1581
    %v1981 = vmul.f32 %v1852, %v1581
    %v1982 = vmul.f32 %v1853, %v1581
    %v1983 = vmul.f32 %v1854, %v1581
    %v1984 = vmul.f32 %v1929, %v1968
    %v1985 = vmul.f32 %v1931, %v1969
    %v1986 = vmul.f32 %v1934, %v1970
    %v1987 = vmul.f32 %v1936, %v1971
    %v1988 = vmul.f32 %v1939, %v1972
    %v1989 = vmul.f32 %v1941, %v1973
    %v1990 = vmul.f32 %v1944, %v1974
    %v1991 = vmul.f32 %v1946, %v1975
    %v1992 = vmul.f32 %v1949, %v1976
    %v1993 = vmul.f32 %v1951, %v1977
    %v1994 = vmul.f32 %v1954, %v1978
    %v1995 = vmul.f32 %v1956, %v1979
    %v1996 = vmul.f32 %v1959, %v1980
    %v1997 = vmul.f32 %v1961, %v1981
    %v1998 = vmul.f32 %v1964, %v1982
    %v1999 = vmul.f32 %v1966, %v1983
    %v2000 = vadd.f32 %v1564, %v1984
    %v2001 = vadd.f32 %v1565, %v1985
    %v2002 = vadd.f32 %v1566, %v1986
    %v2003 = vadd.f32 %v1567, %v1987
    %v2004 = vadd.f32 %v1568, %v1988
    %v2005 = vadd.f32 %v1569, %v1989
    %v2006 = vadd.f32 %v1570, %v1990
    %v2007 = vadd.f32 %v1571, %v1991
    %v2008 = vadd.f32 %v1572, %v1992
    %v2009 = vadd.f32 %v1573, %v1993
    %v2010 = vadd.f32 %v1574, %v1994
    %v2011 = vadd.f32 %v1575, %v1995
    %v2012 = vadd.f32 %v1576, %v1996
    %v2013 = vadd.f32 %v1577, %v1997
    %v2014 = vadd.f32 %v1578, %v1998
    %v2015 = vadd.f32 %v1579, %v1999
    %v2016 = vld [vmem:[#allocation13 + $0x3] sm:$0x1]
    %v2017 = vperm.slane %v2016, 0
    %v2018 = vmul.f32 %v358, %v2017
    %v2019 = vmul.f32 %v360, %v2017
    %v2020 = vmul.f32 %v363, %v2017
    %v2021 = vmul.f32 %v365, %v2017
    %v2022 = vmul.f32 %v368, %v2017
    %v2023 = vmul.f32 %v370, %v2017
    %v2024 = vmul.f32 %v373, %v2017
    %v2025 = vmul.f32 %v375, %v2017
    %v2026 = vmul.f32 %v378, %v2017
    %v2027 = vmul.f32 %v380, %v2017
    %v2028 = vmul.f32 %v383, %v2017
    %v2029 = vmul.f32 %v385, %v2017
    %v2030 = vmul.f32 %v388, %v2017
    %v2031 = vmul.f32 %v390, %v2017
    %v2032 = vmul.f32 %v393, %v2017
    %v2033 = vmul.f32 %v395, %v2017
    %v2034 = vpack.c.bf16 %v2018, %v2018
    %v2035 = vpack.c.bf16 %v2019, %v2019
    %v2036 = vpack.c.bf16 %v2020, %v2020
    %v2037 = vpack.c.bf16 %v2021, %v2021
    %v2038 = vpack.c.bf16 %v2022, %v2022
    %v2039 = vpack.c.bf16 %v2023, %v2023
    %v2040 = vpack.c.bf16 %v2024, %v2024
    %v2041 = vpack.c.bf16 %v2025, %v2025
    %v2042 = vpack.c.bf16 %v2026, %v2026
    %v2043 = vpack.c.bf16 %v2027, %v2027
    %v2044 = vpack.c.bf16 %v2028, %v2028
    %v2045 = vpack.c.bf16 %v2029, %v2029
    %v2046 = vpack.c.bf16 %v2030, %v2030
    %v2047 = vpack.c.bf16 %v2031, %v2031
    %v2048 = vpack.c.bf16 %v2032, %v2032
    %v2049 = vpack.c.bf16 %v2033, %v2033
    %v2066 = vunpack.c.l.b16 %v2034
    %v2067 = vunpack.c.l.b16 %v2035
    %v2068 = vunpack.c.l.b16 %v2036
    %v2069 = vunpack.c.l.b16 %v2037
    %v2070 = vunpack.c.l.b16 %v2038
    %v2071 = vunpack.c.l.b16 %v2039
    %v2072 = vunpack.c.l.b16 %v2040
    %v2073 = vunpack.c.l.b16 %v2041
    %v2074 = vunpack.c.l.b16 %v2042
    %v2075 = vunpack.c.l.b16 %v2043
    %v2076 = vunpack.c.l.b16 %v2044
    %v2077 = vunpack.c.l.b16 %v2045
    %v2078 = vunpack.c.l.b16 %v2046
    %v2079 = vunpack.c.l.b16 %v2047
    %v2080 = vunpack.c.l.b16 %v2048
    %v2081 = vunpack.c.l.b16 %v2049
    %v2082 = vpack.c.b16 %v2067, %v2066
    %v2083 = vpack.c.b16 %v2069, %v2068
    %v2084 = vpack.c.b16 %v2071, %v2070
    %v2085 = vpack.c.b16 %v2073, %v2072
    %v2086 = vpack.c.b16 %v2075, %v2074
    %v2087 = vpack.c.b16 %v2077, %v2076
    %v2088 = vpack.c.b16 %v2079, %v2078
    %v2089 = vpack.c.b16 %v2081, %v2080
    %v2091 = vsel %vm323, %v2082, 0
    %v2094 = vsel %vm323, %v2083, 0
    %v2097 = vsel %vm323, %v2084, 0
    %v2100 = vsel %vm323, %v2085, 0
    %v2103 = vsel %vm323, %v2086, 0
    %v2106 = vsel %vm323, %v2087, 0
    %v2109 = vsel %vm323, %v2088, 0
    %v2112 = vsel %vm323, %v2089, 0
    %2114 = vmatpush.bf16.xpose.msra.mxu0 %v756
    %2115 = vmatpush.bf16.xpose.msra.mxu0 %v753
    %2116 = vmatpush.bf16.xpose.msra.mxu0 %v750
    %2117 = vmatpush.bf16.xpose.msra.mxu0 %v747
    %2118 = vmatpush.bf16.xpose.msra.mxu0 %v744
    %2119 = vmatpush.bf16.xpose.msra.mxu0 %v741
    %2120 = vmatpush.bf16.xpose.msra.mxu0 %v738
    %2121 = vmatpush.bf16.xpose.msra.mxu0 %v735
    %2122 = vmatmul.bf16.gmra.mxu0 %v2091
    %v2123 = vpop.f32.mrf.mxu0
    %v2124 = vadd.f32 %v580, %v2123
    %v2125 = vpop.f32.mrf.mxu0
    %v2126 = vadd.f32 %v581, %v2125
    %2127 = vmatmul.bf16.gmra.mxu0 %v2094
    %v2128 = vpop.f32.mrf.mxu0
    %v2129 = vadd.f32 %v582, %v2128
    %v2130 = vpop.f32.mrf.mxu0
    %v2131 = vadd.f32 %v583, %v2130
    %2132 = vmatmul.bf16.gmra.mxu0 %v2097
    %v2133 = vpop.f32.mrf.mxu0
    %v2134 = vadd.f32 %v584, %v2133
    %v2135 = vpop.f32.mrf.mxu0
    %v2136 = vadd.f32 %v585, %v2135
    %2137 = vmatmul.bf16.gmra.mxu0 %v2100
    %v2138 = vpop.f32.mrf.mxu0
    %v2139 = vadd.f32 %v586, %v2138
    %v2140 = vpop.f32.mrf.mxu0
    %v2141 = vadd.f32 %v587, %v2140
    %2142 = vmatmul.bf16.gmra.mxu0 %v2103
    %v2143 = vpop.f32.mrf.mxu0
    %v2144 = vadd.f32 %v588, %v2143
    %v2145 = vpop.f32.mrf.mxu0
    %v2146 = vadd.f32 %v589, %v2145
    %2147 = vmatmul.bf16.gmra.mxu0 %v2106
    %v2148 = vpop.f32.mrf.mxu0
    %v2149 = vadd.f32 %v590, %v2148
    %v2150 = vpop.f32.mrf.mxu0
    %v2151 = vadd.f32 %v591, %v2150
    %2152 = vmatmul.bf16.gmra.mxu0 %v2109
    %v2153 = vpop.f32.mrf.mxu0
    %v2154 = vadd.f32 %v592, %v2153
    %v2155 = vpop.f32.mrf.mxu0
    %v2156 = vadd.f32 %v593, %v2155
    %2157 = vmatmul.bf16.gmra.mxu0 %v2112
    %v2158 = vpop.f32.mrf.mxu0
    %v2159 = vadd.f32 %v594, %v2158
    %v2160 = vpop.f32.mrf.mxu0
    %v2161 = vadd.f32 %v595, %v2160
    %2162 = vdwg.mxu0
    %2163 = vmax.xlane.f32.xlu0 %v2124
    %v2164 = vpop.xlane.xlu0 %2163
    %2165 = vmax.xlane.f32.xlu0 %v2126
    %v2166 = vpop.xlane.xlu0 %2165
    %2167 = vmax.xlane.f32.xlu0 %v2129
    %v2168 = vpop.xlane.xlu0 %2167
    %2169 = vmax.xlane.f32.xlu0 %v2131
    %v2170 = vpop.xlane.xlu0 %2169
    %2171 = vmax.xlane.f32.xlu0 %v2134
    %v2172 = vpop.xlane.xlu0 %2171
    %2173 = vmax.xlane.f32.xlu0 %v2136
    %v2174 = vpop.xlane.xlu0 %2173
    %2175 = vmax.xlane.f32.xlu0 %v2139
    %v2176 = vpop.xlane.xlu0 %2175
    %2177 = vmax.xlane.f32.xlu0 %v2141
    %v2178 = vpop.xlane.xlu0 %2177
    %2179 = vmax.xlane.f32.xlu0 %v2144
    %v2180 = vpop.xlane.xlu0 %2179
    %2181 = vmax.xlane.f32.xlu0 %v2146
    %v2182 = vpop.xlane.xlu0 %2181
    %2183 = vmax.xlane.f32.xlu0 %v2149
    %v2184 = vpop.xlane.xlu0 %2183
    %2185 = vmax.xlane.f32.xlu0 %v2151
    %v2186 = vpop.xlane.xlu0 %2185
    %2187 = vmax.xlane.f32.xlu0 %v2154
    %v2188 = vpop.xlane.xlu0 %2187
    %2189 = vmax.xlane.f32.xlu0 %v2156
    %v2190 = vpop.xlane.xlu0 %2189
    %2191 = vmax.xlane.f32.xlu0 %v2159
    %v2192 = vpop.xlane.xlu0 %2191
    %2193 = vmax.xlane.f32.xlu0 %v2161
    %v2194 = vpop.xlane.xlu0 %2193
    %v2195 = vsub.f32 %v2124, %v2164
    %v2196 = vsub.f32 %v2126, %v2166
    %v2197 = vsub.f32 %v2129, %v2168
    %v2198 = vsub.f32 %v2131, %v2170
    %v2199 = vsub.f32 %v2134, %v2172
    %v2200 = vsub.f32 %v2136, %v2174
    %v2201 = vsub.f32 %v2139, %v2176
    %v2202 = vsub.f32 %v2141, %v2178
    %v2203 = vsub.f32 %v2144, %v2180
    %v2204 = vsub.f32 %v2146, %v2182
    %v2205 = vsub.f32 %v2149, %v2184
    %v2206 = vsub.f32 %v2151, %v2186
    %v2207 = vsub.f32 %v2154, %v2188
    %v2208 = vsub.f32 %v2156, %v2190
    %v2209 = vsub.f32 %v2159, %v2192
    %v2210 = vsub.f32 %v2161, %v2194
    %v2211 = vmul.f32 %v2195, 1.442695
    %v2212 = vpow.pop %v2211
    %v2213 = vmul.f32 %v2196, 1.442695
    %v2214 = vpow.pop %v2213
    %v2215 = vmul.f32 %v2197, 1.442695
    %v2216 = vpow.pop %v2215
    %v2217 = vmul.f32 %v2198, 1.442695
    %v2218 = vpow.pop %v2217
    %v2219 = vmul.f32 %v2199, 1.442695
    %v2220 = vpow.pop %v2219
    %v2221 = vmul.f32 %v2200, 1.442695
    %v2222 = vpow.pop %v2221
    %v2223 = vmul.f32 %v2201, 1.442695
    %v2224 = vpow.pop %v2223
    %v2225 = vmul.f32 %v2202, 1.442695
    %v2226 = vpow.pop %v2225
    %v2227 = vmul.f32 %v2203, 1.442695
    %v2228 = vpow.pop %v2227
    %v2229 = vmul.f32 %v2204, 1.442695
    %v2230 = vpow.pop %v2229
    %v2231 = vmul.f32 %v2205, 1.442695
    %v2232 = vpow.pop %v2231
    %v2233 = vmul.f32 %v2206, 1.442695
    %v2234 = vpow.pop %v2233
    %v2235 = vmul.f32 %v2207, 1.442695
    %v2236 = vpow.pop %v2235
    %v2237 = vmul.f32 %v2208, 1.442695
    %v2238 = vpow.pop %v2237
    %v2239 = vmul.f32 %v2209, 1.442695
    %v2240 = vpow.pop %v2239
    %v2241 = vmul.f32 %v2210, 1.442695
    %v2242 = vpow.pop %v2241
    %2243 = vadd.xlane.f32.xlu0 %v2212
    %v2244 = vpop.xlane.xlu0 %2243
    %2245 = vadd.xlane.f32.xlu0 %v2214
    %v2246 = vpop.xlane.xlu0 %2245
    %2247 = vadd.xlane.f32.xlu0 %v2216
    %v2248 = vpop.xlane.xlu0 %2247
    %2249 = vadd.xlane.f32.xlu0 %v2218
    %v2250 = vpop.xlane.xlu0 %2249
    %2251 = vadd.xlane.f32.xlu0 %v2220
    %v2252 = vpop.xlane.xlu0 %2251
    %2253 = vadd.xlane.f32.xlu0 %v2222
    %v2254 = vpop.xlane.xlu0 %2253
    %2255 = vadd.xlane.f32.xlu0 %v2224
    %v2256 = vpop.xlane.xlu0 %2255
    %2257 = vadd.xlane.f32.xlu0 %v2226
    %v2258 = vpop.xlane.xlu0 %2257
    %2259 = vadd.xlane.f32.xlu0 %v2228
    %v2260 = vpop.xlane.xlu0 %2259
    %2261 = vadd.xlane.f32.xlu0 %v2230
    %v2262 = vpop.xlane.xlu0 %2261
    %2263 = vadd.xlane.f32.xlu0 %v2232
    %v2264 = vpop.xlane.xlu0 %2263
    %2265 = vadd.xlane.f32.xlu0 %v2234
    %v2266 = vpop.xlane.xlu0 %2265
    %2267 = vadd.xlane.f32.xlu0 %v2236
    %v2268 = vpop.xlane.xlu0 %2267
    %2269 = vadd.xlane.f32.xlu0 %v2238
    %v2270 = vpop.xlane.xlu0 %2269
    %2271 = vadd.xlane.f32.xlu0 %v2240
    %v2272 = vpop.xlane.xlu0 %2271
    %2273 = vadd.xlane.f32.xlu0 %v2242
    %v2274 = vpop.xlane.xlu0 %2273
    %v2275 = vrcp.pop %v2244
    %v2276 = vrcp.pop %v2246
    %v2277 = vrcp.pop %v2248
    %v2278 = vrcp.pop %v2250
    %v2279 = vrcp.pop %v2252
    %v2280 = vrcp.pop %v2254
    %v2281 = vrcp.pop %v2256
    %v2282 = vrcp.pop %v2258
    %v2283 = vrcp.pop %v2260
    %v2284 = vrcp.pop %v2262
    %v2285 = vrcp.pop %v2264
    %v2286 = vrcp.pop %v2266
    %v2287 = vrcp.pop %v2268
    %v2288 = vrcp.pop %v2270
    %v2289 = vrcp.pop %v2272
    %v2290 = vrcp.pop %v2274
    %v2291 = vpack.c.bf16 %v2212, %v2212
    %v2292 = vpack.c.bf16 %v2214, %v2214
    %v2293 = vpack.c.bf16 %v2216, %v2216
    %v2294 = vpack.c.bf16 %v2218, %v2218
    %v2295 = vpack.c.bf16 %v2220, %v2220
    %v2296 = vpack.c.bf16 %v2222, %v2222
    %v2297 = vpack.c.bf16 %v2224, %v2224
    %v2298 = vpack.c.bf16 %v2226, %v2226
    %v2299 = vpack.c.bf16 %v2228, %v2228
    %v2300 = vpack.c.bf16 %v2230, %v2230
    %v2301 = vpack.c.bf16 %v2232, %v2232
    %v2302 = vpack.c.bf16 %v2234, %v2234
    %v2303 = vpack.c.bf16 %v2236, %v2236
    %v2304 = vpack.c.bf16 %v2238, %v2238
    %v2305 = vpack.c.bf16 %v2240, %v2240
    %v2306 = vpack.c.bf16 %v2242, %v2242
    %v2323 = vunpack.c.l.b16 %v2291
    %v2324 = vunpack.c.l.b16 %v2292
    %v2325 = vunpack.c.l.b16 %v2293
    %v2326 = vunpack.c.l.b16 %v2294
    %v2327 = vunpack.c.l.b16 %v2295
    %v2328 = vunpack.c.l.b16 %v2296
    %v2329 = vunpack.c.l.b16 %v2297
    %v2330 = vunpack.c.l.b16 %v2298
    %v2331 = vunpack.c.l.b16 %v2299
    %v2332 = vunpack.c.l.b16 %v2300
    %v2333 = vunpack.c.l.b16 %v2301
    %v2334 = vunpack.c.l.b16 %v2302
    %v2335 = vunpack.c.l.b16 %v2303
    %v2336 = vunpack.c.l.b16 %v2304
    %v2337 = vunpack.c.l.b16 %v2305
    %v2338 = vunpack.c.l.b16 %v2306
    %v2339 = vpack.c.b16 %v2324, %v2323
    %v2340 = vpack.c.b16 %v2326, %v2325
    %v2341 = vpack.c.b16 %v2328, %v2327
    %v2342 = vpack.c.b16 %v2330, %v2329
    %v2343 = vpack.c.b16 %v2332, %v2331
    %v2344 = vpack.c.b16 %v2334, %v2333
    %v2345 = vpack.c.b16 %v2336, %v2335
    %v2346 = vpack.c.b16 %v2338, %v2337
    %2355 = vmatpush.bf16.msra.mxu0 %v1038
    %2356 = vmatpush.bf16.msra.mxu0 %v1037
    %2357 = vmatpush.bf16.msra.mxu0 %v1036
    %2358 = vmatpush.bf16.msra.mxu0 %v1035
    %2359 = vmatpush.bf16.msra.mxu0 %v1034
    %2360 = vmatpush.bf16.msra.mxu0 %v1033
    %2361 = vmatpush.bf16.msra.mxu0 %v1032
    %2362 = vmatpush.bf16.msra.mxu0 %v1031
    %2363 = vmatmul.bf16.gmra.mxu0 %v2339
    %v2364 = vpop.f32.mrf.mxu0
    %v2365 = vadd.f32 0.0, %v2364
    %v2366 = vpop.f32.mrf.mxu0
    %v2367 = vadd.f32 0.0, %v2366
    %2368 = vmatmul.bf16.gmra.mxu0 %v2340
    %v2369 = vpop.f32.mrf.mxu0
    %v2370 = vadd.f32 0.0, %v2369
    %v2371 = vpop.f32.mrf.mxu0
    %v2372 = vadd.f32 0.0, %v2371
    %2373 = vmatmul.bf16.gmra.mxu0 %v2341
    %v2374 = vpop.f32.mrf.mxu0
    %v2375 = vadd.f32 0.0, %v2374
    %v2376 = vpop.f32.mrf.mxu0
    %v2377 = vadd.f32 0.0, %v2376
    %2378 = vmatmul.bf16.gmra.mxu0 %v2342
    %v2379 = vpop.f32.mrf.mxu0
    %v2380 = vadd.f32 0.0, %v2379
    %v2381 = vpop.f32.mrf.mxu0
    %v2382 = vadd.f32 0.0, %v2381
    %2383 = vmatmul.bf16.gmra.mxu0 %v2343
    %v2384 = vpop.f32.mrf.mxu0
    %v2385 = vadd.f32 0.0, %v2384
    %v2386 = vpop.f32.mrf.mxu0
    %v2387 = vadd.f32 0.0, %v2386
    %2388 = vmatmul.bf16.gmra.mxu0 %v2344
    %v2389 = vpop.f32.mrf.mxu0
    %v2390 = vadd.f32 0.0, %v2389
    %v2391 = vpop.f32.mrf.mxu0
    %v2392 = vadd.f32 0.0, %v2391
    %2393 = vmatmul.bf16.gmra.mxu0 %v2345
    %v2394 = vpop.f32.mrf.mxu0
    %v2395 = vadd.f32 0.0, %v2394
    %v2396 = vpop.f32.mrf.mxu0
    %v2397 = vadd.f32 0.0, %v2396
    %2398 = vmatmul.bf16.gmra.mxu0 %v2346
    %v2399 = vpop.f32.mrf.mxu0
    %v2400 = vadd.f32 0.0, %v2399
    %v2401 = vpop.f32.mrf.mxu0
    %v2402 = vadd.f32 0.0, %v2401
    %2403 = vdwg.mxu0
    %v2404 = vmul.f32 %v2275, %v2017
    %v2405 = vmul.f32 %v2276, %v2017
    %v2406 = vmul.f32 %v2277, %v2017
    %v2407 = vmul.f32 %v2278, %v2017
    %v2408 = vmul.f32 %v2279, %v2017
    %v2409 = vmul.f32 %v2280, %v2017
    %v2410 = vmul.f32 %v2281, %v2017
    %v2411 = vmul.f32 %v2282, %v2017
    %v2412 = vmul.f32 %v2283, %v2017
    %v2413 = vmul.f32 %v2284, %v2017
    %v2414 = vmul.f32 %v2285, %v2017
    %v2415 = vmul.f32 %v2286, %v2017
    %v2416 = vmul.f32 %v2287, %v2017
    %v2417 = vmul.f32 %v2288, %v2017
    %v2418 = vmul.f32 %v2289, %v2017
    %v2419 = vmul.f32 %v2290, %v2017
    %v2420 = vmul.f32 %v2365, %v2404
    %v2421 = vmul.f32 %v2367, %v2405
    %v2422 = vmul.f32 %v2370, %v2406
    %v2423 = vmul.f32 %v2372, %v2407
    %v2424 = vmul.f32 %v2375, %v2408
    %v2425 = vmul.f32 %v2377, %v2409
    %v2426 = vmul.f32 %v2380, %v2410
    %v2427 = vmul.f32 %v2382, %v2411
    %v2428 = vmul.f32 %v2385, %v2412
    %v2429 = vmul.f32 %v2387, %v2413
    %v2430 = vmul.f32 %v2390, %v2414
    %v2431 = vmul.f32 %v2392, %v2415
    %v2432 = vmul.f32 %v2395, %v2416
    %v2433 = vmul.f32 %v2397, %v2417
    %v2434 = vmul.f32 %v2400, %v2418
    %v2435 = vmul.f32 %v2402, %v2419
    %v2436 = vadd.f32 %v2000, %v2420
    %v2437 = vadd.f32 %v2001, %v2421
    %v2438 = vadd.f32 %v2002, %v2422
    %v2439 = vadd.f32 %v2003, %v2423
    %v2440 = vadd.f32 %v2004, %v2424
    %v2441 = vadd.f32 %v2005, %v2425
    %v2442 = vadd.f32 %v2006, %v2426
    %v2443 = vadd.f32 %v2007, %v2427
    %v2444 = vadd.f32 %v2008, %v2428
    %v2445 = vadd.f32 %v2009, %v2429
    %v2446 = vadd.f32 %v2010, %v2430
    %v2447 = vadd.f32 %v2011, %v2431
    %v2448 = vadd.f32 %v2012, %v2432
    %v2449 = vadd.f32 %v2013, %v2433
    %v2450 = vadd.f32 %v2014, %v2434
    %v2451 = vadd.f32 %v2015, %v2435
    %v2452 = vpack.c.bf16 %v2437, %v2436
    %v2453 = vpack.c.bf16 %v2439, %v2438
    %v2454 = vpack.c.bf16 %v2441, %v2440
    %v2455 = vpack.c.bf16 %v2443, %v2442
    %v2456 = vpack.c.bf16 %v2445, %v2444
    %v2457 = vpack.c.bf16 %v2447, %v2446
    %v2458 = vpack.c.bf16 %v2449, %v2448
    %v2459 = vpack.c.bf16 %v2451, %v2450
    %v2460 = vld [vmem:[%s9] sm:$0xf]
    %v2461 = vld [vmem:[%s9 + $0x4] sm:$0xf]
    %v2462 = vld [vmem:[%s9 + $0x8] sm:$0xf]
    %v2463 = vld [vmem:[%s9 + $0xc] sm:$0xf]
    %v2464 = vperm.slane %v149, 2
    %v2469 = vunpack.c.l.b16 %v2460
    %v2470 = vunpack.c.l.b16 %v2461
    %v2471 = vunpack.c.l.b16 %v2462
    %v2472 = vunpack.c.l.b16 %v2463
    %v2473 = vpack.c.b16 %v2470, %v2469
    %v2474 = vpack.c.b16 %v2472, %v2471
    %v2478 = vsel %vm323, %v2452, 0
    %v2481 = vsel %vm323, %v2453, 0
    %v2484 = vsel %vm323, %v2454, 0
    %v2487 = vsel %vm323, %v2455, 0
    %v2490 = vsel %vm323, %v2456, 0
    %v2493 = vsel %vm323, %v2457, 0
    %v2496 = vsel %vm323, %v2458, 0
    %v2499 = vsel %vm323, %v2459, 0
    %2501 = vmatpush.bf16.msra.mxu0 0
    %2502 = vmatpush.bf16.msra.mxu0 0
    %2503 = vmatpush.bf16.msra.mxu0 0
    %2504 = vmatpush.bf16.msra.mxu0 0
    %2505 = vmatpush.bf16.msra.mxu0 0
    %2506 = vmatpush.bf16.msra.mxu0 0
    %2507 = vmatpush.bf16.msra.mxu0 %v2474
    %2508 = vmatpush.bf16.msra.mxu0 %v2473
    %2509 = vmatmul.bf16.gmra.mxu0 %v2478
    %v2510 = vpop.f32.mrf.mxu0
    %v2511 = vadd.f32 %v2464, %v2510
    %v2512 = vpop.f32.mrf.mxu0
    %v2513 = vadd.f32 %v2464, %v2512
    %2514 = vmatmul.bf16.gmra.mxu0 %v2481
    %v2515 = vpop.f32.mrf.mxu0
    %v2516 = vadd.f32 %v2464, %v2515
    %v2517 = vpop.f32.mrf.mxu0
    %v2518 = vadd.f32 %v2464, %v2517
    %2519 = vmatmul.bf16.gmra.mxu0 %v2484
    %v2520 = vpop.f32.mrf.mxu0
    %v2521 = vadd.f32 %v2464, %v2520
    %v2522 = vpop.f32.mrf.mxu0
    %v2523 = vadd.f32 %v2464, %v2522
    %2524 = vmatmul.bf16.gmra.mxu0 %v2487
    %v2525 = vpop.f32.mrf.mxu0
    %v2526 = vadd.f32 %v2464, %v2525
    %v2527 = vpop.f32.mrf.mxu0
    %v2528 = vadd.f32 %v2464, %v2527
    %2529 = vmatmul.bf16.gmra.mxu0 %v2490
    %v2530 = vpop.f32.mrf.mxu0
    %v2531 = vadd.f32 %v2464, %v2530
    %v2532 = vpop.f32.mrf.mxu0
    %v2533 = vadd.f32 %v2464, %v2532
    %2534 = vmatmul.bf16.gmra.mxu0 %v2493
    %v2535 = vpop.f32.mrf.mxu0
    %v2536 = vadd.f32 %v2464, %v2535
    %v2537 = vpop.f32.mrf.mxu0
    %v2538 = vadd.f32 %v2464, %v2537
    %2539 = vmatmul.bf16.gmra.mxu0 %v2496
    %v2540 = vpop.f32.mrf.mxu0
    %v2541 = vadd.f32 %v2464, %v2540
    %v2542 = vpop.f32.mrf.mxu0
    %v2543 = vadd.f32 %v2464, %v2542
    %2544 = vmatmul.bf16.gmra.mxu0 %v2499
    %v2545 = vpop.f32.mrf.mxu0
    %v2546 = vadd.f32 %v2464, %v2545
    %v2547 = vpop.f32.mrf.mxu0
    %v2548 = vadd.f32 %v2464, %v2547
    %2549 = vdwg.mxu0
    %v2550 = vadd.f32 %v282, %v2511
    %v2551 = vadd.f32 %v283, %v2513
    %v2552 = vadd.f32 %v284, %v2516
    %v2553 = vadd.f32 %v285, %v2518
    %v2554 = vadd.f32 %v286, %v2521
    %v2555 = vadd.f32 %v287, %v2523
    %v2556 = vadd.f32 %v288, %v2526
    %v2557 = vadd.f32 %v289, %v2528
    %v2558 = vadd.f32 %v290, %v2531
    %v2559 = vadd.f32 %v291, %v2533
    %v2560 = vadd.f32 %v292, %v2536
    %v2561 = vadd.f32 %v293, %v2538
    %v2562 = vadd.f32 %v294, %v2541
    %v2563 = vadd.f32 %v295, %v2543
    %v2564 = vadd.f32 %v296, %v2546
    %v2565 = vadd.f32 %v297, %v2548
    %v2566 = vsel %vm323, %v2550, 0.0
    %2567 = vadd.xlane.f32.xlu0 %v2566
    %v2568 = vpop.xlane.xlu0 %2567
    %v2569 = vsel %vm323, %v2551, 0.0
    %2570 = vadd.xlane.f32.xlu0 %v2569
    %v2571 = vpop.xlane.xlu0 %2570
    %v2572 = vsel %vm323, %v2552, 0.0
    %2573 = vadd.xlane.f32.xlu0 %v2572
    %v2574 = vpop.xlane.xlu0 %2573
    %v2575 = vsel %vm323, %v2553, 0.0
    %2576 = vadd.xlane.f32.xlu0 %v2575
    %v2577 = vpop.xlane.xlu0 %2576
    %v2578 = vsel %vm323, %v2554, 0.0
    %2579 = vadd.xlane.f32.xlu0 %v2578
    %v2580 = vpop.xlane.xlu0 %2579
    %v2581 = vsel %vm323, %v2555, 0.0
    %2582 = vadd.xlane.f32.xlu0 %v2581
    %v2583 = vpop.xlane.xlu0 %2582
    %v2584 = vsel %vm323, %v2556, 0.0
    %2585 = vadd.xlane.f32.xlu0 %v2584
    %v2586 = vpop.xlane.xlu0 %2585
    %v2587 = vsel %vm323, %v2557, 0.0
    %2588 = vadd.xlane.f32.xlu0 %v2587
    %v2589 = vpop.xlane.xlu0 %2588
    %v2590 = vsel %vm323, %v2558, 0.0
    %2591 = vadd.xlane.f32.xlu0 %v2590
    %v2592 = vpop.xlane.xlu0 %2591
    %v2593 = vsel %vm323, %v2559, 0.0
    %2594 = vadd.xlane.f32.xlu0 %v2593
    %v2595 = vpop.xlane.xlu0 %2594
    %v2596 = vsel %vm323, %v2560, 0.0
    %2597 = vadd.xlane.f32.xlu0 %v2596
    %v2598 = vpop.xlane.xlu0 %2597
    %v2599 = vsel %vm323, %v2561, 0.0
    %2600 = vadd.xlane.f32.xlu0 %v2599
    %v2601 = vpop.xlane.xlu0 %2600
    %v2602 = vsel %vm323, %v2562, 0.0
    %2603 = vadd.xlane.f32.xlu0 %v2602
    %v2604 = vpop.xlane.xlu0 %2603
    %v2605 = vsel %vm323, %v2563, 0.0
    %2606 = vadd.xlane.f32.xlu0 %v2605
    %v2607 = vpop.xlane.xlu0 %2606
    %v2608 = vsel %vm323, %v2564, 0.0
    %2609 = vadd.xlane.f32.xlu0 %v2608
    %v2610 = vpop.xlane.xlu0 %2609
    %v2611 = vsel %vm323, %v2565, 0.0
    %2612 = vadd.xlane.f32.xlu0 %v2611
    %v2613 = vpop.xlane.xlu0 %2612
    %v2614 = vrcp.pop 32.0
    %v2615 = vmul.f32 32.0, %v2614
    %v2616 = vsub.f32 1.0, %v2615
    %v2617 = vmul.f32 %v2614, %v2616
    %v2618 = vadd.f32 %v2614, %v2617
    %vm2619 = vweird.f32 %v2614
    %v2620 = vsel %vm2619, %v2614, %v2618
    %v2621 = vmul.f32 %v2568, %v2620
    %v2622 = vmul.f32 %v2571, %v2620
    %v2623 = vmul.f32 %v2574, %v2620
    %v2624 = vmul.f32 %v2577, %v2620
    %v2625 = vmul.f32 %v2580, %v2620
    %v2626 = vmul.f32 %v2583, %v2620
    %v2627 = vmul.f32 %v2586, %v2620
    %v2628 = vmul.f32 %v2589, %v2620
    %v2629 = vmul.f32 %v2592, %v2620
    %v2630 = vmul.f32 %v2595, %v2620
    %v2631 = vmul.f32 %v2598, %v2620
    %v2632 = vmul.f32 %v2601, %v2620
    %v2633 = vmul.f32 %v2604, %v2620
    %v2634 = vmul.f32 %v2607, %v2620
    %v2635 = vmul.f32 %v2610, %v2620
    %v2636 = vmul.f32 %v2613, %v2620
    %v2637 = vmul.f32 %v2550, %v2550
    %v2638 = vmul.f32 %v2551, %v2551
    %v2639 = vmul.f32 %v2552, %v2552
    %v2640 = vmul.f32 %v2553, %v2553
    %v2641 = vmul.f32 %v2554, %v2554
    %v2642 = vmul.f32 %v2555, %v2555
    %v2643 = vmul.f32 %v2556, %v2556
    %v2644 = vmul.f32 %v2557, %v2557
    %v2645 = vmul.f32 %v2558, %v2558
    %v2646 = vmul.f32 %v2559, %v2559
    %v2647 = vmul.f32 %v2560, %v2560
    %v2648 = vmul.f32 %v2561, %v2561
    %v2649 = vmul.f32 %v2562, %v2562
    %v2650 = vmul.f32 %v2563, %v2563
    %v2651 = vmul.f32 %v2564, %v2564
    %v2652 = vmul.f32 %v2565, %v2565
    %v2653 = vsel %vm323, %v2637, 0.0
    %2654 = vadd.xlane.f32.xlu0 %v2653
    %v2655 = vpop.xlane.xlu0 %2654
    %v2656 = vsel %vm323, %v2638, 0.0
    %2657 = vadd.xlane.f32.xlu0 %v2656
    %v2658 = vpop.xlane.xlu0 %2657
    %v2659 = vsel %vm323, %v2639, 0.0
    %2660 = vadd.xlane.f32.xlu0 %v2659
    %v2661 = vpop.xlane.xlu0 %2660
    %v2662 = vsel %vm323, %v2640, 0.0
    %2663 = vadd.xlane.f32.xlu0 %v2662
    %v2664 = vpop.xlane.xlu0 %2663
    %v2665 = vsel %vm323, %v2641, 0.0
    %2666 = vadd.xlane.f32.xlu0 %v2665
    %v2667 = vpop.xlane.xlu0 %2666
    %v2668 = vsel %vm323, %v2642, 0.0
    %2669 = vadd.xlane.f32.xlu0 %v2668
    %v2670 = vpop.xlane.xlu0 %2669
    %v2671 = vsel %vm323, %v2643, 0.0
    %2672 = vadd.xlane.f32.xlu0 %v2671
    %v2673 = vpop.xlane.xlu0 %2672
    %v2674 = vsel %vm323, %v2644, 0.0
    %2675 = vadd.xlane.f32.xlu0 %v2674
    %v2676 = vpop.xlane.xlu0 %2675
    %v2677 = vsel %vm323, %v2645, 0.0
    %2678 = vadd.xlane.f32.xlu0 %v2677
    %v2679 = vpop.xlane.xlu0 %2678
    %v2680 = vsel %vm323, %v2646, 0.0
    %2681 = vadd.xlane.f32.xlu0 %v2680
    %v2682 = vpop.xlane.xlu0 %2681
    %v2683 = vsel %vm323, %v2647, 0.0
    %2684 = vadd.xlane.f32.xlu0 %v2683
    %v2685 = vpop.xlane.xlu0 %2684
    %v2686 = vsel %vm323, %v2648, 0.0
    %2687 = vadd.xlane.f32.xlu0 %v2686
    %v2688 = vpop.xlane.xlu0 %2687
    %v2689 = vsel %vm323, %v2649, 0.0
    %2690 = vadd.xlane.f32.xlu0 %v2689
    %v2691 = vpop.xlane.xlu0 %2690
    %v2692 = vsel %vm323, %v2650, 0.0
    %2693 = vadd.xlane.f32.xlu0 %v2692
    %v2694 = vpop.xlane.xlu0 %2693
    %v2695 = vsel %vm323, %v2651, 0.0
    %2696 = vadd.xlane.f32.xlu0 %v2695
    %v2697 = vpop.xlane.xlu0 %2696
    %v2698 = vsel %vm323, %v2652, 0.0
    %2699 = vadd.xlane.f32.xlu0 %v2698
    %v2700 = vpop.xlane.xlu0 %2699
    %v2701 = vmul.f32 %v2655, %v2620
    %v2702 = vmul.f32 %v2658, %v2620
    %v2703 = vmul.f32 %v2661, %v2620
    %v2704 = vmul.f32 %v2664, %v2620
    %v2705 = vmul.f32 %v2667, %v2620
    %v2706 = vmul.f32 %v2670, %v2620
    %v2707 = vmul.f32 %v2673, %v2620
    %v2708 = vmul.f32 %v2676, %v2620
    %v2709 = vmul.f32 %v2679, %v2620
    %v2710 = vmul.f32 %v2682, %v2620
    %v2711 = vmul.f32 %v2685, %v2620
    %v2712 = vmul.f32 %v2688, %v2620
    %v2713 = vmul.f32 %v2691, %v2620
    %v2714 = vmul.f32 %v2694, %v2620
    %v2715 = vmul.f32 %v2697, %v2620
    %v2716 = vmul.f32 %v2700, %v2620
    %v2717 = vsub.f32 %v2550, %v2621
    %v2718 = vsub.f32 %v2551, %v2622
    %v2719 = vsub.f32 %v2552, %v2623
    %v2720 = vsub.f32 %v2553, %v2624
    %v2721 = vsub.f32 %v2554, %v2625
    %v2722 = vsub.f32 %v2555, %v2626
    %v2723 = vsub.f32 %v2556, %v2627
    %v2724 = vsub.f32 %v2557, %v2628
    %v2725 = vsub.f32 %v2558, %v2629
    %v2726 = vsub.f32 %v2559, %v2630
    %v2727 = vsub.f32 %v2560, %v2631
    %v2728 = vsub.f32 %v2561, %v2632
    %v2729 = vsub.f32 %v2562, %v2633
    %v2730 = vsub.f32 %v2563, %v2634
    %v2731 = vsub.f32 %v2564, %v2635
    %v2732 = vsub.f32 %v2565, %v2636
    %v2733 = vmul.f32 %v2621, %v2621
    %v2734 = vmul.f32 %v2622, %v2622
    %v2735 = vmul.f32 %v2623, %v2623
    %v2736 = vmul.f32 %v2624, %v2624
    %v2737 = vmul.f32 %v2625, %v2625
    %v2738 = vmul.f32 %v2626, %v2626
    %v2739 = vmul.f32 %v2627, %v2627
    %v2740 = vmul.f32 %v2628, %v2628
    %v2741 = vmul.f32 %v2629, %v2629
    %v2742 = vmul.f32 %v2630, %v2630
    %v2743 = vmul.f32 %v2631, %v2631
    %v2744 = vmul.f32 %v2632, %v2632
    %v2745 = vmul.f32 %v2633, %v2633
    %v2746 = vmul.f32 %v2634, %v2634
    %v2747 = vmul.f32 %v2635, %v2635
    %v2748 = vmul.f32 %v2636, %v2636
    %v2749 = vsub.f32 %v2701, %v2733
    %v2750 = vsub.f32 %v2702, %v2734
    %v2751 = vsub.f32 %v2703, %v2735
    %v2752 = vsub.f32 %v2704, %v2736
    %v2753 = vsub.f32 %v2705, %v2737
    %v2754 = vsub.f32 %v2706, %v2738
    %v2755 = vsub.f32 %v2707, %v2739
    %v2756 = vsub.f32 %v2708, %v2740
    %v2757 = vsub.f32 %v2709, %v2741
    %v2758 = vsub.f32 %v2710, %v2742
    %v2759 = vsub.f32 %v2711, %v2743
    %v2760 = vsub.f32 %v2712, %v2744
    %v2761 = vsub.f32 %v2713, %v2745
    %v2762 = vsub.f32 %v2714, %v2746
    %v2763 = vsub.f32 %v2715, %v2747
    %v2764 = vsub.f32 %v2716, %v2748
    %v2765 = vadd.f32 %v2749, 1e-05
    %v2766 = vadd.f32 %v2750, 1e-05
    %v2767 = vadd.f32 %v2751, 1e-05
    %v2768 = vadd.f32 %v2752, 1e-05
    %v2769 = vadd.f32 %v2753, 1e-05
    %v2770 = vadd.f32 %v2754, 1e-05
    %v2771 = vadd.f32 %v2755, 1e-05
    %v2772 = vadd.f32 %v2756, 1e-05
    %v2773 = vadd.f32 %v2757, 1e-05
    %v2774 = vadd.f32 %v2758, 1e-05
    %v2775 = vadd.f32 %v2759, 1e-05
    %v2776 = vadd.f32 %v2760, 1e-05
    %v2777 = vadd.f32 %v2761, 1e-05
    %v2778 = vadd.f32 %v2762, 1e-05
    %v2779 = vadd.f32 %v2763, 1e-05
    %v2780 = vadd.f32 %v2764, 1e-05
    %v2781 = vrsqrt.pop %v2765
    %v2782 = vmul.f32 %v2781, %v2765
    %v2783 = vmul.f32 %v2782, %v2781
    %v2784 = vmul.f32 0.5, %v2783
    %v2785 = vsub.f32 1.5, %v2784
    %v2786 = vmul.f32 %v2781, %v2785
    %vm2787 = vweird.f32 %v2765
    %vm2788 = vweird.f32 %v2781
    %vm2789 = vmor %vm2787, %vm2788
    %v2790 = vsel %vm2789, %v2781, %v2786
    %v2791 = vrsqrt.pop %v2766
    %v2792 = vmul.f32 %v2791, %v2766
    %v2793 = vmul.f32 %v2792, %v2791
    %v2794 = vmul.f32 0.5, %v2793
    %v2795 = vsub.f32 1.5, %v2794
    %v2796 = vmul.f32 %v2791, %v2795
    %vm2797 = vweird.f32 %v2766
    %vm2798 = vweird.f32 %v2791
    %vm2799 = vmor %vm2797, %vm2798
    %v2800 = vsel %vm2799, %v2791, %v2796
    %v2801 = vrsqrt.pop %v2767
    %v2802 = vmul.f32 %v2801, %v2767
    %v2803 = vmul.f32 %v2802, %v2801
    %v2804 = vmul.f32 0.5, %v2803
    %v2805 = vsub.f32 1.5, %v2804
    %v2806 = vmul.f32 %v2801, %v2805
    %vm2807 = vweird.f32 %v2767
    %vm2808 = vweird.f32 %v2801
    %vm2809 = vmor %vm2807, %vm2808
    %v2810 = vsel %vm2809, %v2801, %v2806
    %v2811 = vrsqrt.pop %v2768
    %v2812 = vmul.f32 %v2811, %v2768
    %v2813 = vmul.f32 %v2812, %v2811
    %v2814 = vmul.f32 0.5, %v2813
    %v2815 = vsub.f32 1.5, %v2814
    %v2816 = vmul.f32 %v2811, %v2815
    %vm2817 = vweird.f32 %v2768
    %vm2818 = vweird.f32 %v2811
    %vm2819 = vmor %vm2817, %vm2818
    %v2820 = vsel %vm2819, %v2811, %v2816
    %v2821 = vrsqrt.pop %v2769
    %v2822 = vmul.f32 %v2821, %v2769
    %v2823 = vmul.f32 %v2822, %v2821
    %v2824 = vmul.f32 0.5, %v2823
    %v2825 = vsub.f32 1.5, %v2824
    %v2826 = vmul.f32 %v2821, %v2825
    %vm2827 = vweird.f32 %v2769
    %vm2828 = vweird.f32 %v2821
    %vm2829 = vmor %vm2827, %vm2828
    %v2830 = vsel %vm2829, %v2821, %v2826
    %v2831 = vrsqrt.pop %v2770
    %v2832 = vmul.f32 %v2831, %v2770
    %v2833 = vmul.f32 %v2832, %v2831
    %v2834 = vmul.f32 0.5, %v2833
    %v2835 = vsub.f32 1.5, %v2834
    %v2836 = vmul.f32 %v2831, %v2835
    %vm2837 = vweird.f32 %v2770
    %vm2838 = vweird.f32 %v2831
    %vm2839 = vmor %vm2837, %vm2838
    %v2840 = vsel %vm2839, %v2831, %v2836
    %v2841 = vrsqrt.pop %v2771
    %v2842 = vmul.f32 %v2841, %v2771
    %v2843 = vmul.f32 %v2842, %v2841
    %v2844 = vmul.f32 0.5, %v2843
    %v2845 = vsub.f32 1.5, %v2844
    %v2846 = vmul.f32 %v2841, %v2845
    %vm2847 = vweird.f32 %v2771
    %vm2848 = vweird.f32 %v2841
    %vm2849 = vmor %vm2847, %vm2848
    %v2850 = vsel %vm2849, %v2841, %v2846
    %v2851 = vrsqrt.pop %v2772
    %v2852 = vmul.f32 %v2851, %v2772
    %v2853 = vmul.f32 %v2852, %v2851
    %v2854 = vmul.f32 0.5, %v2853
    %v2855 = vsub.f32 1.5, %v2854
    %v2856 = vmul.f32 %v2851, %v2855
    %vm2857 = vweird.f32 %v2772
    %vm2858 = vweird.f32 %v2851
    %vm2859 = vmor %vm2857, %vm2858
    %v2860 = vsel %vm2859, %v2851, %v2856
    %v2861 = vrsqrt.pop %v2773
    %v2862 = vmul.f32 %v2861, %v2773
    %v2863 = vmul.f32 %v2862, %v2861
    %v2864 = vmul.f32 0.5, %v2863
    %v2865 = vsub.f32 1.5, %v2864
    %v2866 = vmul.f32 %v2861, %v2865
    %vm2867 = vweird.f32 %v2773
    %vm2868 = vweird.f32 %v2861
    %vm2869 = vmor %vm2867, %vm2868
    %v2870 = vsel %vm2869, %v2861, %v2866
    %v2871 = vrsqrt.pop %v2774
    %v2872 = vmul.f32 %v2871, %v2774
    %v2873 = vmul.f32 %v2872, %v2871
    %v2874 = vmul.f32 0.5, %v2873
    %v2875 = vsub.f32 1.5, %v2874
    %v2876 = vmul.f32 %v2871, %v2875
    %vm2877 = vweird.f32 %v2774
    %vm2878 = vweird.f32 %v2871
    %vm2879 = vmor %vm2877, %vm2878
    %v2880 = vsel %vm2879, %v2871, %v2876
    %v2881 = vrsqrt.pop %v2775
    %v2882 = vmul.f32 %v2881, %v2775
    %v2883 = vmul.f32 %v2882, %v2881
    %v2884 = vmul.f32 0.5, %v2883
    %v2885 = vsub.f32 1.5, %v2884
    %v2886 = vmul.f32 %v2881, %v2885
    %vm2887 = vweird.f32 %v2775
    %vm2888 = vweird.f32 %v2881
    %vm2889 = vmor %vm2887, %vm2888
    %v2890 = vsel %vm2889, %v2881, %v2886
    %v2891 = vrsqrt.pop %v2776
    %v2892 = vmul.f32 %v2891, %v2776
    %v2893 = vmul.f32 %v2892, %v2891
    %v2894 = vmul.f32 0.5, %v2893
    %v2895 = vsub.f32 1.5, %v2894
    %v2896 = vmul.f32 %v2891, %v2895
    %vm2897 = vweird.f32 %v2776
    %vm2898 = vweird.f32 %v2891
    %vm2899 = vmor %vm2897, %vm2898
    %v2900 = vsel %vm2899, %v2891, %v2896
    %v2901 = vrsqrt.pop %v2777
    %v2902 = vmul.f32 %v2901, %v2777
    %v2903 = vmul.f32 %v2902, %v2901
    %v2904 = vmul.f32 0.5, %v2903
    %v2905 = vsub.f32 1.5, %v2904
    %v2906 = vmul.f32 %v2901, %v2905
    %vm2907 = vweird.f32 %v2777
    %vm2908 = vweird.f32 %v2901
    %vm2909 = vmor %vm2907, %vm2908
    %v2910 = vsel %vm2909, %v2901, %v2906
    %v2911 = vrsqrt.pop %v2778
    %v2912 = vmul.f32 %v2911, %v2778
    %v2913 = vmul.f32 %v2912, %v2911
    %v2914 = vmul.f32 0.5, %v2913
    %v2915 = vsub.f32 1.5, %v2914
    %v2916 = vmul.f32 %v2911, %v2915
    %vm2917 = vweird.f32 %v2778
    %vm2918 = vweird.f32 %v2911
    %vm2919 = vmor %vm2917, %vm2918
    %v2920 = vsel %vm2919, %v2911, %v2916
    %v2921 = vrsqrt.pop %v2779
    %v2922 = vmul.f32 %v2921, %v2779
    %v2923 = vmul.f32 %v2922, %v2921
    %v2924 = vmul.f32 0.5, %v2923
    %v2925 = vsub.f32 1.5, %v2924
    %v2926 = vmul.f32 %v2921, %v2925
    %vm2927 = vweird.f32 %v2779
    %vm2928 = vweird.f32 %v2921
    %vm2929 = vmor %vm2927, %vm2928
    %v2930 = vsel %vm2929, %v2921, %v2926
    %v2931 = vrsqrt.pop %v2780
    %v2932 = vmul.f32 %v2931, %v2780
    %v2933 = vmul.f32 %v2932, %v2931
    %v2934 = vmul.f32 0.5, %v2933
    %v2935 = vsub.f32 1.5, %v2934
    %v2936 = vmul.f32 %v2931, %v2935
    %vm2937 = vweird.f32 %v2780
    %vm2938 = vweird.f32 %v2931
    %vm2939 = vmor %vm2937, %vm2938
    %v2940 = vsel %vm2939, %v2931, %v2936
    %v2941 = vmul.f32 %v2717, %v2790
    %v2942 = vmul.f32 %v2718, %v2800
    %v2943 = vmul.f32 %v2719, %v2810
    %v2944 = vmul.f32 %v2720, %v2820
    %v2945 = vmul.f32 %v2721, %v2830
    %v2946 = vmul.f32 %v2722, %v2840
    %v2947 = vmul.f32 %v2723, %v2850
    %v2948 = vmul.f32 %v2724, %v2860
    %v2949 = vmul.f32 %v2725, %v2870
    %v2950 = vmul.f32 %v2726, %v2880
    %v2951 = vmul.f32 %v2727, %v2890
    %v2952 = vmul.f32 %v2728, %v2900
    %v2953 = vmul.f32 %v2729, %v2910
    %v2954 = vmul.f32 %v2730, %v2920
    %v2955 = vmul.f32 %v2731, %v2930
    %v2956 = vmul.f32 %v2732, %v2940
    %v2957 = vperm.slane %v149, 3
    %v2958 = vmul.f32 %v2941, %v2957
    %v2959 = vmul.f32 %v2942, %v2957
    %v2960 = vmul.f32 %v2943, %v2957
    %v2961 = vmul.f32 %v2944, %v2957
    %v2962 = vmul.f32 %v2945, %v2957
    %v2963 = vmul.f32 %v2946, %v2957
    %v2964 = vmul.f32 %v2947, %v2957
    %v2965 = vmul.f32 %v2948, %v2957
    %v2966 = vmul.f32 %v2949, %v2957
    %v2967 = vmul.f32 %v2950, %v2957
    %v2968 = vmul.f32 %v2951, %v2957
    %v2969 = vmul.f32 %v2952, %v2957
    %v2970 = vmul.f32 %v2953, %v2957
    %v2971 = vmul.f32 %v2954, %v2957
    %v2972 = vmul.f32 %v2955, %v2957
    %v2973 = vmul.f32 %v2956, %v2957
    %v2974 = vperm.slane %v149, 4
    %v2975 = vadd.f32 %v2958, %v2974
    %v2976 = vadd.f32 %v2959, %v2974
    %v2977 = vadd.f32 %v2960, %v2974
    %v2978 = vadd.f32 %v2961, %v2974
    %v2979 = vadd.f32 %v2962, %v2974
    %v2980 = vadd.f32 %v2963, %v2974
    %v2981 = vadd.f32 %v2964, %v2974
    %v2982 = vadd.f32 %v2965, %v2974
    %v2983 = vadd.f32 %v2966, %v2974
    %v2984 = vadd.f32 %v2967, %v2974
    %v2985 = vadd.f32 %v2968, %v2974
    %v2986 = vadd.f32 %v2969, %v2974
    %v2987 = vadd.f32 %v2970, %v2974
    %v2988 = vadd.f32 %v2971, %v2974
    %v2989 = vadd.f32 %v2972, %v2974
    %v2990 = vadd.f32 %v2973, %v2974
    %v2991 = vpack.c.bf16 %v2976, %v2975
    %v2992 = vpack.c.bf16 %v2978, %v2977
    %v2993 = vpack.c.bf16 %v2980, %v2979
    %v2994 = vpack.c.bf16 %v2982, %v2981
    %v2995 = vpack.c.bf16 %v2984, %v2983
    %v2996 = vpack.c.bf16 %v2986, %v2985
    %v2997 = vpack.c.bf16 %v2988, %v2987
    %v2998 = vpack.c.bf16 %v2990, %v2989
    %v2999 = vld [vmem:[#allocation8] sm:$0xf]
    %v3000 = vld [vmem:[#allocation8 + $0x4] sm:$0xf]
    %v3001 = vld [vmem:[#allocation8 + $0x8] sm:$0xf]
    %v3002 = vld [vmem:[#allocation8 + $0xc] sm:$0xf]
    %v3003 = vld [vmem:[#allocation10] sm:$0x1]
    %v3005 = vperm.slane %v3003, 0
    %v3011 = vunpack.c.l.b16 %v2999
    %v3012 = vunpack.c.l.b16 %v3000
    %v3013 = vunpack.c.l.b16 %v3001
    %v3014 = vunpack.c.l.b16 %v3002
    %v3015 = vpack.c.b16 %v3012, %v3011
    %v3016 = vpack.c.b16 %v3014, %v3013
    %v3020 = vsel %vm323, %v2991, 0
    %v3023 = vsel %vm323, %v2992, 0
    %v3026 = vsel %vm323, %v2993, 0
    %v3029 = vsel %vm323, %v2994, 0
    %v3032 = vsel %vm323, %v2995, 0
    %v3035 = vsel %vm323, %v2996, 0
    %v3038 = vsel %vm323, %v2997, 0
    %v3041 = vsel %vm323, %v2998, 0
    %3043 = vmatpush.bf16.msra.mxu0 0
    %3044 = vmatpush.bf16.msra.mxu0 0
    %3045 = vmatpush.bf16.msra.mxu0 0
    %3046 = vmatpush.bf16.msra.mxu0 0
    %3047 = vmatpush.bf16.msra.mxu0 0
    %3048 = vmatpush.bf16.msra.mxu0 0
    %3049 = vmatpush.bf16.msra.mxu0 %v3016
    %3050 = vmatpush.bf16.msra.mxu0 %v3015
    %3051 = vmatmul.bf16.gmra.mxu0 %v3020
    %v3052 = vpop.f32.mrf.mxu0
    %v3053 = vadd.f32 %v3005, %v3052
    %v3054 = vpop.f32.mrf.mxu0
    %v3055 = vadd.f32 %v3005, %v3054
    %3056 = vmatmul.bf16.gmra.mxu0 %v3023
    %v3057 = vpop.f32.mrf.mxu0
    %v3058 = vadd.f32 %v3005, %v3057
    %v3059 = vpop.f32.mrf.mxu0
    %v3060 = vadd.f32 %v3005, %v3059
    %3061 = vmatmul.bf16.gmra.mxu0 %v3026
    %v3062 = vpop.f32.mrf.mxu0
    %v3063 = vadd.f32 %v3005, %v3062
    %v3064 = vpop.f32.mrf.mxu0
    %v3065 = vadd.f32 %v3005, %v3064
    %3066 = vmatmul.bf16.gmra.mxu0 %v3029
    %v3067 = vpop.f32.mrf.mxu0
    %v3068 = vadd.f32 %v3005, %v3067
    %v3069 = vpop.f32.mrf.mxu0
    %v3070 = vadd.f32 %v3005, %v3069
    %3071 = vmatmul.bf16.gmra.mxu0 %v3032
    %v3072 = vpop.f32.mrf.mxu0
    %v3073 = vadd.f32 %v3005, %v3072
    %v3074 = vpop.f32.mrf.mxu0
    %v3075 = vadd.f32 %v3005, %v3074
    %3076 = vmatmul.bf16.gmra.mxu0 %v3035
    %v3077 = vpop.f32.mrf.mxu0
    %v3078 = vadd.f32 %v3005, %v3077
    %v3079 = vpop.f32.mrf.mxu0
    %v3080 = vadd.f32 %v3005, %v3079
    %3081 = vmatmul.bf16.gmra.mxu0 %v3038
    %v3082 = vpop.f32.mrf.mxu0
    %v3083 = vadd.f32 %v3005, %v3082
    %v3084 = vpop.f32.mrf.mxu0
    %v3085 = vadd.f32 %v3005, %v3084
    %3086 = vmatmul.bf16.gmra.mxu0 %v3041
    %v3087 = vpop.f32.mrf.mxu0
    %v3088 = vadd.f32 %v3005, %v3087
    %v3089 = vpop.f32.mrf.mxu0
    %v3090 = vadd.f32 %v3005, %v3089
    %3091 = vdwg.mxu0
    %v3092 = vmax.f32 %v3053, 0.0
    %v3093 = vmax.f32 %v3055, 0.0
    %v3094 = vmax.f32 %v3058, 0.0
    %v3095 = vmax.f32 %v3060, 0.0
    %v3096 = vmax.f32 %v3063, 0.0
    %v3097 = vmax.f32 %v3065, 0.0
    %v3098 = vmax.f32 %v3068, 0.0
    %v3099 = vmax.f32 %v3070, 0.0
    %v3100 = vmax.f32 %v3073, 0.0
    %v3101 = vmax.f32 %v3075, 0.0
    %v3102 = vmax.f32 %v3078, 0.0
    %v3103 = vmax.f32 %v3080, 0.0
    %v3104 = vmax.f32 %v3083, 0.0
    %v3105 = vmax.f32 %v3085, 0.0
    %v3106 = vmax.f32 %v3088, 0.0
    %v3107 = vmax.f32 %v3090, 0.0
    %v3108 = vpack.c.bf16 %v3093, %v3092
    %v3109 = vpack.c.bf16 %v3095, %v3094
    %v3110 = vpack.c.bf16 %v3097, %v3096
    %v3111 = vpack.c.bf16 %v3099, %v3098
    %v3112 = vpack.c.bf16 %v3101, %v3100
    %v3113 = vpack.c.bf16 %v3103, %v3102
    %v3114 = vpack.c.bf16 %v3105, %v3104
    %v3115 = vpack.c.bf16 %v3107, %v3106
    %v3116 = vld [vmem:[%s12] sm:$0xf]
    %v3117 = vld [vmem:[%s12 + $0x4] sm:$0xf]
    %v3118 = vld [vmem:[%s12 + $0x8] sm:$0xf]
    %v3119 = vld [vmem:[%s12 + $0xc] sm:$0xf]
    %v3120 = vld [vmem:[%s12 + $0x10] sm:$0xf]
    %v3121 = vld [vmem:[%s12 + $0x14] sm:$0xf]
    %v3122 = vld [vmem:[%s12 + $0x18] sm:$0xf]
    %v3123 = vld [vmem:[%s12 + $0x1c] sm:$0xf]
    %v3124 = vperm.slane %v149, 5
    %v3133 = vunpack.c.l.b16 %v3116
    %v3134 = vunpack.c.l.b16 %v3117
    %v3135 = vunpack.c.l.b16 %v3118
    %v3136 = vunpack.c.l.b16 %v3119
    %v3137 = vunpack.c.l.b16 %v3120
    %v3138 = vunpack.c.l.b16 %v3121
    %v3139 = vunpack.c.l.b16 %v3122
    %v3140 = vunpack.c.l.b16 %v3123
    %v3141 = vpack.c.b16 %v3134, %v3133
    %v3142 = vpack.c.b16 %v3136, %v3135
    %v3143 = vpack.c.b16 %v3138, %v3137
    %v3144 = vpack.c.b16 %v3140, %v3139
    %vm3149 = vcmask 523264
    %v3151 = vsel %vm3149, %v3108, 0
    %v3154 = vsel %vm3149, %v3109, 0
    %v3157 = vsel %vm3149, %v3110, 0
    %v3160 = vsel %vm3149, %v3111, 0
    %v3163 = vsel %vm3149, %v3112, 0
    %v3166 = vsel %vm3149, %v3113, 0
    %v3169 = vsel %vm3149, %v3114, 0
    %v3172 = vsel %vm3149, %v3115, 0
    %3174 = vmatpush.bf16.msra.mxu0 0
    %3175 = vmatpush.bf16.msra.mxu0 0
    %3176 = vmatpush.bf16.msra.mxu0 0
    %3177 = vmatpush.bf16.msra.mxu0 0
    %3178 = vmatpush.bf16.msra.mxu0 %v3144
    %3179 = vmatpush.bf16.msra.mxu0 %v3143
    %3180 = vmatpush.bf16.msra.mxu0 %v3142
    %3181 = vmatpush.bf16.msra.mxu0 %v3141
    %3182 = vmatmul.bf16.gmra.mxu0 %v3151
    %v3183 = vpop.f32.mrf.mxu0
    %v3184 = vadd.f32 %v3124, %v3183
    %v3185 = vpop.f32.mrf.mxu0
    %v3186 = vadd.f32 %v3124, %v3185
    %3187 = vmatmul.bf16.gmra.mxu0 %v3154
    %v3188 = vpop.f32.mrf.mxu0
    %v3189 = vadd.f32 %v3124, %v3188
    %v3190 = vpop.f32.mrf.mxu0
    %v3191 = vadd.f32 %v3124, %v3190
    %3192 = vmatmul.bf16.gmra.mxu0 %v3157
    %v3193 = vpop.f32.mrf.mxu0
    %v3194 = vadd.f32 %v3124, %v3193
    %v3195 = vpop.f32.mrf.mxu0
    %v3196 = vadd.f32 %v3124, %v3195
    %3197 = vmatmul.bf16.gmra.mxu0 %v3160
    %v3198 = vpop.f32.mrf.mxu0
    %v3199 = vadd.f32 %v3124, %v3198
    %v3200 = vpop.f32.mrf.mxu0
    %v3201 = vadd.f32 %v3124, %v3200
    %3202 = vmatmul.bf16.gmra.mxu0 %v3163
    %v3203 = vpop.f32.mrf.mxu0
    %v3204 = vadd.f32 %v3124, %v3203
    %v3205 = vpop.f32.mrf.mxu0
    %v3206 = vadd.f32 %v3124, %v3205
    %3207 = vmatmul.bf16.gmra.mxu0 %v3166
    %v3208 = vpop.f32.mrf.mxu0
    %v3209 = vadd.f32 %v3124, %v3208
    %v3210 = vpop.f32.mrf.mxu0
    %v3211 = vadd.f32 %v3124, %v3210
    %3212 = vmatmul.bf16.gmra.mxu0 %v3169
    %v3213 = vpop.f32.mrf.mxu0
    %v3214 = vadd.f32 %v3124, %v3213
    %v3215 = vpop.f32.mrf.mxu0
    %v3216 = vadd.f32 %v3124, %v3215
    %3217 = vmatmul.bf16.gmra.mxu0 %v3172
    %v3218 = vpop.f32.mrf.mxu0
    %v3219 = vadd.f32 %v3124, %v3218
    %v3220 = vpop.f32.mrf.mxu0
    %v3221 = vadd.f32 %v3124, %v3220
    %3222 = vdwg.mxu0
    %v3223 = vadd.f32 %v2975, %v3184
    %v3224 = vadd.f32 %v2976, %v3186
    %v3225 = vadd.f32 %v2977, %v3189
    %v3226 = vadd.f32 %v2978, %v3191
    %v3227 = vadd.f32 %v2979, %v3194
    %v3228 = vadd.f32 %v2980, %v3196
    %v3229 = vadd.f32 %v2981, %v3199
    %v3230 = vadd.f32 %v2982, %v3201
    %v3231 = vadd.f32 %v2983, %v3204
    %v3232 = vadd.f32 %v2984, %v3206
    %v3233 = vadd.f32 %v2985, %v3209
    %v3234 = vadd.f32 %v2986, %v3211
    %v3235 = vadd.f32 %v2987, %v3214
    %v3236 = vadd.f32 %v2988, %v3216
    %v3237 = vadd.f32 %v2989, %v3219
    %v3238 = vadd.f32 %v2990, %v3221
    %v3239 = vsel %vm323, %v3223, 0.0
    %3240 = vadd.xlane.f32.xlu0 %v3239
    %v3241 = vpop.xlane.xlu0 %3240
    %v3242 = vsel %vm323, %v3224, 0.0
    %3243 = vadd.xlane.f32.xlu0 %v3242
    %v3244 = vpop.xlane.xlu0 %3243
    %v3245 = vsel %vm323, %v3225, 0.0
    %3246 = vadd.xlane.f32.xlu0 %v3245
    %v3247 = vpop.xlane.xlu0 %3246
    %v3248 = vsel %vm323, %v3226, 0.0
    %3249 = vadd.xlane.f32.xlu0 %v3248
    %v3250 = vpop.xlane.xlu0 %3249
    %v3251 = vsel %vm323, %v3227, 0.0
    %3252 = vadd.xlane.f32.xlu0 %v3251
    %v3253 = vpop.xlane.xlu0 %3252
    %v3254 = vsel %vm323, %v3228, 0.0
    %3255 = vadd.xlane.f32.xlu0 %v3254
    %v3256 = vpop.xlane.xlu0 %3255
    %v3257 = vsel %vm323, %v3229, 0.0
    %3258 = vadd.xlane.f32.xlu0 %v3257
    %v3259 = vpop.xlane.xlu0 %3258
    %v3260 = vsel %vm323, %v3230, 0.0
    %3261 = vadd.xlane.f32.xlu0 %v3260
    %v3262 = vpop.xlane.xlu0 %3261
    %v3263 = vsel %vm323, %v3231, 0.0
    %3264 = vadd.xlane.f32.xlu0 %v3263
    %v3265 = vpop.xlane.xlu0 %3264
    %v3266 = vsel %vm323, %v3232, 0.0
    %3267 = vadd.xlane.f32.xlu0 %v3266
    %v3268 = vpop.xlane.xlu0 %3267
    %v3269 = vsel %vm323, %v3233, 0.0
    %3270 = vadd.xlane.f32.xlu0 %v3269
    %v3271 = vpop.xlane.xlu0 %3270
    %v3272 = vsel %vm323, %v3234, 0.0
    %3273 = vadd.xlane.f32.xlu0 %v3272
    %v3274 = vpop.xlane.xlu0 %3273
    %v3275 = vsel %vm323, %v3235, 0.0
    %3276 = vadd.xlane.f32.xlu0 %v3275
    %v3277 = vpop.xlane.xlu0 %3276
    %v3278 = vsel %vm323, %v3236, 0.0
    %3279 = vadd.xlane.f32.xlu0 %v3278
    %v3280 = vpop.xlane.xlu0 %3279
    %v3281 = vsel %vm323, %v3237, 0.0
    %3282 = vadd.xlane.f32.xlu0 %v3281
    %v3283 = vpop.xlane.xlu0 %3282
    %v3284 = vsel %vm323, %v3238, 0.0
    %3285 = vadd.xlane.f32.xlu0 %v3284
    %v3286 = vpop.xlane.xlu0 %3285
    %v3287 = vmul.f32 %v3241, %v2620
    %v3288 = vmul.f32 %v3244, %v2620
    %v3289 = vmul.f32 %v3247, %v2620
    %v3290 = vmul.f32 %v3250, %v2620
    %v3291 = vmul.f32 %v3253, %v2620
    %v3292 = vmul.f32 %v3256, %v2620
    %v3293 = vmul.f32 %v3259, %v2620
    %v3294 = vmul.f32 %v3262, %v2620
    %v3295 = vmul.f32 %v3265, %v2620
    %v3296 = vmul.f32 %v3268, %v2620
    %v3297 = vmul.f32 %v3271, %v2620
    %v3298 = vmul.f32 %v3274, %v2620
    %v3299 = vmul.f32 %v3277, %v2620
    %v3300 = vmul.f32 %v3280, %v2620
    %v3301 = vmul.f32 %v3283, %v2620
    %v3302 = vmul.f32 %v3286, %v2620
    %v3303 = vmul.f32 %v3223, %v3223
    %v3304 = vmul.f32 %v3224, %v3224
    %v3305 = vmul.f32 %v3225, %v3225
    %v3306 = vmul.f32 %v3226, %v3226
    %v3307 = vmul.f32 %v3227, %v3227
    %v3308 = vmul.f32 %v3228, %v3228
    %v3309 = vmul.f32 %v3229, %v3229
    %v3310 = vmul.f32 %v3230, %v3230
    %v3311 = vmul.f32 %v3231, %v3231
    %v3312 = vmul.f32 %v3232, %v3232
    %v3313 = vmul.f32 %v3233, %v3233
    %v3314 = vmul.f32 %v3234, %v3234
    %v3315 = vmul.f32 %v3235, %v3235
    %v3316 = vmul.f32 %v3236, %v3236
    %v3317 = vmul.f32 %v3237, %v3237
    %v3318 = vmul.f32 %v3238, %v3238
    %v3319 = vsel %vm323, %v3303, 0.0
    %3320 = vadd.xlane.f32.xlu0 %v3319
    %v3321 = vpop.xlane.xlu0 %3320
    %v3322 = vsel %vm323, %v3304, 0.0
    %3323 = vadd.xlane.f32.xlu0 %v3322
    %v3324 = vpop.xlane.xlu0 %3323
    %v3325 = vsel %vm323, %v3305, 0.0
    %3326 = vadd.xlane.f32.xlu0 %v3325
    %v3327 = vpop.xlane.xlu0 %3326
    %v3328 = vsel %vm323, %v3306, 0.0
    %3329 = vadd.xlane.f32.xlu0 %v3328
    %v3330 = vpop.xlane.xlu0 %3329
    %v3331 = vsel %vm323, %v3307, 0.0
    %3332 = vadd.xlane.f32.xlu0 %v3331
    %v3333 = vpop.xlane.xlu0 %3332
    %v3334 = vsel %vm323, %v3308, 0.0
    %3335 = vadd.xlane.f32.xlu0 %v3334
    %v3336 = vpop.xlane.xlu0 %3335
    %v3337 = vsel %vm323, %v3309, 0.0
    %3338 = vadd.xlane.f32.xlu0 %v3337
    %v3339 = vpop.xlane.xlu0 %3338
    %v3340 = vsel %vm323, %v3310, 0.0
    %3341 = vadd.xlane.f32.xlu0 %v3340
    %v3342 = vpop.xlane.xlu0 %3341
    %v3343 = vsel %vm323, %v3311, 0.0
    %3344 = vadd.xlane.f32.xlu0 %v3343
    %v3345 = vpop.xlane.xlu0 %3344
    %v3346 = vsel %vm323, %v3312, 0.0
    %3347 = vadd.xlane.f32.xlu0 %v3346
    %v3348 = vpop.xlane.xlu0 %3347
    %v3349 = vsel %vm323, %v3313, 0.0
    %3350 = vadd.xlane.f32.xlu0 %v3349
    %v3351 = vpop.xlane.xlu0 %3350
    %v3352 = vsel %vm323, %v3314, 0.0
    %3353 = vadd.xlane.f32.xlu0 %v3352
    %v3354 = vpop.xlane.xlu0 %3353
    %v3355 = vsel %vm323, %v3315, 0.0
    %3356 = vadd.xlane.f32.xlu0 %v3355
    %v3357 = vpop.xlane.xlu0 %3356
    %v3358 = vsel %vm323, %v3316, 0.0
    %3359 = vadd.xlane.f32.xlu0 %v3358
    %v3360 = vpop.xlane.xlu0 %3359
    %v3361 = vsel %vm323, %v3317, 0.0
    %3362 = vadd.xlane.f32.xlu0 %v3361
    %v3363 = vpop.xlane.xlu0 %3362
    %v3364 = vsel %vm323, %v3318, 0.0
    %3365 = vadd.xlane.f32.xlu0 %v3364
    %v3366 = vpop.xlane.xlu0 %3365
    %v3367 = vmul.f32 %v3321, %v2620
    %v3368 = vmul.f32 %v3324, %v2620
    %v3369 = vmul.f32 %v3327, %v2620
    %v3370 = vmul.f32 %v3330, %v2620
    %v3371 = vmul.f32 %v3333, %v2620
    %v3372 = vmul.f32 %v3336, %v2620
    %v3373 = vmul.f32 %v3339, %v2620
    %v3374 = vmul.f32 %v3342, %v2620
    %v3375 = vmul.f32 %v3345, %v2620
    %v3376 = vmul.f32 %v3348, %v2620
    %v3377 = vmul.f32 %v3351, %v2620
    %v3378 = vmul.f32 %v3354, %v2620
    %v3379 = vmul.f32 %v3357, %v2620
    %v3380 = vmul.f32 %v3360, %v2620
    %v3381 = vmul.f32 %v3363, %v2620
    %v3382 = vmul.f32 %v3366, %v2620
    %v3383 = vsub.f32 %v3223, %v3287
    %v3384 = vsub.f32 %v3224, %v3288
    %v3385 = vsub.f32 %v3225, %v3289
    %v3386 = vsub.f32 %v3226, %v3290
    %v3387 = vsub.f32 %v3227, %v3291
    %v3388 = vsub.f32 %v3228, %v3292
    %v3389 = vsub.f32 %v3229, %v3293
    %v3390 = vsub.f32 %v3230, %v3294
    %v3391 = vsub.f32 %v3231, %v3295
    %v3392 = vsub.f32 %v3232, %v3296
    %v3393 = vsub.f32 %v3233, %v3297
    %v3394 = vsub.f32 %v3234, %v3298
    %v3395 = vsub.f32 %v3235, %v3299
    %v3396 = vsub.f32 %v3236, %v3300
    %v3397 = vsub.f32 %v3237, %v3301
    %v3398 = vsub.f32 %v3238, %v3302
    %v3399 = vmul.f32 %v3287, %v3287
    %v3400 = vmul.f32 %v3288, %v3288
    %v3401 = vmul.f32 %v3289, %v3289
    %v3402 = vmul.f32 %v3290, %v3290
    %v3403 = vmul.f32 %v3291, %v3291
    %v3404 = vmul.f32 %v3292, %v3292
    %v3405 = vmul.f32 %v3293, %v3293
    %v3406 = vmul.f32 %v3294, %v3294
    %v3407 = vmul.f32 %v3295, %v3295
    %v3408 = vmul.f32 %v3296, %v3296
    %v3409 = vmul.f32 %v3297, %v3297
    %v3410 = vmul.f32 %v3298, %v3298
    %v3411 = vmul.f32 %v3299, %v3299
    %v3412 = vmul.f32 %v3300, %v3300
    %v3413 = vmul.f32 %v3301, %v3301
    %v3414 = vmul.f32 %v3302, %v3302
    %v3415 = vsub.f32 %v3367, %v3399
    %v3416 = vsub.f32 %v3368, %v3400
    %v3417 = vsub.f32 %v3369, %v3401
    %v3418 = vsub.f32 %v3370, %v3402
    %v3419 = vsub.f32 %v3371, %v3403
    %v3420 = vsub.f32 %v3372, %v3404
    %v3421 = vsub.f32 %v3373, %v3405
    %v3422 = vsub.f32 %v3374, %v3406
    %v3423 = vsub.f32 %v3375, %v3407
    %v3424 = vsub.f32 %v3376, %v3408
    %v3425 = vsub.f32 %v3377, %v3409
    %v3426 = vsub.f32 %v3378, %v3410
    %v3427 = vsub.f32 %v3379, %v3411
    %v3428 = vsub.f32 %v3380, %v3412
    %v3429 = vsub.f32 %v3381, %v3413
    %v3430 = vsub.f32 %v3382, %v3414
    %v3431 = vadd.f32 %v3415, 1e-05
    %v3432 = vadd.f32 %v3416, 1e-05
    %v3433 = vadd.f32 %v3417, 1e-05
    %v3434 = vadd.f32 %v3418, 1e-05
    %v3435 = vadd.f32 %v3419, 1e-05
    %v3436 = vadd.f32 %v3420, 1e-05
    %v3437 = vadd.f32 %v3421, 1e-05
    %v3438 = vadd.f32 %v3422, 1e-05
    %v3439 = vadd.f32 %v3423, 1e-05
    %v3440 = vadd.f32 %v3424, 1e-05
    %v3441 = vadd.f32 %v3425, 1e-05
    %v3442 = vadd.f32 %v3426, 1e-05
    %v3443 = vadd.f32 %v3427, 1e-05
    %v3444 = vadd.f32 %v3428, 1e-05
    %v3445 = vadd.f32 %v3429, 1e-05
    %v3446 = vadd.f32 %v3430, 1e-05
    %v3447 = vrsqrt.pop %v3431
    %v3448 = vmul.f32 %v3447, %v3431
    %v3449 = vmul.f32 %v3448, %v3447
    %v3450 = vmul.f32 0.5, %v3449
    %v3451 = vsub.f32 1.5, %v3450
    %v3452 = vmul.f32 %v3447, %v3451
    %vm3453 = vweird.f32 %v3431
    %vm3454 = vweird.f32 %v3447
    %vm3455 = vmor %vm3453, %vm3454
    %v3456 = vsel %vm3455, %v3447, %v3452
    %v3457 = vrsqrt.pop %v3432
    %v3458 = vmul.f32 %v3457, %v3432
    %v3459 = vmul.f32 %v3458, %v3457
    %v3460 = vmul.f32 0.5, %v3459
    %v3461 = vsub.f32 1.5, %v3460
    %v3462 = vmul.f32 %v3457, %v3461
    %vm3463 = vweird.f32 %v3432
    %vm3464 = vweird.f32 %v3457
    %vm3465 = vmor %vm3463, %vm3464
    %v3466 = vsel %vm3465, %v3457, %v3462
    %v3467 = vrsqrt.pop %v3433
    %v3468 = vmul.f32 %v3467, %v3433
    %v3469 = vmul.f32 %v3468, %v3467
    %v3470 = vmul.f32 0.5, %v3469
    %v3471 = vsub.f32 1.5, %v3470
    %v3472 = vmul.f32 %v3467, %v3471
    %vm3473 = vweird.f32 %v3433
    %vm3474 = vweird.f32 %v3467
    %vm3475 = vmor %vm3473, %vm3474
    %v3476 = vsel %vm3475, %v3467, %v3472
    %v3477 = vrsqrt.pop %v3434
    %v3478 = vmul.f32 %v3477, %v3434
    %v3479 = vmul.f32 %v3478, %v3477
    %v3480 = vmul.f32 0.5, %v3479
    %v3481 = vsub.f32 1.5, %v3480
    %v3482 = vmul.f32 %v3477, %v3481
    %vm3483 = vweird.f32 %v3434
    %vm3484 = vweird.f32 %v3477
    %vm3485 = vmor %vm3483, %vm3484
    %v3486 = vsel %vm3485, %v3477, %v3482
    %v3487 = vrsqrt.pop %v3435
    %v3488 = vmul.f32 %v3487, %v3435
    %v3489 = vmul.f32 %v3488, %v3487
    %v3490 = vmul.f32 0.5, %v3489
    %v3491 = vsub.f32 1.5, %v3490
    %v3492 = vmul.f32 %v3487, %v3491
    %vm3493 = vweird.f32 %v3435
    %vm3494 = vweird.f32 %v3487
    %vm3495 = vmor %vm3493, %vm3494
    %v3496 = vsel %vm3495, %v3487, %v3492
    %v3497 = vrsqrt.pop %v3436
    %v3498 = vmul.f32 %v3497, %v3436
    %v3499 = vmul.f32 %v3498, %v3497
    %v3500 = vmul.f32 0.5, %v3499
    %v3501 = vsub.f32 1.5, %v3500
    %v3502 = vmul.f32 %v3497, %v3501
    %vm3503 = vweird.f32 %v3436
    %vm3504 = vweird.f32 %v3497
    %vm3505 = vmor %vm3503, %vm3504
    %v3506 = vsel %vm3505, %v3497, %v3502
    %v3507 = vrsqrt.pop %v3437
    %v3508 = vmul.f32 %v3507, %v3437
    %v3509 = vmul.f32 %v3508, %v3507
    %v3510 = vmul.f32 0.5, %v3509
    %v3511 = vsub.f32 1.5, %v3510
    %v3512 = vmul.f32 %v3507, %v3511
    %vm3513 = vweird.f32 %v3437
    %vm3514 = vweird.f32 %v3507
    %vm3515 = vmor %vm3513, %vm3514
    %v3516 = vsel %vm3515, %v3507, %v3512
    %v3517 = vrsqrt.pop %v3438
    %v3518 = vmul.f32 %v3517, %v3438
    %v3519 = vmul.f32 %v3518, %v3517
    %v3520 = vmul.f32 0.5, %v3519
    %v3521 = vsub.f32 1.5, %v3520
    %v3522 = vmul.f32 %v3517, %v3521
    %vm3523 = vweird.f32 %v3438
    %vm3524 = vweird.f32 %v3517
    %vm3525 = vmor %vm3523, %vm3524
    %v3526 = vsel %vm3525, %v3517, %v3522
    %v3527 = vrsqrt.pop %v3439
    %v3528 = vmul.f32 %v3527, %v3439
    %v3529 = vmul.f32 %v3528, %v3527
    %v3530 = vmul.f32 0.5, %v3529
    %v3531 = vsub.f32 1.5, %v3530
    %v3532 = vmul.f32 %v3527, %v3531
    %vm3533 = vweird.f32 %v3439
    %vm3534 = vweird.f32 %v3527
    %vm3535 = vmor %vm3533, %vm3534
    %v3536 = vsel %vm3535, %v3527, %v3532
    %v3537 = vrsqrt.pop %v3440
    %v3538 = vmul.f32 %v3537, %v3440
    %v3539 = vmul.f32 %v3538, %v3537
    %v3540 = vmul.f32 0.5, %v3539
    %v3541 = vsub.f32 1.5, %v3540
    %v3542 = vmul.f32 %v3537, %v3541
    %vm3543 = vweird.f32 %v3440
    %vm3544 = vweird.f32 %v3537
    %vm3545 = vmor %vm3543, %vm3544
    %v3546 = vsel %vm3545, %v3537, %v3542
    %v3547 = vrsqrt.pop %v3441
    %v3548 = vmul.f32 %v3547, %v3441
    %v3549 = vmul.f32 %v3548, %v3547
    %v3550 = vmul.f32 0.5, %v3549
    %v3551 = vsub.f32 1.5, %v3550
    %v3552 = vmul.f32 %v3547, %v3551
    %vm3553 = vweird.f32 %v3441
    %vm3554 = vweird.f32 %v3547
    %vm3555 = vmor %vm3553, %vm3554
    %v3556 = vsel %vm3555, %v3547, %v3552
    %v3557 = vrsqrt.pop %v3442
    %v3558 = vmul.f32 %v3557, %v3442
    %v3559 = vmul.f32 %v3558, %v3557
    %v3560 = vmul.f32 0.5, %v3559
    %v3561 = vsub.f32 1.5, %v3560
    %v3562 = vmul.f32 %v3557, %v3561
    %vm3563 = vweird.f32 %v3442
    %vm3564 = vweird.f32 %v3557
    %vm3565 = vmor %vm3563, %vm3564
    %v3566 = vsel %vm3565, %v3557, %v3562
    %v3567 = vrsqrt.pop %v3443
    %v3568 = vmul.f32 %v3567, %v3443
    %v3569 = vmul.f32 %v3568, %v3567
    %v3570 = vmul.f32 0.5, %v3569
    %v3571 = vsub.f32 1.5, %v3570
    %v3572 = vmul.f32 %v3567, %v3571
    %vm3573 = vweird.f32 %v3443
    %vm3574 = vweird.f32 %v3567
    %vm3575 = vmor %vm3573, %vm3574
    %v3576 = vsel %vm3575, %v3567, %v3572
    %v3577 = vrsqrt.pop %v3444
    %v3578 = vmul.f32 %v3577, %v3444
    %v3579 = vmul.f32 %v3578, %v3577
    %v3580 = vmul.f32 0.5, %v3579
    %v3581 = vsub.f32 1.5, %v3580
    %v3582 = vmul.f32 %v3577, %v3581
    %vm3583 = vweird.f32 %v3444
    %vm3584 = vweird.f32 %v3577
    %vm3585 = vmor %vm3583, %vm3584
    %v3586 = vsel %vm3585, %v3577, %v3582
    %v3587 = vrsqrt.pop %v3445
    %v3588 = vmul.f32 %v3587, %v3445
    %v3589 = vmul.f32 %v3588, %v3587
    %v3590 = vmul.f32 0.5, %v3589
    %v3591 = vsub.f32 1.5, %v3590
    %v3592 = vmul.f32 %v3587, %v3591
    %vm3593 = vweird.f32 %v3445
    %vm3594 = vweird.f32 %v3587
    %vm3595 = vmor %vm3593, %vm3594
    %v3596 = vsel %vm3595, %v3587, %v3592
    %v3597 = vrsqrt.pop %v3446
    %v3598 = vmul.f32 %v3597, %v3446
    %v3599 = vmul.f32 %v3598, %v3597
    %v3600 = vmul.f32 0.5, %v3599
    %v3601 = vsub.f32 1.5, %v3600
    %v3602 = vmul.f32 %v3597, %v3601
    %vm3603 = vweird.f32 %v3446
    %vm3604 = vweird.f32 %v3597
    %vm3605 = vmor %vm3603, %vm3604
    %v3606 = vsel %vm3605, %v3597, %v3602
    %v3607 = vmul.f32 %v3383, %v3456
    %v3608 = vmul.f32 %v3384, %v3466
    %v3609 = vmul.f32 %v3385, %v3476
    %v3610 = vmul.f32 %v3386, %v3486
    %v3611 = vmul.f32 %v3387, %v3496
    %v3612 = vmul.f32 %v3388, %v3506
    %v3613 = vmul.f32 %v3389, %v3516
    %v3614 = vmul.f32 %v3390, %v3526
    %v3615 = vmul.f32 %v3391, %v3536
    %v3616 = vmul.f32 %v3392, %v3546
    %v3617 = vmul.f32 %v3393, %v3556
    %v3618 = vmul.f32 %v3394, %v3566
    %v3619 = vmul.f32 %v3395, %v3576
    %v3620 = vmul.f32 %v3396, %v3586
    %v3621 = vmul.f32 %v3397, %v3596
    %v3622 = vmul.f32 %v3398, %v3606
    %v3623 = vperm.slane %v149, 6
    %v3624 = vmul.f32 %v3607, %v3623
    %v3625 = vmul.f32 %v3608, %v3623
    %v3626 = vmul.f32 %v3609, %v3623
    %v3627 = vmul.f32 %v3610, %v3623
    %v3628 = vmul.f32 %v3611, %v3623
    %v3629 = vmul.f32 %v3612, %v3623
    %v3630 = vmul.f32 %v3613, %v3623
    %v3631 = vmul.f32 %v3614, %v3623
    %v3632 = vmul.f32 %v3615, %v3623
    %v3633 = vmul.f32 %v3616, %v3623
    %v3634 = vmul.f32 %v3617, %v3623
    %v3635 = vmul.f32 %v3618, %v3623
    %v3636 = vmul.f32 %v3619, %v3623
    %v3637 = vmul.f32 %v3620, %v3623
    %v3638 = vmul.f32 %v3621, %v3623
    %v3639 = vmul.f32 %v3622, %v3623
    %v3640 = vperm.slane %v149, 7
    %v3641 = vadd.f32 %v3624, %v3640
    %v3642 = vadd.f32 %v3625, %v3640
    %v3643 = vadd.f32 %v3626, %v3640
    %v3644 = vadd.f32 %v3627, %v3640
    %v3645 = vadd.f32 %v3628, %v3640
    %v3646 = vadd.f32 %v3629, %v3640
    %v3647 = vadd.f32 %v3630, %v3640
    %v3648 = vadd.f32 %v3631, %v3640
    %v3649 = vadd.f32 %v3632, %v3640
    %v3650 = vadd.f32 %v3633, %v3640
    %v3651 = vadd.f32 %v3634, %v3640
    %v3652 = vadd.f32 %v3635, %v3640
    %v3653 = vadd.f32 %v3636, %v3640
    %v3654 = vadd.f32 %v3637, %v3640
    %v3655 = vadd.f32 %v3638, %v3640
    %v3656 = vadd.f32 %v3639, %v3640
    %v3657 = vld [vmem:[%s1] sm:$0xff]
    %v3658 = vld [vmem:[%s1 + $0x8] sm:$0xff]
    %v3659 = vperm.slane %v3657, 0
    %v3660 = vlaneseq
    %v3661 = vshrl.u32 %v3660, 7
    %3663 = vset.pattern.permute.xlu0 %v3661
    %3664 = vperm.xlu0 %3663, %v3659
    %v3665 = vpop.permute.xlu0 %3664
    %v3666 = vperm.slane %v3657, 1
    %v3667 = vlaneseq
    %v3668 = vshrl.u32 %v3667, 7
    %3670 = vset.pattern.permute.xlu0 %v3668
    %3671 = vperm.xlu0 %3670, %v3666
    %v3672 = vpop.permute.xlu0 %3671
    %v3673 = vperm.slane %v3657, 2
    %v3674 = vlaneseq
    %v3675 = vshrl.u32 %v3674, 7
    %3677 = vset.pattern.permute.xlu0 %v3675
    %3678 = vperm.xlu0 %3677, %v3673
    %v3679 = vpop.permute.xlu0 %3678
    %v3680 = vperm.slane %v3657, 3
    %v3681 = vlaneseq
    %v3682 = vshrl.u32 %v3681, 7
    %3684 = vset.pattern.permute.xlu0 %v3682
    %3685 = vperm.xlu0 %3684, %v3680
    %v3686 = vpop.permute.xlu0 %3685
    %v3687 = vperm.slane %v3657, 4
    %v3688 = vlaneseq
    %v3689 = vshrl.u32 %v3688, 7
    %3691 = vset.pattern.permute.xlu0 %v3689
    %3692 = vperm.xlu0 %3691, %v3687
    %v3693 = vpop.permute.xlu0 %3692
    %v3694 = vperm.slane %v3657, 5
    %v3695 = vlaneseq
    %v3696 = vshrl.u32 %v3695, 7
    %3698 = vset.pattern.permute.xlu0 %v3696
    %3699 = vperm.xlu0 %3698, %v3694
    %v3700 = vpop.permute.xlu0 %3699
    %v3701 = vperm.slane %v3657, 6
    %v3702 = vlaneseq
    %v3703 = vshrl.u32 %v3702, 7
    %3705 = vset.pattern.permute.xlu0 %v3703
    %3706 = vperm.xlu0 %3705, %v3701
    %v3707 = vpop.permute.xlu0 %3706
    %v3708 = vperm.slane %v3657, 7
    %v3709 = vlaneseq
    %v3710 = vshrl.u32 %v3709, 7
    %3712 = vset.pattern.permute.xlu0 %v3710
    %3713 = vperm.xlu0 %3712, %v3708
    %v3714 = vpop.permute.xlu0 %3713
    %v3715 = vperm.slane %v3658, 0
    %v3716 = vlaneseq
    %v3717 = vshrl.u32 %v3716, 7
    %3719 = vset.pattern.permute.xlu0 %v3717
    %3720 = vperm.xlu0 %3719, %v3715
    %v3721 = vpop.permute.xlu0 %3720
    %v3722 = vperm.slane %v3658, 1
    %v3723 = vlaneseq
    %v3724 = vshrl.u32 %v3723, 7
    %3726 = vset.pattern.permute.xlu0 %v3724
    %3727 = vperm.xlu0 %3726, %v3722
    %v3728 = vpop.permute.xlu0 %3727
    %v3729 = vperm.slane %v3658, 2
    %v3730 = vlaneseq
    %v3731 = vshrl.u32 %v3730, 7
    %3733 = vset.pattern.permute.xlu0 %v3731
    %3734 = vperm.xlu0 %3733, %v3729
    %v3735 = vpop.permute.xlu0 %3734
    %v3736 = vperm.slane %v3658, 3
    %v3737 = vlaneseq
    %v3738 = vshrl.u32 %v3737, 7
    %3740 = vset.pattern.permute.xlu0 %v3738
    %3741 = vperm.xlu0 %3740, %v3736
    %v3742 = vpop.permute.xlu0 %3741
    %v3743 = vperm.slane %v3658, 4
    %v3744 = vlaneseq
    %v3745 = vshrl.u32 %v3744, 7
    %3747 = vset.pattern.permute.xlu0 %v3745
    %3748 = vperm.xlu0 %3747, %v3743
    %v3749 = vpop.permute.xlu0 %3748
    %v3750 = vperm.slane %v3658, 5
    %v3751 = vlaneseq
    %v3752 = vshrl.u32 %v3751, 7
    %3754 = vset.pattern.permute.xlu0 %v3752
    %3755 = vperm.xlu0 %3754, %v3750
    %v3756 = vpop.permute.xlu0 %3755
    %v3757 = vperm.slane %v3658, 6
    %v3758 = vlaneseq
    %v3759 = vshrl.u32 %v3758, 7
    %3761 = vset.pattern.permute.xlu0 %v3759
    %3762 = vperm.xlu0 %3761, %v3757
    %v3763 = vpop.permute.xlu0 %3762
    %v3764 = vperm.slane %v3658, 7
    %v3765 = vlaneseq
    %v3766 = vshrl.u32 %v3765, 7
    %3768 = vset.pattern.permute.xlu0 %v3766
    %3769 = vperm.xlu0 %3768, %v3764
    %v3770 = vpop.permute.xlu0 %3769
    %v3771 = vmul.f32 %v3641, %v3665
    %v3772 = vmul.f32 %v3642, %v3672
    %v3773 = vmul.f32 %v3643, %v3679
    %v3774 = vmul.f32 %v3644, %v3686
    %v3775 = vmul.f32 %v3645, %v3693
    %v3776 = vmul.f32 %v3646, %v3700
    %v3777 = vmul.f32 %v3647, %v3707
    %v3778 = vmul.f32 %v3648, %v3714
    %v3779 = vmul.f32 %v3649, %v3721
    %v3780 = vmul.f32 %v3650, %v3728
    %v3781 = vmul.f32 %v3651, %v3735
    %v3782 = vmul.f32 %v3652, %v3742
    %v3783 = vmul.f32 %v3653, %v3749
    %v3784 = vmul.f32 %v3654, %v3756
    %v3785 = vmul.f32 %v3655, %v3763
    %v3786 = vmul.f32 %v3656, %v3770
    %v3787 = vsel %vm323, %v3771, 0.0
    %v3788 = vrot.slane %v3787, 4
    %v3789 = vadd.f32 %v3787, %v3788
    %v3790 = vrot.slane %v3789, 2
    %v3791 = vadd.f32 %v3789, %v3790
    %v3792 = vrot.slane %v3791, 1
    %v3793 = vadd.f32 %v3791, %v3792
    %v3794 = vsel %vm323, %v3772, 0.0
    %v3795 = vrot.slane %v3794, 4
    %v3796 = vadd.f32 %v3794, %v3795
    %v3797 = vrot.slane %v3796, 2
    %v3798 = vadd.f32 %v3796, %v3797
    %v3799 = vrot.slane %v3798, 1
    %v3800 = vadd.f32 %v3798, %v3799
    %v3801 = vsel %vm323, %v3773, 0.0
    %v3802 = vrot.slane %v3801, 4
    %v3803 = vadd.f32 %v3801, %v3802
    %v3804 = vrot.slane %v3803, 2
    %v3805 = vadd.f32 %v3803, %v3804
    %v3806 = vrot.slane %v3805, 1
    %v3807 = vadd.f32 %v3805, %v3806
    %v3808 = vsel %vm323, %v3774, 0.0
    %v3809 = vrot.slane %v3808, 4
    %v3810 = vadd.f32 %v3808, %v3809
    %v3811 = vrot.slane %v3810, 2
    %v3812 = vadd.f32 %v3810, %v3811
    %v3813 = vrot.slane %v3812, 1
    %v3814 = vadd.f32 %v3812, %v3813
    %v3815 = vsel %vm323, %v3775, 0.0
    %v3816 = vrot.slane %v3815, 4
    %v3817 = vadd.f32 %v3815, %v3816
    %v3818 = vrot.slane %v3817, 2
    %v3819 = vadd.f32 %v3817, %v3818
    %v3820 = vrot.slane %v3819, 1
    %v3821 = vadd.f32 %v3819, %v3820
    %v3822 = vsel %vm323, %v3776, 0.0
    %v3823 = vrot.slane %v3822, 4
    %v3824 = vadd.f32 %v3822, %v3823
    %v3825 = vrot.slane %v3824, 2
    %v3826 = vadd.f32 %v3824, %v3825
    %v3827 = vrot.slane %v3826, 1
    %v3828 = vadd.f32 %v3826, %v3827
    %v3829 = vsel %vm323, %v3777, 0.0
    %v3830 = vrot.slane %v3829, 4
    %v3831 = vadd.f32 %v3829, %v3830
    %v3832 = vrot.slane %v3831, 2
    %v3833 = vadd.f32 %v3831, %v3832
    %v3834 = vrot.slane %v3833, 1
    %v3835 = vadd.f32 %v3833, %v3834
    %v3836 = vsel %vm323, %v3778, 0.0
    %v3837 = vrot.slane %v3836, 4
    %v3838 = vadd.f32 %v3836, %v3837
    %v3839 = vrot.slane %v3838, 2
    %v3840 = vadd.f32 %v3838, %v3839
    %v3841 = vrot.slane %v3840, 1
    %v3842 = vadd.f32 %v3840, %v3841
    %v3843 = vsel %vm323, %v3779, 0.0
    %v3844 = vrot.slane %v3843, 4
    %v3845 = vadd.f32 %v3843, %v3844
    %v3846 = vrot.slane %v3845, 2
    %v3847 = vadd.f32 %v3845, %v3846
    %v3848 = vrot.slane %v3847, 1
    %v3849 = vadd.f32 %v3847, %v3848
    %v3850 = vsel %vm323, %v3780, 0.0
    %v3851 = vrot.slane %v3850, 4
    %v3852 = vadd.f32 %v3850, %v3851
    %v3853 = vrot.slane %v3852, 2
    %v3854 = vadd.f32 %v3852, %v3853
    %v3855 = vrot.slane %v3854, 1
    %v3856 = vadd.f32 %v3854, %v3855
    %v3857 = vsel %vm323, %v3781, 0.0
    %v3858 = vrot.slane %v3857, 4
    %v3859 = vadd.f32 %v3857, %v3858
    %v3860 = vrot.slane %v3859, 2
    %v3861 = vadd.f32 %v3859, %v3860
    %v3862 = vrot.slane %v3861, 1
    %v3863 = vadd.f32 %v3861, %v3862
    %v3864 = vsel %vm323, %v3782, 0.0
    %v3865 = vrot.slane %v3864, 4
    %v3866 = vadd.f32 %v3864, %v3865
    %v3867 = vrot.slane %v3866, 2
    %v3868 = vadd.f32 %v3866, %v3867
    %v3869 = vrot.slane %v3868, 1
    %v3870 = vadd.f32 %v3868, %v3869
    %v3871 = vsel %vm323, %v3783, 0.0
    %v3872 = vrot.slane %v3871, 4
    %v3873 = vadd.f32 %v3871, %v3872
    %v3874 = vrot.slane %v3873, 2
    %v3875 = vadd.f32 %v3873, %v3874
    %v3876 = vrot.slane %v3875, 1
    %v3877 = vadd.f32 %v3875, %v3876
    %v3878 = vsel %vm323, %v3784, 0.0
    %v3879 = vrot.slane %v3878, 4
    %v3880 = vadd.f32 %v3878, %v3879
    %v3881 = vrot.slane %v3880, 2
    %v3882 = vadd.f32 %v3880, %v3881
    %v3883 = vrot.slane %v3882, 1
    %v3884 = vadd.f32 %v3882, %v3883
    %v3885 = vsel %vm323, %v3785, 0.0
    %v3886 = vrot.slane %v3885, 4
    %v3887 = vadd.f32 %v3885, %v3886
    %v3888 = vrot.slane %v3887, 2
    %v3889 = vadd.f32 %v3887, %v3888
    %v3890 = vrot.slane %v3889, 1
    %v3891 = vadd.f32 %v3889, %v3890
    %v3892 = vsel %vm323, %v3786, 0.0
    %v3893 = vrot.slane %v3892, 4
    %v3894 = vadd.f32 %v3892, %v3893
    %v3895 = vrot.slane %v3894, 2
    %v3896 = vadd.f32 %v3894, %v3895
    %v3897 = vrot.slane %v3896, 1
    %v3898 = vadd.f32 %v3896, %v3897
    %v3899 = vsel %vm167, %v3657, 0.0
    %3900 = vadd.xlane.f32.xlu0 %v3899
    %v3901 = vpop.xlane.xlu0 %3900
    %v3902 = vsel %vm167, %v3658, 0.0
    %3903 = vadd.xlane.f32.xlu0 %v3902
    %v3904 = vpop.xlane.xlu0 %3903
    %v3907 = vrot.slane %v3901, 1
    %v3908 = vrot.slane %v3901, 2
    %v3909 = vrot.slane %v3901, 3
    %v3910 = vrot.slane %v3901, 4
    %v3911 = vrot.slane %v3901, 5
    %v3912 = vrot.slane %v3901, 6
    %v3913 = vrot.slane %v3901, 7
    %v3914 = vrot.slane %v3904, 1
    %v3915 = vrot.slane %v3904, 2
    %v3916 = vrot.slane %v3904, 3
    %v3917 = vrot.slane %v3904, 4
    %v3918 = vrot.slane %v3904, 5
    %v3919 = vrot.slane %v3904, 6
    %v3920 = vrot.slane %v3904, 7
    %v3937 = vrcp.pop %v3901
    %v3938 = vmul.f32 %v3901, %v3937
    %v3939 = vsub.f32 1.0, %v3938
    %v3940 = vmul.f32 %v3937, %v3939
    %v3941 = vadd.f32 %v3937, %v3940
    %vm3942 = vweird.f32 %v3901
    %vm3943 = vweird.f32 %v3937
    %vm3944 = vmor %vm3942, %vm3943
    %v3945 = vsel %vm3944, %v3937, %v3941
    %v3946 = vand.u32 2147483647, %v3901
    %vm3947 = vcmp.eq.f32.partialorder %v3946, 8.507059e+37
    %v3948 = vand.u32 %v3901, 2147483648
    %v3949 = vor.u32 1.1754944e-38, %v3948
    %v3950 = vsel %vm3947, %v3949, %v3945
    %v3951 = vmul.f32 %v3793, %v3950
    %v3952 = vrcp.pop %v3907
    %v3953 = vmul.f32 %v3907, %v3952
    %v3954 = vsub.f32 1.0, %v3953
    %v3955 = vmul.f32 %v3952, %v3954
    %v3956 = vadd.f32 %v3952, %v3955
    %vm3957 = vweird.f32 %v3907
    %vm3958 = vweird.f32 %v3952
    %vm3959 = vmor %vm3957, %vm3958
    %v3960 = vsel %vm3959, %v3952, %v3956
    %v3961 = vand.u32 2147483647, %v3907
    %vm3962 = vcmp.eq.f32.partialorder %v3961, 8.507059e+37
    %v3963 = vand.u32 %v3907, 2147483648
    %v3964 = vor.u32 1.1754944e-38, %v3963
    %v3965 = vsel %vm3962, %v3964, %v3960
    %v3966 = vmul.f32 %v3800, %v3965
    %v3967 = vrcp.pop %v3908
    %v3968 = vmul.f32 %v3908, %v3967
    %v3969 = vsub.f32 1.0, %v3968
    %v3970 = vmul.f32 %v3967, %v3969
    %v3971 = vadd.f32 %v3967, %v3970
    %vm3972 = vweird.f32 %v3908
    %vm3973 = vweird.f32 %v3967
    %vm3974 = vmor %vm3972, %vm3973
    %v3975 = vsel %vm3974, %v3967, %v3971
    %v3976 = vand.u32 2147483647, %v3908
    %vm3977 = vcmp.eq.f32.partialorder %v3976, 8.507059e+37
    %v3978 = vand.u32 %v3908, 2147483648
    %v3979 = vor.u32 1.1754944e-38, %v3978
    %v3980 = vsel %vm3977, %v3979, %v3975
    %v3981 = vmul.f32 %v3807, %v3980
    %v3982 = vrcp.pop %v3909
    %v3983 = vmul.f32 %v3909, %v3982
    %v3984 = vsub.f32 1.0, %v3983
    %v3985 = vmul.f32 %v3982, %v3984
    %v3986 = vadd.f32 %v3982, %v3985
    %vm3987 = vweird.f32 %v3909
    %vm3988 = vweird.f32 %v3982
    %vm3989 = vmor %vm3987, %vm3988
    %v3990 = vsel %vm3989, %v3982, %v3986
    %v3991 = vand.u32 2147483647, %v3909
    %vm3992 = vcmp.eq.f32.partialorder %v3991, 8.507059e+37
    %v3993 = vand.u32 %v3909, 2147483648
    %v3994 = vor.u32 1.1754944e-38, %v3993
    %v3995 = vsel %vm3992, %v3994, %v3990
    %v3996 = vmul.f32 %v3814, %v3995
    %v3997 = vrcp.pop %v3910
    %v3998 = vmul.f32 %v3910, %v3997
    %v3999 = vsub.f32 1.0, %v3998
    %v4000 = vmul.f32 %v3997, %v3999
    %v4001 = vadd.f32 %v3997, %v4000
    %vm4002 = vweird.f32 %v3910
    %vm4003 = vweird.f32 %v3997
    %vm4004 = vmor %vm4002, %vm4003
    %v4005 = vsel %vm4004, %v3997, %v4001
    %v4006 = vand.u32 2147483647, %v3910
    %vm4007 = vcmp.eq.f32.partialorder %v4006, 8.507059e+37
    %v4008 = vand.u32 %v3910, 2147483648
    %v4009 = vor.u32 1.1754944e-38, %v4008
    %v4010 = vsel %vm4007, %v4009, %v4005
    %v4011 = vmul.f32 %v3821, %v4010
    %v4012 = vrcp.pop %v3911
    %v4013 = vmul.f32 %v3911, %v4012
    %v4014 = vsub.f32 1.0, %v4013
    %v4015 = vmul.f32 %v4012, %v4014
    %v4016 = vadd.f32 %v4012, %v4015
    %vm4017 = vweird.f32 %v3911
    %vm4018 = vweird.f32 %v4012
    %vm4019 = vmor %vm4017, %vm4018
    %v4020 = vsel %vm4019, %v4012, %v4016
    %v4021 = vand.u32 2147483647, %v3911
    %vm4022 = vcmp.eq.f32.partialorder %v4021, 8.507059e+37
    %v4023 = vand.u32 %v3911, 2147483648
    %v4024 = vor.u32 1.1754944e-38, %v4023
    %v4025 = vsel %vm4022, %v4024, %v4020
    %v4026 = vmul.f32 %v3828, %v4025
    %v4027 = vrcp.pop %v3912
    %v4028 = vmul.f32 %v3912, %v4027
    %v4029 = vsub.f32 1.0, %v4028
    %v4030 = vmul.f32 %v4027, %v4029
    %v4031 = vadd.f32 %v4027, %v4030
    %vm4032 = vweird.f32 %v3912
    %vm4033 = vweird.f32 %v4027
    %vm4034 = vmor %vm4032, %vm4033
    %v4035 = vsel %vm4034, %v4027, %v4031
    %v4036 = vand.u32 2147483647, %v3912
    %vm4037 = vcmp.eq.f32.partialorder %v4036, 8.507059e+37
    %v4038 = vand.u32 %v3912, 2147483648
    %v4039 = vor.u32 1.1754944e-38, %v4038
    %v4040 = vsel %vm4037, %v4039, %v4035
    %v4041 = vmul.f32 %v3835, %v4040
    %v4042 = vrcp.pop %v3913
    %v4043 = vmul.f32 %v3913, %v4042
    %v4044 = vsub.f32 1.0, %v4043
    %v4045 = vmul.f32 %v4042, %v4044
    %v4046 = vadd.f32 %v4042, %v4045
    %vm4047 = vweird.f32 %v3913
    %vm4048 = vweird.f32 %v4042
    %vm4049 = vmor %vm4047, %vm4048
    %v4050 = vsel %vm4049, %v4042, %v4046
    %v4051 = vand.u32 2147483647, %v3913
    %vm4052 = vcmp.eq.f32.partialorder %v4051, 8.507059e+37
    %v4053 = vand.u32 %v3913, 2147483648
    %v4054 = vor.u32 1.1754944e-38, %v4053
    %v4055 = vsel %vm4052, %v4054, %v4050
    %v4056 = vmul.f32 %v3842, %v4055
    %v4057 = vrcp.pop %v3904
    %v4058 = vmul.f32 %v3904, %v4057
    %v4059 = vsub.f32 1.0, %v4058
    %v4060 = vmul.f32 %v4057, %v4059
    %v4061 = vadd.f32 %v4057, %v4060
    %vm4062 = vweird.f32 %v3904
    %vm4063 = vweird.f32 %v4057
    %vm4064 = vmor %vm4062, %vm4063
    %v4065 = vsel %vm4064, %v4057, %v4061
    %v4066 = vand.u32 2147483647, %v3904
    %vm4067 = vcmp.eq.f32.partialorder %v4066, 8.507059e+37
    %v4068 = vand.u32 %v3904, 2147483648
    %v4069 = vor.u32 1.1754944e-38, %v4068
    %v4070 = vsel %vm4067, %v4069, %v4065
    %v4071 = vmul.f32 %v3849, %v4070
    %v4072 = vrcp.pop %v3914
    %v4073 = vmul.f32 %v3914, %v4072
    %v4074 = vsub.f32 1.0, %v4073
    %v4075 = vmul.f32 %v4072, %v4074
    %v4076 = vadd.f32 %v4072, %v4075
    %vm4077 = vweird.f32 %v3914
    %vm4078 = vweird.f32 %v4072
    %vm4079 = vmor %vm4077, %vm4078
    %v4080 = vsel %vm4079, %v4072, %v4076
    %v4081 = vand.u32 2147483647, %v3914
    %vm4082 = vcmp.eq.f32.partialorder %v4081, 8.507059e+37
    %v4083 = vand.u32 %v3914, 2147483648
    %v4084 = vor.u32 1.1754944e-38, %v4083
    %v4085 = vsel %vm4082, %v4084, %v4080
    %v4086 = vmul.f32 %v3856, %v4085
    %v4087 = vrcp.pop %v3915
    %v4088 = vmul.f32 %v3915, %v4087
    %v4089 = vsub.f32 1.0, %v4088
    %v4090 = vmul.f32 %v4087, %v4089
    %v4091 = vadd.f32 %v4087, %v4090
    %vm4092 = vweird.f32 %v3915
    %vm4093 = vweird.f32 %v4087
    %vm4094 = vmor %vm4092, %vm4093
    %v4095 = vsel %vm4094, %v4087, %v4091
    %v4096 = vand.u32 2147483647, %v3915
    %vm4097 = vcmp.eq.f32.partialorder %v4096, 8.507059e+37
    %v4098 = vand.u32 %v3915, 2147483648
    %v4099 = vor.u32 1.1754944e-38, %v4098
    %v4100 = vsel %vm4097, %v4099, %v4095
    %v4101 = vmul.f32 %v3863, %v4100
    %v4102 = vrcp.pop %v3916
    %v4103 = vmul.f32 %v3916, %v4102
    %v4104 = vsub.f32 1.0, %v4103
    %v4105 = vmul.f32 %v4102, %v4104
    %v4106 = vadd.f32 %v4102, %v4105
    %vm4107 = vweird.f32 %v3916
    %vm4108 = vweird.f32 %v4102
    %vm4109 = vmor %vm4107, %vm4108
    %v4110 = vsel %vm4109, %v4102, %v4106
    %v4111 = vand.u32 2147483647, %v3916
    %vm4112 = vcmp.eq.f32.partialorder %v4111, 8.507059e+37
    %v4113 = vand.u32 %v3916, 2147483648
    %v4114 = vor.u32 1.1754944e-38, %v4113
    %v4115 = vsel %vm4112, %v4114, %v4110
    %v4116 = vmul.f32 %v3870, %v4115
    %v4117 = vrcp.pop %v3917
    %v4118 = vmul.f32 %v3917, %v4117
    %v4119 = vsub.f32 1.0, %v4118
    %v4120 = vmul.f32 %v4117, %v4119
    %v4121 = vadd.f32 %v4117, %v4120
    %vm4122 = vweird.f32 %v3917
    %vm4123 = vweird.f32 %v4117
    %vm4124 = vmor %vm4122, %vm4123
    %v4125 = vsel %vm4124, %v4117, %v4121
    %v4126 = vand.u32 2147483647, %v3917
    %vm4127 = vcmp.eq.f32.partialorder %v4126, 8.507059e+37
    %v4128 = vand.u32 %v3917, 2147483648
    %v4129 = vor.u32 1.1754944e-38, %v4128
    %v4130 = vsel %vm4127, %v4129, %v4125
    %v4131 = vmul.f32 %v3877, %v4130
    %v4132 = vrcp.pop %v3918
    %v4133 = vmul.f32 %v3918, %v4132
    %v4134 = vsub.f32 1.0, %v4133
    %v4135 = vmul.f32 %v4132, %v4134
    %v4136 = vadd.f32 %v4132, %v4135
    %vm4137 = vweird.f32 %v3918
    %vm4138 = vweird.f32 %v4132
    %vm4139 = vmor %vm4137, %vm4138
    %v4140 = vsel %vm4139, %v4132, %v4136
    %v4141 = vand.u32 2147483647, %v3918
    %vm4142 = vcmp.eq.f32.partialorder %v4141, 8.507059e+37
    %v4143 = vand.u32 %v3918, 2147483648
    %v4144 = vor.u32 1.1754944e-38, %v4143
    %v4145 = vsel %vm4142, %v4144, %v4140
    %v4146 = vmul.f32 %v3884, %v4145
    %v4147 = vrcp.pop %v3919
    %v4148 = vmul.f32 %v3919, %v4147
    %v4149 = vsub.f32 1.0, %v4148
    %v4150 = vmul.f32 %v4147, %v4149
    %v4151 = vadd.f32 %v4147, %v4150
    %vm4152 = vweird.f32 %v3919
    %vm4153 = vweird.f32 %v4147
    %vm4154 = vmor %vm4152, %vm4153
    %v4155 = vsel %vm4154, %v4147, %v4151
    %v4156 = vand.u32 2147483647, %v3919
    %vm4157 = vcmp.eq.f32.partialorder %v4156, 8.507059e+37
    %v4158 = vand.u32 %v3919, 2147483648
    %v4159 = vor.u32 1.1754944e-38, %v4158
    %v4160 = vsel %vm4157, %v4159, %v4155
    %v4161 = vmul.f32 %v3891, %v4160
    %v4162 = vrcp.pop %v3920
    %v4163 = vmul.f32 %v3920, %v4162
    %v4164 = vsub.f32 1.0, %v4163
    %v4165 = vmul.f32 %v4162, %v4164
    %v4166 = vadd.f32 %v4162, %v4165
    %vm4167 = vweird.f32 %v3920
    %vm4168 = vweird.f32 %v4162
    %vm4169 = vmor %vm4167, %vm4168
    %v4170 = vsel %vm4169, %v4162, %v4166
    %v4171 = vand.u32 2147483647, %v3920
    %vm4172 = vcmp.eq.f32.partialorder %v4171, 8.507059e+37
    %v4173 = vand.u32 %v3920, 2147483648
    %v4174 = vor.u32 1.1754944e-38, %v4173
    %v4175 = vsel %vm4172, %v4174, %v4170
    %v4176 = vmul.f32 %v3898, %v4175
    %v4177 = vmax.f32 %v3951, 0.0
    %v4178 = vmax.f32 %v3966, 0.0
    %v4179 = vmax.f32 %v3981, 0.0
    %v4180 = vmax.f32 %v3996, 0.0
    %v4181 = vmax.f32 %v4011, 0.0
    %v4182 = vmax.f32 %v4026, 0.0
    %v4183 = vmax.f32 %v4041, 0.0
    %v4184 = vmax.f32 %v4056, 0.0
    %v4185 = vmax.f32 %v4071, 0.0
    %v4186 = vmax.f32 %v4086, 0.0
    %v4187 = vmax.f32 %v4101, 0.0
    %v4188 = vmax.f32 %v4116, 0.0
    %v4189 = vmax.f32 %v4131, 0.0
    %v4190 = vmax.f32 %v4146, 0.0
    %v4191 = vmax.f32 %v4161, 0.0
    %v4192 = vmax.f32 %v4176, 0.0
    %v4209 = vrot.slane %v4178, 7
    %vm4210 = vcmask 1041409
    %v4211 = vsel %vm4210, %v4209, %v4177
    %v4212 = vrot.slane %v4179, 6
    %vm4213 = vcmask 1042434
    %v4214 = vsel %vm4213, %v4212, %v4211
    %v4215 = vrot.slane %v4180, 5
    %vm4216 = vcmask 1043459
    %v4217 = vsel %vm4216, %v4215, %v4214
    %v4218 = vrot.slane %v4181, 4
    %vm4219 = vcmask 1044484
    %v4220 = vsel %vm4219, %v4218, %v4217
    %v4221 = vrot.slane %v4182, 3
    %vm4222 = vcmask 1045509
    %v4223 = vsel %vm4222, %v4221, %v4220
    %v4224 = vrot.slane %v4183, 2
    %vm4225 = vcmask 1046534
    %v4226 = vsel %vm4225, %v4224, %v4223
    %v4227 = vrot.slane %v4184, 1
    %vm4228 = vcmask 1047559
    %v4229 = vsel %vm4228, %v4227, %v4226
    %v4230 = vrot.slane %v4186, 7
    %v4231 = vsel %vm4210, %v4230, %v4185
    %v4232 = vrot.slane %v4187, 6
    %v4233 = vsel %vm4213, %v4232, %v4231
    %v4234 = vrot.slane %v4188, 5
    %v4235 = vsel %vm4216, %v4234, %v4233
    %v4236 = vrot.slane %v4189, 4
    %v4237 = vsel %vm4219, %v4236, %v4235
    %v4238 = vrot.slane %v4190, 3
    %v4239 = vsel %vm4222, %v4238, %v4237
    %v4240 = vrot.slane %v4191, 2
    %v4241 = vsel %vm4225, %v4240, %v4239
    %v4242 = vrot.slane %v4192, 1
    %v4243 = vsel %vm4228, %v4242, %v4241
    %4246 = vst.msk [vmem:[#allocation14] sm:$0xff] %vm323, %v4229
    %4247 = vst.msk [vmem:[#allocation14 + $0x8] sm:$0xff] %vm323, %v4243
    // Predicated region
    $region90: #{tpu_custom_call.1} parent=1 // pred_check
      _
    $region91: #{tpu_custom_call.1} parent=1 // pred_check_branch
      %4249 = sbr.rel (0) target = $region93
    $region92: #{tpu_custom_call.1} parent=1 // pred_region
      %4251 = vsyncadd [#allocation4], 0
      %s4252 = sshll.u32 [#allocation14], 4
      %s4253 = int_to_ptr.vmem [resolvable:$true] %s4252
      %s4254 = sshll.u32 %s15, 4
      %s4255 = int_to_ptr.hbm [resolvable:$true] %s4254
      %4260 = dma.vmem_to_hbm [thread:$0]  %s4253, 256, %s4255, [#allocation4], 128, 128, 8
    $region93: #{tpu_custom_call.1} parent=1 // pred_fallthru
      _
    // Predicated region
    $region94: #{tpu_custom_call.1} parent=1 // pred_check
      _
    $region95: #{tpu_custom_call.1} parent=1 // pred_check_branch
      %4262 = sbr.rel (0) target = $region97
    $region96: #{tpu_custom_call.1} parent=1 // pred_region
      %4264 = dma.done [#allocation4], 256
    $region97: #{tpu_custom_call.1} parent=1 // pred_fallthru
      _
    %4265 = vsyncpa [#allocation3], 1
    %4266 = vsyncpa [#allocation6], 1
    %4267 = vsyncpa [#allocation9], 1
    %4268 = vsyncpa [#allocation12], 1
    %4269 = vsyncpa [#allocation4], 1

</llo_original>
